<compile_context>
chip_gen: v5e
topology: v5e:2x2
jax: 0.10.0
libtpu: 0.0.40
codegen_flags: <defaults>
</compile_context>

<pallas_src>
import numpy as np
import jax
import jax.numpy as jnp
from jax import lax
from jax.experimental import pallas as pl
from jax.experimental.pallas import tpu as pltpu

# ----------------------------- hyper-params --------------------------------
SAMPLE_RATE = 16000
N_FFT = 256
HOP = 128            # N_FFT // 2  (50% overlap -> framing is a cheap reshape)
N_MELS = 32
N_MFCC = 16          # conv spatial H
N_CLASSES = 10
C1 = 8               # conv1 output channels   (N_MFCC   * C1 = 128 lanes)
C2 = 16              # conv2 output channels   (N_MFCC/2 * C2 = 128 lanes)
NFREQ = N_FFT // 2 + 1
NBIN = 128           # rfft bins 1..128 kept (DC bin has zero mel weight)
OUT_LANES = 128      # lane-dense logits slab (first N_CLASSES lanes valid)


# ============================ fused Pallas kernel ===========================

def fused_kernel(frames_ref, trigw_ref, melw_ref, conv1m_ref, b1_ref,
                 selw1_ref, conv2m_ref, b2_ref, segsel2_ref, fcm_ref, fcb_ref,
                 out_ref):
    """Whole forward pass for BB stacked batch elements; all resident in VMEM."""
    f32, bf16 = jnp.float32, jnp.bfloat16
    m_rows = frames_ref.shape[1]          # BB*T   (stacked time rows)
    bb = out_ref.shape[1]                 # batch elements per grid step
    seg_t = m_rows // bb                  # frames per element
    m1 = selw1_ref.shape[0]               # BB*(T//2)
    seg_t2 = m1 // bb
    nm = melw_ref.shape[1]                # n_mels
    nbin = melw_ref.shape[0]              # 128 kept rfft bins
    lanes1 = conv2m_ref.shape[0] // 3     # 120
    lanes2 = fcm_ref.shape[0]             # 112

    # ---- windowed DFT (Hann + cos|sin folded into trigw) + power spectrum --
    frames = frames_ref[0].astype(bf16)                            # (M, 256)
    spec = jnp.dot(frames, trigw_ref[...], preferred_element_type=f32)
    re = spec[:, :nbin]
    im = spec[:, nbin:]
    power = re * re + im * im                                      # (M, 128)

    # ---- mel + log ----------------------------------------------------------
    mel = jnp.dot(power.astype(bf16), melw_ref[...], preferred_element_type=f32)
    logmel = jnp.log(mel + 1e-6)                                   # (M, 32)
    # TODO(synk): torchaudio MFCC default is amplitude_to_DB (10*log10, top_db
    # clamp) + center=True framing; plain log / center=False kept as before.

    # ---- conv1 (3x3, pad 1) + relu; DCT + all 3 time taps fused in one dot --
    lm = logmel.astype(bf16)
    zr = jnp.zeros((1, nm), bf16)
    prev = jnp.concatenate([zr, lm[:m_rows - 1]], axis=0)
    nxt = jnp.concatenate([lm[1:], zr], axis=0)
    pos = lax.broadcasted_iota(jnp.int32, (m_rows, nm), 0) % seg_t
    prev = jnp.where(pos == 0, jnp.zeros((), bf16), prev)          # segment start pad
    nxt = jnp.where(pos == seg_t - 1, jnp.zeros((), bf16), nxt)    # segment end pad
    act1 = jnp.concatenate([prev, lm, nxt], axis=1)                # (M, 96)
    a1 = jnp.dot(act1, conv1m_ref[...], preferred_element_type=f32)
    a1 = jnp.maximum(a1 + b1_ref[...], 0.0)                        # (M, 128) lane=h*C1+c

    # ---- maxpool1 2x2: freq pairs via lane shift, time pairs via row select -
    hp1 = jnp.maximum(a1[:, :lanes1], a1[:, C1:])                  # (M, 120)
    rmax1 = jnp.maximum(hp1[:m_rows - 1], hp1[1:])                 # (M-1, 120)
    p1 = jnp.dot(selw1_ref[...], rmax1.astype(bf16),
                 preferred_element_type=f32)                       # (M1, 120)

    # ---- conv2 (3x3, pad 1) + relu; 3 time taps fused in one dot ------------
    p1b = p1.astype(bf16)
    zr2 = jnp.zeros((1, lanes1), bf16)
    prev2 = jnp.concatenate([zr2, p1b[:m1 - 1]], axis=0)
    nxt2 = jnp.concatenate([p1b[1:], zr2], axis=0)
    pos2 = lax.broadcasted_iota(jnp.int32, (m1, lanes1), 0) % seg_t2
    prev2 = jnp.where(pos2 == 0, jnp.zeros((), bf16), prev2)
    nxt2 = jnp.where(pos2 == seg_t2 - 1, jnp.zeros((), bf16), nxt2)
    act2 = jnp.concatenate([prev2, p1b, nxt2], axis=1)             # (M1, 360)
    a2 = jnp.dot(act2, conv2m_ref[...], preferred_element_type=f32)
    a2 = jnp.maximum(a2 + b2_ref[...], 0.0)                        # (M1, 128) lane=h*C2+c

    # ---- maxpool2 + global-avg-pool (time sum) + FC -------------------------
    hp2 = jnp.maximum(a2[:, :lanes2], a2[:, C2:])                  # (M1, 112)
    rmax2 = jnp.maximum(hp2[:m1 - 1], hp2[1:])                     # (M1-1, 112)
    pooled = jnp.dot(segsel2_ref[...], rmax2.astype(bf16),
                     preferred_element_type=f32)                   # (BB, 112) per-element sums
    logits = jnp.dot(pooled.astype(bf16), fcm_ref[...],
                     preferred_element_type=f32) + fcb_ref[...]    # (BB, 128)
    out_ref[0] = logits


# ======================= constant (weight) construction =====================

def hann_window(n):
    # periodic Hann (torch.hann_window default)
    return 0.5 * (1.0 - np.cos(2.0 * np.pi * np.arange(n) / n))


def dft_matrices(n_fft, bins):
    n = np.arange(n_fft)[:, None].astype(np.float64)
    k = np.asarray(bins)[None, :].astype(np.float64)
    ang = 2.0 * np.pi * n * k / n_fft
    return np.cos(ang), -np.sin(ang)


def mel_filterbank(n_freq, n_mels, sr):
    # HTK mel scale, no norm (torchaudio MelSpectrogram defaults)
    def hz_to_mel(f):
        return 2595.0 * np.log10(1.0 + f / 700.0)

    def mel_to_hz(m):
        return 700.0 * (10.0 ** (m / 2595.0) - 1.0)

    all_freqs = np.linspace(0.0, sr / 2.0, n_freq)
    m_pts = np.linspace(hz_to_mel(0.0), hz_to_mel(sr / 2.0), n_mels + 2)
    f_pts = mel_to_hz(m_pts)
    f_diff = f_pts[1:] - f_pts[:-1]
    slopes = f_pts[None, :] - all_freqs[:, None]
    down = -slopes[:, :-2] / f_diff[:-1]
    up = slopes[:, 2:] / f_diff[1:]
    return np.maximum(0.0, np.minimum(down, up))


def dct_matrix(n_mels, n_mfcc):
    # DCT-II with ortho norm, shape (n_mels, n_mfcc)
    n = np.arange(n_mels)[:, None]
    k = np.arange(n_mfcc)[None, :]
    d = np.cos(np.pi / n_mels * (n + 0.5) * k) * np.sqrt(2.0 / n_mels)
    d[:, 0] *= 1.0 / np.sqrt(2.0)
    return d


def build_constants(params, n_frames, bb):
    """Precompute all constant MXU operands (once per model / input length)."""
    t = n_frames
    t2, t4 = t // 2, (t // 2) // 2
    m, m1 = bb * t, bb * t2
    h1, h2, h3 = N_MFCC, N_MFCC // 2, N_MFCC // 4

    # -- MFCC front-end: Hann window + DFT (bins 1..128) folded into a single
    #    lane-dense (256,256) matrix.  DC bin (and Nyquist's mel row) carry
    #    exactly zero HTK filterbank weight, so dropping/zeroing is lossless.
    bins = np.arange(1, NBIN + 1)
    cos_m, sin_m = dft_matrices(N_FFT, bins)                 # (256,128) each
    win = hann_window(N_FFT)[:, None]
    trigw = np.concatenate([win * cos_m, win * sin_m], axis=1)     # (256, 256)
    melw = mel_filterbank(NFREQ, N_MELS, SAMPLE_RATE)[1:NBIN + 1]  # (128, 32)
    dct = dct_matrix(N_MELS, N_MFCC)                               # (32, 16)

    w1 = np.asarray(params["conv1_w"], np.float64)           # (C1, 1, 3, 3)
    b1 = np.asarray(params["conv1_b"], np.float64)
    w2 = np.asarray(params["conv2_w"], np.float64)           # (C2, C1, 3, 3)
    b2 = np.asarray(params["conv2_b"], np.float64)
    fw = np.asarray(params["fc_w"], np.float64)               # (NC, C2)
    fb_ = np.asarray(params["fc_b"], np.float64)

    # -- conv1: DCT + height taps + the 3 time taps fused into (96, 128); ----
    #    output lane = h*C1 + c; height zero-padding absorbed via valid mask.
    lane1 = np.arange(h1 * C1)
    h_o1, c_o1 = lane1 // C1, lane1 % C1
    h_in = np.arange(h1)
    blk = []
    for kw in range(3):
        kh = h_in[:, None] - h_o1[None, :] + 1
        valid = (kh >= 0) & (kh <= 2)
        wsel = w1[c_o1[None, :], 0, np.clip(kh, 0, 2), kw]
        blk.append(dct @ np.where(valid, wsel, 0.0))         # (32, 128)
    conv1m = np.concatenate(blk, axis=0)                     # (96, 128)
    b1row = np.tile(b1, h1)[None, :]                         # (1, 128)

    # -- maxpool1 time-pair row-select (segment aware): picks row i*T + 2t' --
    sel1 = np.zeros((m1, m - 1))
    o = np.arange(m1)
    sel1[o, (o // t2) * t + 2 * (o % t2)] = 1.0

    # -- conv2: height taps + 3 time taps fused into (360, 128); input lane
    #    l -> h_in=l//(2*C1), c_in=l%(2*C1), valid only when c_in < C1 -------
    in_l2 = h1 * C1 - C1                                      # 120
    lin = np.arange(in_l2)
    h_i2, c_i2 = lin // (2 * C1), lin % (2 * C1)
    lane2 = np.arange(h2 * C2)
    h_o2, c_o2 = lane2 // C2, lane2 % C2
    blk2 = []
    for kw in range(3):
        kh = h_i2[:, None] - h_o2[None, :] + 1
        valid = (kh >= 0) & (kh <= 2) & (c_i2[:, None] < C1)
        wsel = w2[c_o2[None, :], np.clip(c_i2, 0, C1 - 1)[:, None],
                  np.clip(kh, 0, 2), kw]
        blk2.append(np.where(valid, wsel, 0.0))               # (120, 128)
    conv2m = np.concatenate(blk2, axis=0)                     # (360, 128)
    b2row = np.tile(b2, h2)[None, :]                          # (1, 128)

    # -- maxpool2 time pairs + GAP time-sum folded into one (BB, M1-1) matrix -
    segsel2 = np.zeros((bb, m1 - 1))
    for i in range(bb):
        segsel2[i, i * t2 + 2 * np.arange(t4)] = 1.0

    # -- GAP lane fold + FC head, lane-dense padded to 128 output lanes ------
    in_l3 = h2 * C2 - C2                                      # 112
    l3 = np.arange(in_l3)
    c3 = l3 % (2 * C2)
    valid3 = c3 < C2
    fcm = np.zeros((in_l3, OUT_LANES))
    fcm[:, :N_CLASSES] = (np.where(valid3[:, None],
                                   fw.T[np.clip(c3, 0, C2 - 1), :], 0.0)
                          / float(h3 * t4))
    fcb = np.zeros((1, OUT_LANES))
    fcb[0, :N_CLASSES] = fb_

    bf, f32 = jnp.bfloat16, jnp.float32
    return (jnp.asarray(trigw, bf), jnp.asarray(melw, bf),
            jnp.asarray(conv1m, bf), jnp.asarray(b1row, f32),
            jnp.asarray(sel1, bf), jnp.asarray(conv2m, bf),
            jnp.asarray(b2row, f32), jnp.asarray(segsel2, bf),
            jnp.asarray(fcm, bf), jnp.asarray(fcb, f32))


# ============================ model / forward ===============================

def init_params(key, n_classes):
    ks = jax.random.split(key, 3)
    return {
        "conv1_w": 0.10 * jax.random.normal(ks[0], (C1, 1, 3, 3), jnp.float32),
        "conv1_b": jnp.zeros((C1,), jnp.float32),
        "conv2_w": 0.05 * jax.random.normal(ks[1], (C2, C1, 3, 3), jnp.float32),
        "conv2_b": jnp.zeros((C2,), jnp.float32),
        "fc_w": 0.10 * jax.random.normal(ks[2], (n_classes, C2), jnp.float32),
        "fc_b": jnp.zeros((n_classes,), jnp.float32),
    }


def choose_group(batch, n_frames):
    """Batch elements stacked per grid step: target ~128 MXU rows, but keep
    >=2 grid steps (both v7x TensorCores) whenever the batch allows it."""
    bb = max(1, min(batch, 128 // max(n_frames, 1)))
    if batch >= 2:
        bb = max(1, min(bb, batch // 2))
    return bb


def my_wrapper_forward(wav, consts, bb):
    """wav: (B, L) float32 PCM -> (B, n_classes) logits. One fused kernel."""
    assert N_FFT == 2 * HOP and N_MFCC % 4 == 0
    B, L = wav.shape
    t = 1 + (L - N_FFT) // HOP                   # center=False framing
    assert t >= 4, "need at least 4 frames for the two 2x2 max-pools"
    g = -(-B // bb)
    bp = g * bb
    if bp != B:                                  # pad batch to a full group
        wav = jnp.pad(wav, ((0, bp - B), (0, 0)))

    # layout plumbing only: overlapped frames built outside the kernel.
    chunks = wav[:, :(t + 1) * HOP].reshape(bp, t + 1, HOP)
    frames = jnp.concatenate([chunks[:, :t, :], chunks[:, 1:, :]], axis=2)
    frames = frames.reshape(g, bb * t, N_FFT)    # (G, BB*T, 256)

    (trigw, melw, conv1m, b1row, sel1,
     conv2m, b2row, segsel2, fcm, fcb) = consts

    m, m1 = bb * t, bb * (t // 2)
    flops = g * (2 * m * trigw.shape[0] * trigw.shape[1]
                 + 2 * m * melw.shape[0] * melw.shape[1]
                 + 2 * m * conv1m.shape[0] * conv1m.shape[1]
                 + 2 * sel1.shape[0] * sel1.shape[1] * 120
                 + 2 * m1 * conv2m.shape[0] * conv2m.shape[1]
                 + 2 * bb * segsel2.shape[1] * 112
                 + 2 * bb * fcm.shape[0] * fcm.shape[1])
    const_bytes = sum(int(c.size) * c.dtype.itemsize for c in consts)
    cost = pl.CostEstimate(
        flops=int(flops),
        transcendentals=int(g * m * N_MELS),
        bytes_accessed=int(frames.size) * 4 + const_bytes + g * bb * OUT_LANES * 4)

    out = pl.pallas_call(
        fused_kernel,
        grid=(g,),
        in_specs=[
            pl.BlockSpec((1, m, N_FFT), lambda i: (i, 0, 0)),
            pl.BlockSpec(trigw.shape, lambda i: (0, 0)),
            pl.BlockSpec(melw.shape, lambda i: (0, 0)),
            pl.BlockSpec(conv1m.shape, lambda i: (0, 0)),
            pl.BlockSpec(b1row.shape, lambda i: (0, 0)),
            pl.BlockSpec(sel1.shape, lambda i: (0, 0)),
            pl.BlockSpec(conv2m.shape, lambda i: (0, 0)),
            pl.BlockSpec(b2row.shape, lambda i: (0, 0)),
            pl.BlockSpec(segsel2.shape, lambda i: (0, 0)),
            pl.BlockSpec(fcm.shape, lambda i: (0, 0)),
            pl.BlockSpec(fcb.shape, lambda i: (0, 0)),
        ],
        out_specs=pl.BlockSpec((1, bb, OUT_LANES), lambda i: (i, 0, 0)),
        out_shape=jax.ShapeDtypeStruct((g, bb, OUT_LANES), jnp.float32),
        compiler_params=pltpu.CompilerParams(
            dimension_semantics=("parallel",)),
        cost_estimate=cost,
    )(frames, trigw, melw, conv1m, b1row, sel1, conv2m, b2row, segsel2,
      fcm, fcb)
    return out.reshape(bp, OUT_LANES)[:B, :N_CLASSES]


if __name__ == "__main__":
    key = jax.random.PRNGKey(0)
    k_wav, k_par = jax.random.split(key)

    B, L = 8, 4000                               # 8 x 0.25 s of 16 kHz audio
    wav = jax.random.normal(k_wav, (B, L), jnp.float32)
    params = init_params(k_par, N_CLASSES)

    n_frames = 1 + (L - N_FFT) // HOP            # 30
    bb = choose_group(B, n_frames)               # 4 -> grid=(2,), 120 rows/step
    consts = build_constants(params, n_frames, bb)

    forward = jax.jit(my_wrapper_forward, static_argnums=2)
    logits = forward(wav, consts, bb)
    logits = jax.block_until_ready(logits)
    assert logits.shape == (B, N_CLASSES), logits.shape
    assert bool(jnp.all(jnp.isfinite(logits)))
    print("KERNEL_OK")
</pallas_src>

<mosaic_0001>
module attributes {stable_mosaic.version = 11 : i64} {
  func.func @fused_kernel(%arg0: i32, %arg1: memref<1x120x256xf32, #tpu.memory_space<vmem>>, %arg2: memref<256x256xbf16, #tpu.memory_space<vmem>>, %arg3: memref<128x32xbf16, #tpu.memory_space<vmem>>, %arg4: memref<96x128xbf16, #tpu.memory_space<vmem>>, %arg5: memref<1x128xf32, #tpu.memory_space<vmem>>, %arg6: memref<60x119xbf16, #tpu.memory_space<vmem>>, %arg7: memref<360x128xbf16, #tpu.memory_space<vmem>>, %arg8: memref<1x128xf32, #tpu.memory_space<vmem>>, %arg9: memref<4x59xbf16, #tpu.memory_space<vmem>>, %arg10: memref<112x128xbf16, #tpu.memory_space<vmem>>, %arg11: memref<1x128xf32, #tpu.memory_space<vmem>>, %arg12: memref<1x4x128xf32, #tpu.memory_space<vmem>>) attributes {dimension_semantics = [#tpu.dimension_semantics<parallel>], iteration_bounds = array<i64: 2>, scalar_prefetch = 0 : i64, scratch_operands = 0 : i64, tpu.core_type = #tpu.core_type<tc>, window_params = [{transform_indices = @transform_0, window_bounds = array<i64: 1, 120, 256>}, {pipeline_mode = #tpu.pipeline_mode<synchronous>, transform_indices = @transform_1, window_bounds = array<i64: 256, 256>}, {pipeline_mode = #tpu.pipeline_mode<synchronous>, transform_indices = @transform_2, window_bounds = array<i64: 128, 32>}, {pipeline_mode = #tpu.pipeline_mode<synchronous>, transform_indices = @transform_3, window_bounds = array<i64: 96, 128>}, {pipeline_mode = #tpu.pipeline_mode<synchronous>, transform_indices = @transform_4, window_bounds = array<i64: 1, 128>}, {pipeline_mode = #tpu.pipeline_mode<synchronous>, transform_indices = @transform_5, window_bounds = array<i64: 60, 119>}, {pipeline_mode = #tpu.pipeline_mode<synchronous>, transform_indices = @transform_6, window_bounds = array<i64: 360, 128>}, {pipeline_mode = #tpu.pipeline_mode<synchronous>, transform_indices = @transform_7, window_bounds = array<i64: 1, 128>}, {pipeline_mode = #tpu.pipeline_mode<synchronous>, transform_indices = @transform_8, window_bounds = array<i64: 4, 59>}, {pipeline_mode = #tpu.pipeline_mode<synchronous>, transform_indices = @transform_9, window_bounds = array<i64: 112, 128>}, {pipeline_mode = #tpu.pipeline_mode<synchronous>, transform_indices = @transform_10, window_bounds = array<i64: 1, 128>}, {transform_indices = @transform_11, window_bounds = array<i64: 1, 4, 128>}]} {
    %c0 = arith.constant 0 : index
    %c0_0 = arith.constant 0 : index
    %c0_1 = arith.constant 0 : index
    %0 = vector.load %arg1[%c0, %c0_0, %c0_1] : memref<1x120x256xf32, #tpu.memory_space<vmem>>, vector<1x120x256xf32>
    %1 = vector.shape_cast %0 : vector<1x120x256xf32> to vector<120x256xf32>
    %2 = arith.truncf %1 : vector<120x256xf32> to vector<120x256xbf16>
    %c0_2 = arith.constant 0 : index
    %c0_3 = arith.constant 0 : index
    %3 = vector.load %arg2[%c0_2, %c0_3] : memref<256x256xbf16, #tpu.memory_space<vmem>>, vector<256x256xbf16>
    %cst = arith.constant dense<0.000000e+00> : vector<120x256xf32>
    %4 = tpu.matmul %2, %3, %cst {dimension_numbers = #tpu.dot_dimension_numbers<[1], [0], [0], [1], [0, 0, 1, 1], [], []>} : vector<120x256xbf16>, vector<256x256xbf16>, vector<120x256xf32> -> vector<120x256xf32>
    %5 = vector.extract_strided_slice %4 {offsets = [0, 0], sizes = [120, 128], strides = [1, 1]} : vector<120x256xf32> to vector<120x128xf32>
    %6 = vector.extract_strided_slice %4 {offsets = [0, 128], sizes = [120, 128], strides = [1, 1]} : vector<120x256xf32> to vector<120x128xf32>
    %7 = arith.mulf %5, %5 : vector<120x128xf32>
    %8 = arith.mulf %6, %6 : vector<120x128xf32>
    %9 = arith.addf %7, %8 : vector<120x128xf32>
    %10 = arith.truncf %9 : vector<120x128xf32> to vector<120x128xbf16>
    %c0_4 = arith.constant 0 : index
    %c0_5 = arith.constant 0 : index
    %11 = vector.load %arg3[%c0_4, %c0_5] : memref<128x32xbf16, #tpu.memory_space<vmem>>, vector<128x32xbf16>
    %cst_6 = arith.constant dense<0.000000e+00> : vector<120x32xf32>
    %12 = tpu.matmul %10, %11, %cst_6 {dimension_numbers = #tpu.dot_dimension_numbers<[1], [0], [0], [1], [0, 0, 1, 1], [], []>} : vector<120x128xbf16>, vector<128x32xbf16>, vector<120x32xf32> -> vector<120x32xf32>
    %cst_7 = arith.constant 9.99999997E-7 : f32
    %13 = vector.broadcast %cst_7 : f32 to vector<120x32xf32>
    %14 = arith.addf %12, %13 : vector<120x32xf32>
    %15 = math.log %14 : vector<120x32xf32>
    %16 = arith.truncf %15 : vector<120x32xf32> to vector<120x32xbf16>
    %cst_8 = arith.constant 0.000000e+00 : bf16
    %17 = vector.broadcast %cst_8 : bf16 to vector<1x32xbf16>
    %18 = vector.extract_strided_slice %16 {offsets = [0, 0], sizes = [119, 32], strides = [1, 1]} : vector<120x32xbf16> to vector<119x32xbf16>
    %19 = tpu.concatenate %17, %18 in 0 : vector<1x32xbf16>, vector<119x32xbf16> -> vector<120x32xbf16>
    %20 = vector.extract_strided_slice %16 {offsets = [1, 0], sizes = [119, 32], strides = [1, 1]} : vector<120x32xbf16> to vector<119x32xbf16>
    %21 = tpu.concatenate %20, %17 in 0 : vector<119x32xbf16>, vector<1x32xbf16> -> vector<120x32xbf16>
    %22 = tpu.iota {dimensions = array<i32: 0>} : vector<120x32xi32>
    %c30_i32 = arith.constant 30 : i32
    %c0_i32 = arith.constant 0 : i32
    %23 = arith.cmpi eq, %c30_i32, %c0_i32 : i32
    %c1_i32 = arith.constant 1 : i32
    %24 = arith.select %23, %c1_i32, %c30_i32 : i32
    %25 = vector.broadcast %24 : i32 to vector<120x32xi32>
    %26 = arith.remsi %22, %25 : vector<120x32xi32>
    %c0_i32_9 = arith.constant 0 : i32
    %27 = vector.broadcast %c0_i32_9 : i32 to vector<120x32xi32>
    %28 = arith.cmpi ne, %26, %27 : vector<120x32xi32>
    %c0_i32_10 = arith.constant 0 : i32
    %29 = vector.broadcast %c0_i32_10 : i32 to vector<120x32xi32>
    %30 = arith.cmpi slt, %26, %29 : vector<120x32xi32>
    %c0_i32_11 = arith.constant 0 : i32
    %31 = arith.cmpi slt, %24, %c0_i32_11 : i32
    %32 = vector.broadcast %31 : i1 to vector<120x32xi1>
    %33 = vector.broadcast %32 : vector<120x32xi1> to vector<120x32xi1>
    %34 = arith.xori %30, %33 : vector<120x32xi1>
    %35 = arith.andi %34, %28 : vector<120x32xi1>
    %36 = vector.broadcast %24 : i32 to vector<120x32xi32>
    %37 = arith.addi %26, %36 : vector<120x32xi32>
    %38 = arith.select %35, %37, %26 : vector<120x32xi1>, vector<120x32xi32>
    %c0_i32_12 = arith.constant 0 : i32
    %39 = vector.broadcast %c0_i32_12 : i32 to vector<120x32xi32>
    %40 = arith.cmpi eq, %38, %39 : vector<120x32xi32>
    %cst_13 = arith.constant 0.000000e+00 : bf16
    %41 = vector.broadcast %cst_13 : bf16 to vector<120x32xbf16>
    %42 = arith.select %40, %41, %19 : vector<120x32xi1>, vector<120x32xbf16>
    %c29_i32 = arith.constant 29 : i32
    %43 = vector.broadcast %c29_i32 : i32 to vector<120x32xi32>
    %44 = arith.cmpi eq, %38, %43 : vector<120x32xi32>
    %cst_14 = arith.constant 0.000000e+00 : bf16
    %45 = vector.broadcast %cst_14 : bf16 to vector<120x32xbf16>
    %46 = arith.select %44, %45, %21 : vector<120x32xi1>, vector<120x32xbf16>
    %47 = tpu.concatenate %42, %16, %46 in 1 : vector<120x32xbf16>, vector<120x32xbf16>, vector<120x32xbf16> -> vector<120x96xbf16>
    %c0_15 = arith.constant 0 : index
    %c0_16 = arith.constant 0 : index
    %48 = vector.load %arg4[%c0_15, %c0_16] : memref<96x128xbf16, #tpu.memory_space<vmem>>, vector<96x128xbf16>
    %cst_17 = arith.constant dense<0.000000e+00> : vector<120x128xf32>
    %49 = tpu.matmul %47, %48, %cst_17 {dimension_numbers = #tpu.dot_dimension_numbers<[1], [0], [0], [1], [0, 0, 1, 1], [], []>} : vector<120x96xbf16>, vector<96x128xbf16>, vector<120x128xf32> -> vector<120x128xf32>
    %c0_18 = arith.constant 0 : index
    %c0_19 = arith.constant 0 : index
    %50 = vector.load %arg5[%c0_18, %c0_19] : memref<1x128xf32, #tpu.memory_space<vmem>>, vector<1x128xf32>
    %51 = vector.broadcast %50 : vector<1x128xf32> to vector<120x128xf32>
    %52 = arith.addf %49, %51 : vector<120x128xf32>
    %cst_20 = arith.constant 0.000000e+00 : f32
    %53 = vector.broadcast %cst_20 : f32 to vector<120x128xf32>
    %54 = arith.maximumf %52, %53 : vector<120x128xf32>
    %55 = vector.extract_strided_slice %54 {offsets = [0, 0], sizes = [120, 120], strides = [1, 1]} : vector<120x128xf32> to vector<120x120xf32>
    %56 = vector.extract_strided_slice %54 {offsets = [0, 8], sizes = [120, 120], strides = [1, 1]} : vector<120x128xf32> to vector<120x120xf32>
    %57 = arith.maximumf %55, %56 : vector<120x120xf32>
    %58 = vector.extract_strided_slice %57 {offsets = [0, 0], sizes = [119, 120], strides = [1, 1]} : vector<120x120xf32> to vector<119x120xf32>
    %59 = vector.extract_strided_slice %57 {offsets = [1, 0], sizes = [119, 120], strides = [1, 1]} : vector<120x120xf32> to vector<119x120xf32>
    %60 = arith.maximumf %58, %59 : vector<119x120xf32>
    %c0_21 = arith.constant 0 : index
    %c0_22 = arith.constant 0 : index
    %61 = vector.load %arg6[%c0_21, %c0_22] : memref<60x119xbf16, #tpu.memory_space<vmem>>, vector<60x119xbf16>
    %62 = arith.truncf %60 : vector<119x120xf32> to vector<119x120xbf16>
    %cst_23 = arith.constant dense<0.000000e+00> : vector<60x120xf32>
    %63 = tpu.matmul %61, %62, %cst_23 {dimension_numbers = #tpu.dot_dimension_numbers<[1], [0], [0], [1], [0, 0, 1, 1], [], []>} : vector<60x119xbf16>, vector<119x120xbf16>, vector<60x120xf32> -> vector<60x120xf32>
    %64 = arith.truncf %63 : vector<60x120xf32> to vector<60x120xbf16>
    %cst_24 = arith.constant 0.000000e+00 : bf16
    %65 = vector.broadcast %cst_24 : bf16 to vector<1x120xbf16>
    %66 = vector.extract_strided_slice %64 {offsets = [0, 0], sizes = [59, 120], strides = [1, 1]} : vector<60x120xbf16> to vector<59x120xbf16>
    %67 = tpu.concatenate %65, %66 in 0 : vector<1x120xbf16>, vector<59x120xbf16> -> vector<60x120xbf16>
    %68 = vector.extract_strided_slice %64 {offsets = [1, 0], sizes = [59, 120], strides = [1, 1]} : vector<60x120xbf16> to vector<59x120xbf16>
    %69 = tpu.concatenate %68, %65 in 0 : vector<59x120xbf16>, vector<1x120xbf16> -> vector<60x120xbf16>
    %70 = tpu.iota {dimensions = array<i32: 0>} : vector<60x120xi32>
    %c15_i32 = arith.constant 15 : i32
    %c0_i32_25 = arith.constant 0 : i32
    %71 = arith.cmpi eq, %c15_i32, %c0_i32_25 : i32
    %c1_i32_26 = arith.constant 1 : i32
    %72 = arith.select %71, %c1_i32_26, %c15_i32 : i32
    %73 = vector.broadcast %72 : i32 to vector<60x120xi32>
    %74 = arith.remsi %70, %73 : vector<60x120xi32>
    %c0_i32_27 = arith.constant 0 : i32
    %75 = vector.broadcast %c0_i32_27 : i32 to vector<60x120xi32>
    %76 = arith.cmpi ne, %74, %75 : vector<60x120xi32>
    %c0_i32_28 = arith.constant 0 : i32
    %77 = vector.broadcast %c0_i32_28 : i32 to vector<60x120xi32>
    %78 = arith.cmpi slt, %74, %77 : vector<60x120xi32>
    %c0_i32_29 = arith.constant 0 : i32
    %79 = arith.cmpi slt, %72, %c0_i32_29 : i32
    %80 = vector.broadcast %79 : i1 to vector<60x120xi1>
    %81 = vector.broadcast %80 : vector<60x120xi1> to vector<60x120xi1>
    %82 = arith.xori %78, %81 : vector<60x120xi1>
    %83 = arith.andi %82, %76 : vector<60x120xi1>
    %84 = vector.broadcast %72 : i32 to vector<60x120xi32>
    %85 = arith.addi %74, %84 : vector<60x120xi32>
    %86 = arith.select %83, %85, %74 : vector<60x120xi1>, vector<60x120xi32>
    %c0_i32_30 = arith.constant 0 : i32
    %87 = vector.broadcast %c0_i32_30 : i32 to vector<60x120xi32>
    %88 = arith.cmpi eq, %86, %87 : vector<60x120xi32>
    %cst_31 = arith.constant 0.000000e+00 : bf16
    %89 = vector.broadcast %cst_31 : bf16 to vector<60x120xbf16>
    %90 = arith.select %88, %89, %67 : vector<60x120xi1>, vector<60x120xbf16>
    %c14_i32 = arith.constant 14 : i32
    %91 = vector.broadcast %c14_i32 : i32 to vector<60x120xi32>
    %92 = arith.cmpi eq, %86, %91 : vector<60x120xi32>
    %cst_32 = arith.constant 0.000000e+00 : bf16
    %93 = vector.broadcast %cst_32 : bf16 to vector<60x120xbf16>
    %94 = arith.select %92, %93, %69 : vector<60x120xi1>, vector<60x120xbf16>
    %95 = tpu.concatenate %90, %64, %94 in 1 : vector<60x120xbf16>, vector<60x120xbf16>, vector<60x120xbf16> -> vector<60x360xbf16>
    %c0_33 = arith.constant 0 : index
    %c0_34 = arith.constant 0 : index
    %96 = vector.load %arg7[%c0_33, %c0_34] : memref<360x128xbf16, #tpu.memory_space<vmem>>, vector<360x128xbf16>
    %cst_35 = arith.constant dense<0.000000e+00> : vector<60x128xf32>
    %97 = tpu.matmul %95, %96, %cst_35 {dimension_numbers = #tpu.dot_dimension_numbers<[1], [0], [0], [1], [0, 0, 1, 1], [], []>} : vector<60x360xbf16>, vector<360x128xbf16>, vector<60x128xf32> -> vector<60x128xf32>
    %c0_36 = arith.constant 0 : index
    %c0_37 = arith.constant 0 : index
    %98 = vector.load %arg8[%c0_36, %c0_37] : memref<1x128xf32, #tpu.memory_space<vmem>>, vector<1x128xf32>
    %99 = vector.broadcast %98 : vector<1x128xf32> to vector<60x128xf32>
    %100 = arith.addf %97, %99 : vector<60x128xf32>
    %cst_38 = arith.constant 0.000000e+00 : f32
    %101 = vector.broadcast %cst_38 : f32 to vector<60x128xf32>
    %102 = arith.maximumf %100, %101 : vector<60x128xf32>
    %103 = vector.extract_strided_slice %102 {offsets = [0, 0], sizes = [60, 112], strides = [1, 1]} : vector<60x128xf32> to vector<60x112xf32>
    %104 = vector.extract_strided_slice %102 {offsets = [0, 16], sizes = [60, 112], strides = [1, 1]} : vector<60x128xf32> to vector<60x112xf32>
    %105 = arith.maximumf %103, %104 : vector<60x112xf32>
    %106 = vector.extract_strided_slice %105 {offsets = [0, 0], sizes = [59, 112], strides = [1, 1]} : vector<60x112xf32> to vector<59x112xf32>
    %107 = vector.extract_strided_slice %105 {offsets = [1, 0], sizes = [59, 112], strides = [1, 1]} : vector<60x112xf32> to vector<59x112xf32>
    %108 = arith.maximumf %106, %107 : vector<59x112xf32>
    %c0_39 = arith.constant 0 : index
    %c0_40 = arith.constant 0 : index
    %109 = vector.load %arg9[%c0_39, %c0_40] : memref<4x59xbf16, #tpu.memory_space<vmem>>, vector<4x59xbf16>
    %110 = arith.truncf %108 : vector<59x112xf32> to vector<59x112xbf16>
    %cst_41 = arith.constant dense<0.000000e+00> : vector<4x112xf32>
    %111 = tpu.matmul %109, %110, %cst_41 {dimension_numbers = #tpu.dot_dimension_numbers<[1], [0], [0], [1], [0, 0, 1, 1], [], []>} : vector<4x59xbf16>, vector<59x112xbf16>, vector<4x112xf32> -> vector<4x112xf32>
    %112 = arith.truncf %111 : vector<4x112xf32> to vector<4x112xbf16>
    %c0_42 = arith.constant 0 : index
    %c0_43 = arith.constant 0 : index
    %113 = vector.load %arg10[%c0_42, %c0_43] : memref<112x128xbf16, #tpu.memory_space<vmem>>, vector<112x128xbf16>
    %cst_44 = arith.constant dense<0.000000e+00> : vector<4x128xf32>
    %114 = tpu.matmul %112, %113, %cst_44 {dimension_numbers = #tpu.dot_dimension_numbers<[1], [0], [0], [1], [0, 0, 1, 1], [], []>} : vector<4x112xbf16>, vector<112x128xbf16>, vector<4x128xf32> -> vector<4x128xf32>
    %c0_45 = arith.constant 0 : index
    %c0_46 = arith.constant 0 : index
    %115 = vector.load %arg11[%c0_45, %c0_46] : memref<1x128xf32, #tpu.memory_space<vmem>>, vector<1x128xf32>
    %116 = vector.broadcast %115 : vector<1x128xf32> to vector<4x128xf32>
    %117 = arith.addf %114, %116 : vector<4x128xf32>
    %c0_47 = arith.constant 0 : index
    %c0_48 = arith.constant 0 : index
    %c0_49 = arith.constant 0 : index
    %118 = vector.load %arg12[%c0_47, %c0_48, %c0_49] : memref<1x4x128xf32, #tpu.memory_space<vmem>>, vector<1x4x128xf32>
    %119 = vector.shape_cast %118 : vector<1x4x128xf32> to vector<4x128xf32>
    %120 = vector.shape_cast %117 : vector<4x128xf32> to vector<1x4x128xf32>
    tpu.vector_store %arg12[%c0_47, %c0_48, %c0_49], %120 {strides = array<i32>} : memref<1x4x128xf32, #tpu.memory_space<vmem>>, vector<1x4x128xf32>,
    return
  }
  func.func @transform_0(%arg0: i32) -> (i32, i32, i32) {
    %c0_i32 = arith.constant 0 : i32
    %c0_i32_0 = arith.constant 0 : i32
    %c0_i32_1 = arith.constant 0 : i32
    return %arg0, %c0_i32, %c0_i32_0 : i32, i32, i32
  }
  func.func @transform_1(%arg0: i32) -> (i32, i32) {
    %c0_i32 = arith.constant 0 : i32
    %c0_i32_0 = arith.constant 0 : i32
    %c0_i32_1 = arith.constant 0 : i32
    return %c0_i32, %c0_i32_0 : i32, i32
  }
  func.func @transform_2(%arg0: i32) -> (i32, i32) {
    %c0_i32 = arith.constant 0 : i32
    %c0_i32_0 = arith.constant 0 : i32
    %c0_i32_1 = arith.constant 0 : i32
    return %c0_i32, %c0_i32_0 : i32, i32
  }
  func.func @transform_3(%arg0: i32) -> (i32, i32) {
    %c0_i32 = arith.constant 0 : i32
    %c0_i32_0 = arith.constant 0 : i32
    %c0_i32_1 = arith.constant 0 : i32
    return %c0_i32, %c0_i32_0 : i32, i32
  }
  func.func @transform_4(%arg0: i32) -> (i32, i32) {
    %c0_i32 = arith.constant 0 : i32
    %c0_i32_0 = arith.constant 0 : i32
    %c0_i32_1 = arith.constant 0 : i32
    return %c0_i32, %c0_i32_0 : i32, i32
  }
  func.func @transform_5(%arg0: i32) -> (i32, i32) {
    %c0_i32 = arith.constant 0 : i32
    %c0_i32_0 = arith.constant 0 : i32
    %c0_i32_1 = arith.constant 0 : i32
    return %c0_i32, %c0_i32_0 : i32, i32
  }
  func.func @transform_6(%arg0: i32) -> (i32, i32) {
    %c0_i32 = arith.constant 0 : i32
    %c0_i32_0 = arith.constant 0 : i32
    %c0_i32_1 = arith.constant 0 : i32
    return %c0_i32, %c0_i32_0 : i32, i32
  }
  func.func @transform_7(%arg0: i32) -> (i32, i32) {
    %c0_i32 = arith.constant 0 : i32
    %c0_i32_0 = arith.constant 0 : i32
    %c0_i32_1 = arith.constant 0 : i32
    return %c0_i32, %c0_i32_0 : i32, i32
  }
  func.func @transform_8(%arg0: i32) -> (i32, i32) {
    %c0_i32 = arith.constant 0 : i32
    %c0_i32_0 = arith.constant 0 : i32
    %c0_i32_1 = arith.constant 0 : i32
    return %c0_i32, %c0_i32_0 : i32, i32
  }
  func.func @transform_9(%arg0: i32) -> (i32, i32) {
    %c0_i32 = arith.constant 0 : i32
    %c0_i32_0 = arith.constant 0 : i32
    %c0_i32_1 = arith.constant 0 : i32
    return %c0_i32, %c0_i32_0 : i32, i32
  }
  func.func @transform_10(%arg0: i32) -> (i32, i32) {
    %c0_i32 = arith.constant 0 : i32
    %c0_i32_0 = arith.constant 0 : i32
    %c0_i32_1 = arith.constant 0 : i32
    return %c0_i32, %c0_i32_0 : i32, i32
  }
  func.func @transform_11(%arg0: i32) -> (i32, i32, i32) {
    %c0_i32 = arith.constant 0 : i32
    %c0_i32_0 = arith.constant 0 : i32
    %c0_i32_1 = arith.constant 0 : i32
    return %arg0, %c0_i32, %c0_i32_0 : i32, i32, i32
  }
}

</mosaic_0001>

<llo_original>
// kernel: my_wrapper_forward.1
$region0: #{my_wrapper_forward.1}
  #allocation0 [shape = 'u32[]', space=smem, size = 0x4, offset = 0x4, fixed_abs, tag = 'smem constant byte address 0x4 - core index']
  #allocation1 [shape = 'u32[72,128]{1,0:T(1,128)}', space=vmem, size = 0x9000, scoped, tag = 'internal scratch']
  %s0 = inlined_call_operand.vmem [shape: f32[2,120,256], index: 0, kind: input, shape index: {}]
  %s1 = inlined_call_operand.vmem [shape: bf16[256,256], index: 1, kind: input, shape index: {}]
  %s2 = inlined_call_operand.vmem [shape: bf16[128,32], index: 2, kind: input, shape index: {}]
  %s3 = inlined_call_operand.vmem [shape: bf16[96,128], index: 3, kind: input, shape index: {}]
  %s4 = inlined_call_operand.vmem [shape: f32[1,128], index: 4, kind: input, shape index: {}]
  %s5 = inlined_call_operand.vmem [shape: bf16[60,119], index: 5, kind: input, shape index: {}]
  %s6 = inlined_call_operand.vmem [shape: bf16[360,128], index: 6, kind: input, shape index: {}]
  %s7 = inlined_call_operand.vmem [shape: f32[1,128], index: 7, kind: input, shape index: {}]
  %s8 = inlined_call_operand.vmem [shape: bf16[4,59], index: 8, kind: input, shape index: {}]
  %s9 = inlined_call_operand.vmem [shape: bf16[112,128], index: 9, kind: input, shape index: {}]
  %s10 = inlined_call_operand.vmem [shape: f32[1,128], index: 10, kind: input, shape index: {}]
  %s11 = inlined_call_operand.hbm [shape: f32[2,4,128], index: 11, kind: output, shape index: {}]
  %s12 = sld [smem:[#allocation0]]
  $region77: #{my_wrapper_forward.1} parent=0
    _
  %s14 = ssub.s32 1, %s12
  %s15 = scalar_select 0, %s14, %s12
  $region1: #{my_wrapper_forward.1} parent=0
    #allocation2 [shape = 'u8[4096]{0}', space=vmem, size = 0x1000, scoped, tag = 'output window, operand 0']
    #allocation3 [shape = 's32[2]{0}', space=sflag, size = 0x8, scoped, tag = 'scoped memory for my_wrapper_forward.1']
    %16 = vsyncpa [#allocation3], 0
    %s17 = scalar_lea.sflag [#allocation3], 1
    %18 = vsyncpa %s17, 0
    loop: start=0, step=1, limit=4
    $region2: #{my_wrapper_forward.1} parent=1 // loop_pre_header
      _
    $region3: #{my_wrapper_forward.1} parent=1 // loop_header
      %s20 = sphi 0, %s24
      %p21 = scmp.ge.s32.totalorder %s20, 4
      %s30 = sphi 0, %s32
      %s33 = sphi 0, %s30
      %s34 = sphi 0, %s33
      %s50 = sphi 0, %s34
      %s54 = sphi 0, %s54
      %s56 = sphi 0, %s54
      %s57 = sphi 0, %s56
      %s71 = sphi 0, %s57
      %s75 = sphi 0, %s75
      %s77 = sphi 0, %s75
      %s78 = sphi 0, %s77
      %s92 = sphi 0, %s78
      %s96 = sphi 0, %s96
      %s98 = sphi 0, %s96
      %s99 = sphi 0, %s98
      %s113 = sphi 0, %s99
      %s117 = sphi 0, %s117
      %s119 = sphi 0, %s117
      %s120 = sphi 0, %s119
      %s134 = sphi 0, %s120
      %s138 = sphi 0, %s138
      %s140 = sphi 0, %s138
      %s141 = sphi 0, %s140
      %s155 = sphi 0, %s141
      %s159 = sphi 0, %s159
      %s161 = sphi 0, %s159
      %s162 = sphi 0, %s161
      %s176 = sphi 0, %s162
      %s180 = sphi 0, %s180
      %s182 = sphi 0, %s180
      %s183 = sphi 0, %s182
      %s197 = sphi 0, %s183
      %s201 = sphi 0, %s201
      %s203 = sphi 0, %s201
      %s204 = sphi 0, %s203
      %s218 = sphi 0, %s204
      %s222 = sphi 0, %s222
      %s224 = sphi 0, %s222
      %s225 = sphi 0, %s224
      %s239 = sphi 0, %s225
      %s243 = sphi 0, %s243
      %s245 = sphi 0, %s243
      %s246 = sphi 0, %s245
      %s260 = sphi 0, %s246
      %s266 = sphi 0, %s268
      %s269 = sphi 0, %s266
      %s270 = sphi 0, %s269
      %s286 = sphi 0, %s270
    $region4: #{my_wrapper_forward.1} parent=1 // loop_header_branch
      %23 = sbr.rel (%p21) target = $region8
    $region5: #{my_wrapper_forward.1} parent=1 // loop_body
      %s25 = ssub.s32 %s20, 1
      %s26 = ssub.s32 %s20, 2
      %s27 = sadd.s32 %s20, 1
      %s28 = ssub.s32 %s20, %s27
      %p29 = scmp.eq.s32.totalorder %s28, 0
      %s31 = sadd.s32 %s30, 1
      %s32 = scalar_select %p29, %s30, %s31
      %p35 = pneg %p29
      %p36 = scmp.eq.s32.totalorder %s20, 1
      %p37 = por %p35, %p36
      %p38 = scmp.ne.s32.totalorder %s30, %s33
      %p39 = scmp.eq.s32.totalorder %s20, 0
      %p40 = por %p38, %p39
      %p41 = scmp.ne.s32.totalorder %s30, %s33
      %p42 = scmp.eq.s32.totalorder %s25, 1
      %p43 = por %p41, %p42
      %p44 = scmp.ne.s32.totalorder %s33, %s34
      %p45 = scmp.eq.s32.totalorder %s25, 0
      %p46 = por %p44, %p45
      %p47 = scmp.ne.s32.totalorder %s33, %s34
      %p48 = scmp.eq.s32.totalorder %s26, 1
      %p49 = por %p47, %p48
      %p51 = scmp.ne.s32.totalorder %s34, %s50
      %p52 = scmp.eq.s32.totalorder %s26, 0
      %p53 = por %p51, %p52
      %s55 = sadd.s32 %s54, 1
      %p58 = scmp.eq.s32.totalorder %s20, 1
      %p59 = scmp.ne.s32.totalorder %s54, %s56
      %p60 = scmp.eq.s32.totalorder %s20, 0
      %p61 = por %p59, %p60
      %p62 = scmp.ne.s32.totalorder %s54, %s56
      %p63 = scmp.eq.s32.totalorder %s25, 1
      %p64 = por %p62, %p63
      %p65 = scmp.ne.s32.totalorder %s56, %s57
      %p66 = scmp.eq.s32.totalorder %s25, 0
      %p67 = por %p65, %p66
      %p68 = scmp.ne.s32.totalorder %s56, %s57
      %p69 = scmp.eq.s32.totalorder %s26, 1
      %p70 = por %p68, %p69
      %p72 = scmp.ne.s32.totalorder %s57, %s71
      %p73 = scmp.eq.s32.totalorder %s26, 0
      %p74 = por %p72, %p73
      %s76 = sadd.s32 %s75, 1
      %p79 = scmp.eq.s32.totalorder %s20, 1
      %p80 = scmp.ne.s32.totalorder %s75, %s77
      %p81 = scmp.eq.s32.totalorder %s20, 0
      %p82 = por %p80, %p81
      %p83 = scmp.ne.s32.totalorder %s75, %s77
      %p84 = scmp.eq.s32.totalorder %s25, 1
      %p85 = por %p83, %p84
      %p86 = scmp.ne.s32.totalorder %s77, %s78
      %p87 = scmp.eq.s32.totalorder %s25, 0
      %p88 = por %p86, %p87
      %p89 = scmp.ne.s32.totalorder %s77, %s78
      %p90 = scmp.eq.s32.totalorder %s26, 1
      %p91 = por %p89, %p90
      %p93 = scmp.ne.s32.totalorder %s78, %s92
      %p94 = scmp.eq.s32.totalorder %s26, 0
      %p95 = por %p93, %p94
      %s97 = sadd.s32 %s96, 1
      %p100 = scmp.eq.s32.totalorder %s20, 1
      %p101 = scmp.ne.s32.totalorder %s96, %s98
      %p102 = scmp.eq.s32.totalorder %s20, 0
      %p103 = por %p101, %p102
      %p104 = scmp.ne.s32.totalorder %s96, %s98
      %p105 = scmp.eq.s32.totalorder %s25, 1
      %p106 = por %p104, %p105
      %p107 = scmp.ne.s32.totalorder %s98, %s99
      %p108 = scmp.eq.s32.totalorder %s25, 0
      %p109 = por %p107, %p108
      %p110 = scmp.ne.s32.totalorder %s98, %s99
      %p111 = scmp.eq.s32.totalorder %s26, 1
      %p112 = por %p110, %p111
      %p114 = scmp.ne.s32.totalorder %s99, %s113
      %p115 = scmp.eq.s32.totalorder %s26, 0
      %p116 = por %p114, %p115
      %s118 = sadd.s32 %s117, 1
      %p121 = scmp.eq.s32.totalorder %s20, 1
      %p122 = scmp.ne.s32.totalorder %s117, %s119
      %p123 = scmp.eq.s32.totalorder %s20, 0
      %p124 = por %p122, %p123
      %p125 = scmp.ne.s32.totalorder %s117, %s119
      %p126 = scmp.eq.s32.totalorder %s25, 1
      %p127 = por %p125, %p126
      %p128 = scmp.ne.s32.totalorder %s119, %s120
      %p129 = scmp.eq.s32.totalorder %s25, 0
      %p130 = por %p128, %p129
      %p131 = scmp.ne.s32.totalorder %s119, %s120
      %p132 = scmp.eq.s32.totalorder %s26, 1
      %p133 = por %p131, %p132
      %p135 = scmp.ne.s32.totalorder %s120, %s134
      %p136 = scmp.eq.s32.totalorder %s26, 0
      %p137 = por %p135, %p136
      %s139 = sadd.s32 %s138, 1
      %p142 = scmp.eq.s32.totalorder %s20, 1
      %p143 = scmp.ne.s32.totalorder %s138, %s140
      %p144 = scmp.eq.s32.totalorder %s20, 0
      %p145 = por %p143, %p144
      %p146 = scmp.ne.s32.totalorder %s138, %s140
      %p147 = scmp.eq.s32.totalorder %s25, 1
      %p148 = por %p146, %p147
      %p149 = scmp.ne.s32.totalorder %s140, %s141
      %p150 = scmp.eq.s32.totalorder %s25, 0
      %p151 = por %p149, %p150
      %p152 = scmp.ne.s32.totalorder %s140, %s141
      %p153 = scmp.eq.s32.totalorder %s26, 1
      %p154 = por %p152, %p153
      %p156 = scmp.ne.s32.totalorder %s141, %s155
      %p157 = scmp.eq.s32.totalorder %s26, 0
      %p158 = por %p156, %p157
      %s160 = sadd.s32 %s159, 1
      %p163 = scmp.eq.s32.totalorder %s20, 1
      %p164 = scmp.ne.s32.totalorder %s159, %s161
      %p165 = scmp.eq.s32.totalorder %s20, 0
      %p166 = por %p164, %p165
      %p167 = scmp.ne.s32.totalorder %s159, %s161
      %p168 = scmp.eq.s32.totalorder %s25, 1
      %p169 = por %p167, %p168
      %p170 = scmp.ne.s32.totalorder %s161, %s162
      %p171 = scmp.eq.s32.totalorder %s25, 0
      %p172 = por %p170, %p171
      %p173 = scmp.ne.s32.totalorder %s161, %s162
      %p174 = scmp.eq.s32.totalorder %s26, 1
      %p175 = por %p173, %p174
      %p177 = scmp.ne.s32.totalorder %s162, %s176
      %p178 = scmp.eq.s32.totalorder %s26, 0
      %p179 = por %p177, %p178
      %s181 = sadd.s32 %s180, 1
      %p184 = scmp.eq.s32.totalorder %s20, 1
      %p185 = scmp.ne.s32.totalorder %s180, %s182
      %p186 = scmp.eq.s32.totalorder %s20, 0
      %p187 = por %p185, %p186
      %p188 = scmp.ne.s32.totalorder %s180, %s182
      %p189 = scmp.eq.s32.totalorder %s25, 1
      %p190 = por %p188, %p189
      %p191 = scmp.ne.s32.totalorder %s182, %s183
      %p192 = scmp.eq.s32.totalorder %s25, 0
      %p193 = por %p191, %p192
      %p194 = scmp.ne.s32.totalorder %s182, %s183
      %p195 = scmp.eq.s32.totalorder %s26, 1
      %p196 = por %p194, %p195
      %p198 = scmp.ne.s32.totalorder %s183, %s197
      %p199 = scmp.eq.s32.totalorder %s26, 0
      %p200 = por %p198, %p199
      %s202 = sadd.s32 %s201, 1
      %p205 = scmp.eq.s32.totalorder %s20, 1
      %p206 = scmp.ne.s32.totalorder %s201, %s203
      %p207 = scmp.eq.s32.totalorder %s20, 0
      %p208 = por %p206, %p207
      %p209 = scmp.ne.s32.totalorder %s201, %s203
      %p210 = scmp.eq.s32.totalorder %s25, 1
      %p211 = por %p209, %p210
      %p212 = scmp.ne.s32.totalorder %s203, %s204
      %p213 = scmp.eq.s32.totalorder %s25, 0
      %p214 = por %p212, %p213
      %p215 = scmp.ne.s32.totalorder %s203, %s204
      %p216 = scmp.eq.s32.totalorder %s26, 1
      %p217 = por %p215, %p216
      %p219 = scmp.ne.s32.totalorder %s204, %s218
      %p220 = scmp.eq.s32.totalorder %s26, 0
      %p221 = por %p219, %p220
      %s223 = sadd.s32 %s222, 1
      %p226 = scmp.eq.s32.totalorder %s20, 1
      %p227 = scmp.ne.s32.totalorder %s222, %s224
      %p228 = scmp.eq.s32.totalorder %s20, 0
      %p229 = por %p227, %p228
      %p230 = scmp.ne.s32.totalorder %s222, %s224
      %p231 = scmp.eq.s32.totalorder %s25, 1
      %p232 = por %p230, %p231
      %p233 = scmp.ne.s32.totalorder %s224, %s225
      %p234 = scmp.eq.s32.totalorder %s25, 0
      %p235 = por %p233, %p234
      %p236 = scmp.ne.s32.totalorder %s224, %s225
      %p237 = scmp.eq.s32.totalorder %s26, 1
      %p238 = por %p236, %p237
      %p240 = scmp.ne.s32.totalorder %s225, %s239
      %p241 = scmp.eq.s32.totalorder %s26, 0
      %p242 = por %p240, %p241
      %s244 = sadd.s32 %s243, 1
      %p247 = scmp.eq.s32.totalorder %s20, 1
      %p248 = scmp.ne.s32.totalorder %s243, %s245
      %p249 = scmp.eq.s32.totalorder %s20, 0
      %p250 = por %p248, %p249
      %p251 = scmp.ne.s32.totalorder %s243, %s245
      %p252 = scmp.eq.s32.totalorder %s25, 1
      %p253 = por %p251, %p252
      %p254 = scmp.ne.s32.totalorder %s245, %s246
      %p255 = scmp.eq.s32.totalorder %s25, 0
      %p256 = por %p254, %p255
      %p257 = scmp.ne.s32.totalorder %s245, %s246
      %p258 = scmp.eq.s32.totalorder %s26, 1
      %p259 = por %p257, %p258
      %p261 = scmp.ne.s32.totalorder %s246, %s260
      %p262 = scmp.eq.s32.totalorder %s26, 0
      %p263 = por %p261, %p262
      %s264 = ssub.s32 %s20, %s27
      %p265 = scmp.eq.s32.totalorder %s264, 0
      %s267 = sadd.s32 %s266, 1
      %s268 = scalar_select %p265, %s266, %s267
      %p271 = pneg %p265
      %p272 = scmp.eq.s32.totalorder %s20, 1
      %p273 = por %p271, %p272
      %p274 = scmp.ne.s32.totalorder %s266, %s269
      %p275 = scmp.eq.s32.totalorder %s20, 0
      %p276 = por %p274, %p275
      %p277 = scmp.ne.s32.totalorder %s266, %s269
      %p278 = scmp.eq.s32.totalorder %s25, 1
      %p279 = por %p277, %p278
      %p280 = scmp.ne.s32.totalorder %s269, %s270
      %p281 = scmp.eq.s32.totalorder %s25, 0
      %p282 = por %p280, %p281
      %p283 = scmp.ne.s32.totalorder %s269, %s270
      %p284 = scmp.eq.s32.totalorder %s26, 1
      %p285 = por %p283, %p284
      %p287 = scmp.ne.s32.totalorder %s270, %s286
      %p288 = scmp.eq.s32.totalorder %s26, 0
      %p289 = por %p287, %p288
      %p290 = scmp.le.s32.totalorder 1, %s20
      %p291 = scmp.lt.s32.totalorder %s20, 3
      %p292 = pnand %p290, %p291
      %p293 = pneg %p292
      // Predicated region
      $region9: #{my_wrapper_forward.1} parent=5 // pred_check
        _
      $region10: #{my_wrapper_forward.1} parent=5 // pred_check_branch
        %295 = sbr.rel (%p292) target = $region12
      $region11: #{my_wrapper_forward.1} parent=5 // pred_region
        %s296 = ssub.s32 %s20, 1
        // Predicated region
        $region13: #{my_wrapper_forward.1} parent=11 // pred_check
          %p297 = pneg %p67
        $region14: #{my_wrapper_forward.1} parent=11 // pred_check_branch
          %299 = sbr.rel (%p297) target = $region16
        $region15: #{my_wrapper_forward.1} parent=11 // pred_region
          _
        $region16: #{my_wrapper_forward.1} parent=11 // pred_fallthru
          _
        // Predicated region
        $region17: #{my_wrapper_forward.1} parent=11 // pred_check
          %p300 = pneg %p88
        $region18: #{my_wrapper_forward.1} parent=11 // pred_check_branch
          %302 = sbr.rel (%p300) target = $region20
        $region19: #{my_wrapper_forward.1} parent=11 // pred_region
          _
        $region20: #{my_wrapper_forward.1} parent=11 // pred_fallthru
          _
        // Predicated region
        $region21: #{my_wrapper_forward.1} parent=11 // pred_check
          %p303 = pneg %p109
        $region22: #{my_wrapper_forward.1} parent=11 // pred_check_branch
          %305 = sbr.rel (%p303) target = $region24
        $region23: #{my_wrapper_forward.1} parent=11 // pred_region
          _
        $region24: #{my_wrapper_forward.1} parent=11 // pred_fallthru
          _
        // Predicated region
        $region25: #{my_wrapper_forward.1} parent=11 // pred_check
          %p306 = pneg %p130
        $region26: #{my_wrapper_forward.1} parent=11 // pred_check_branch
          %308 = sbr.rel (%p306) target = $region28
        $region27: #{my_wrapper_forward.1} parent=11 // pred_region
          _
        $region28: #{my_wrapper_forward.1} parent=11 // pred_fallthru
          _
        // Predicated region
        $region29: #{my_wrapper_forward.1} parent=11 // pred_check
          %p309 = pneg %p151
        $region30: #{my_wrapper_forward.1} parent=11 // pred_check_branch
          %311 = sbr.rel (%p309) target = $region32
        $region31: #{my_wrapper_forward.1} parent=11 // pred_region
          _
        $region32: #{my_wrapper_forward.1} parent=11 // pred_fallthru
          _
        // Predicated region
        $region33: #{my_wrapper_forward.1} parent=11 // pred_check
          %p312 = pneg %p172
        $region34: #{my_wrapper_forward.1} parent=11 // pred_check_branch
          %314 = sbr.rel (%p312) target = $region36
        $region35: #{my_wrapper_forward.1} parent=11 // pred_region
          _
        $region36: #{my_wrapper_forward.1} parent=11 // pred_fallthru
          _
        // Predicated region
        $region37: #{my_wrapper_forward.1} parent=11 // pred_check
          %p315 = pneg %p193
        $region38: #{my_wrapper_forward.1} parent=11 // pred_check_branch
          %317 = sbr.rel (%p315) target = $region40
        $region39: #{my_wrapper_forward.1} parent=11 // pred_region
          _
        $region40: #{my_wrapper_forward.1} parent=11 // pred_fallthru
          _
        // Predicated region
        $region41: #{my_wrapper_forward.1} parent=11 // pred_check
          %p318 = pneg %p214
        $region42: #{my_wrapper_forward.1} parent=11 // pred_check_branch
          %320 = sbr.rel (%p318) target = $region44
        $region43: #{my_wrapper_forward.1} parent=11 // pred_region
          _
        $region44: #{my_wrapper_forward.1} parent=11 // pred_fallthru
          _
        // Predicated region
        $region45: #{my_wrapper_forward.1} parent=11 // pred_check
          %p321 = pneg %p235
        $region46: #{my_wrapper_forward.1} parent=11 // pred_check_branch
          %323 = sbr.rel (%p321) target = $region48
        $region47: #{my_wrapper_forward.1} parent=11 // pred_region
          _
        $region48: #{my_wrapper_forward.1} parent=11 // pred_fallthru
          _
        // Predicated region
        $region49: #{my_wrapper_forward.1} parent=11 // pred_check
          %p324 = pneg %p256
        $region50: #{my_wrapper_forward.1} parent=11 // pred_check_branch
          %326 = sbr.rel (%p324) target = $region52
        $region51: #{my_wrapper_forward.1} parent=11 // pred_region
          _
        $region52: #{my_wrapper_forward.1} parent=11 // pred_fallthru
          _
      $region12: #{my_wrapper_forward.1} parent=5 // pred_fallthru
        _
      %p327 = scmp.lt.s32.totalorder %s20, 2
      // Predicated region
      $region53: #{my_wrapper_forward.1} parent=5 // pred_check
        %p328 = pneg %p327
      $region54: #{my_wrapper_forward.1} parent=5 // pred_check_branch
        %330 = sbr.rel (%p328) target = $region56
      $region55: #{my_wrapper_forward.1} parent=5 // pred_region
        // Predicated region
        $region57: #{my_wrapper_forward.1} parent=55 // pred_check
          %p331 = pneg %p40
        $region58: #{my_wrapper_forward.1} parent=55 // pred_check_branch
          %333 = sbr.rel (%p331) target = $region60
        $region59: #{my_wrapper_forward.1} parent=55 // pred_region
          %p334 = scmp.lt.s32.totalorder %s20, 1
          %s335 = scalar_select %p334, %s20, 1
          %s336 = smul.addr %s335, 30
          %s337 = smul.addr %s336, 8
          %s338 = scalar_lea.vmem %s0, %s337
        $region60: #{my_wrapper_forward.1} parent=55 // pred_fallthru
          _
      $region56: #{my_wrapper_forward.1} parent=5 // pred_fallthru
        _
      %p339 = scmp.le.s32.totalorder 1, %s20
      %p340 = scmp.lt.s32.totalorder %s20, 3
      %p341 = pnand %p339, %p340
      %p342 = pneg %p341
      // Predicated region
      $region61: #{my_wrapper_forward.1} parent=5 // pred_check
        _
      $region62: #{my_wrapper_forward.1} parent=5 // pred_check_branch
        %344 = sbr.rel (%p341) target = $region64
      $region63: #{my_wrapper_forward.1} parent=5 // pred_region
        %s345 = ssub.s32 %s20, 1
        %p346 = scmp.lt.s32.totalorder %s25, 1
        %s347 = scalar_select %p346, %s25, 1
        %s348 = smul.addr %s347, 30
        %s349 = smul.addr %s348, 8
        %s350 = scalar_lea.vmem %s0, %s349
        %p351 = pneg %p46
        %p352 = pneg %p43
        %p353 = pneg %p67
        %p354 = pneg %p64
        %p355 = pneg %p88
        %p356 = pneg %p85
        %p357 = pneg %p109
        %p358 = pneg %p106
        %p359 = pneg %p130
        %p360 = pneg %p127
        %p361 = pneg %p151
        %p362 = pneg %p148
        %p363 = pneg %p172
        %p364 = pneg %p169
        %p365 = pneg %p193
        %p366 = pneg %p190
        %p367 = pneg %p214
        %p368 = pneg %p211
        %p369 = pneg %p235
        %p370 = pneg %p232
        %p371 = pneg %p256
        %p372 = pneg %p253
        %p373 = pneg %p282
        %p374 = pneg %p279
        %s375 = sand.u32 %s269, 1
        %s376 = scalar_lea.sflag [#allocation3], %s375
        %s377 = sand.u32 %s269, 1
        %s378 = smul.addr %s377, 4
        %s379 = scalar_lea.vmem [#allocation2], %s378
        %p380 = scmp.lt.s32.totalorder %s25, 1
        %s381 = scalar_select %p380, %s25, 1
        %s382 = smul.addr %s381, 30
        %s383 = smul.addr %s382, 8
        %s384 = scalar_lea.vmem %s0, %s383
        %v388 = vld [vmem:[%s384] sm:$0xff]
        %v389 = vld [vmem:[%s384 + $0x8] sm:$0xff]
        %v390 = vld [vmem:[%s384 + $0x10] sm:$0xff]
        %v391 = vld [vmem:[%s384 + $0x18] sm:$0xff]
        %v392 = vld [vmem:[%s384 + $0x20] sm:$0xff]
        %v393 = vld [vmem:[%s384 + $0x28] sm:$0xff]
        %v394 = vld [vmem:[%s384 + $0x30] sm:$0xff]
        %v395 = vld [vmem:[%s384 + $0x38] sm:$0xff]
        %v396 = vld [vmem:[%s384 + $0x40] sm:$0xff]
        %v397 = vld [vmem:[%s384 + $0x48] sm:$0xff]
        %v398 = vld [vmem:[%s384 + $0x50] sm:$0xff]
        %v399 = vld [vmem:[%s384 + $0x58] sm:$0xff]
        %v400 = vld [vmem:[%s384 + $0x60] sm:$0xff]
        %v401 = vld [vmem:[%s384 + $0x68] sm:$0xff]
        %v402 = vld [vmem:[%s384 + $0x70] sm:$0xff]
        %v403 = vld [vmem:[%s384 + $0x78] sm:$0xff]
        %v404 = vld [vmem:[%s384 + $0x80] sm:$0xff]
        %v405 = vld [vmem:[%s384 + $0x88] sm:$0xff]
        %v406 = vld [vmem:[%s384 + $0x90] sm:$0xff]
        %v407 = vld [vmem:[%s384 + $0x98] sm:$0xff]
        %v408 = vld [vmem:[%s384 + $0xa0] sm:$0xff]
        %v409 = vld [vmem:[%s384 + $0xa8] sm:$0xff]
        %v410 = vld [vmem:[%s384 + $0xb0] sm:$0xff]
        %v411 = vld [vmem:[%s384 + $0xb8] sm:$0xff]
        %v412 = vld [vmem:[%s384 + $0xc0] sm:$0xff]
        %v413 = vld [vmem:[%s384 + $0xc8] sm:$0xff]
        %v414 = vld [vmem:[%s384 + $0xd0] sm:$0xff]
        %v415 = vld [vmem:[%s384 + $0xd8] sm:$0xff]
        %v416 = vld [vmem:[%s384 + $0xe0] sm:$0xff]
        %v417 = vld [vmem:[%s384 + $0xe8] sm:$0xff]
        %v418 = vpack.c.bf16 %v390, %v388
        %v419 = vpack.c.bf16 %v391, %v389
        %v420 = vpack.c.bf16 %v394, %v392
        %v421 = vpack.c.bf16 %v395, %v393
        %v422 = vpack.c.bf16 %v398, %v396
        %v423 = vpack.c.bf16 %v399, %v397
        %v424 = vpack.c.bf16 %v402, %v400
        %v425 = vpack.c.bf16 %v403, %v401
        %v426 = vpack.c.bf16 %v406, %v404
        %v427 = vpack.c.bf16 %v407, %v405
        %v428 = vpack.c.bf16 %v410, %v408
        %v429 = vpack.c.bf16 %v411, %v409
        %v430 = vpack.c.bf16 %v414, %v412
        %v431 = vpack.c.bf16 %v415, %v413
        %v432 = vpack.c.bf16 %v416, %v416
        %v433 = vpack.c.bf16 %v417, %v417
        %v434 = vld [vmem:[%s1] sm:$0xff]
        %v435 = vld [vmem:[%s1 + $0x8] sm:$0xff]
        %v436 = vld [vmem:[%s1 + $0x10] sm:$0xff]
        %v437 = vld [vmem:[%s1 + $0x18] sm:$0xff]
        %v438 = vld [vmem:[%s1 + $0x20] sm:$0xff]
        %v439 = vld [vmem:[%s1 + $0x28] sm:$0xff]
        %v440 = vld [vmem:[%s1 + $0x30] sm:$0xff]
        %v441 = vld [vmem:[%s1 + $0x38] sm:$0xff]
        %v442 = vld [vmem:[%s1 + $0x40] sm:$0xff]
        %v443 = vld [vmem:[%s1 + $0x48] sm:$0xff]
        %v444 = vld [vmem:[%s1 + $0x50] sm:$0xff]
        %v445 = vld [vmem:[%s1 + $0x58] sm:$0xff]
        %v446 = vld [vmem:[%s1 + $0x60] sm:$0xff]
        %v447 = vld [vmem:[%s1 + $0x68] sm:$0xff]
        %v448 = vld [vmem:[%s1 + $0x70] sm:$0xff]
        %v449 = vld [vmem:[%s1 + $0x78] sm:$0xff]
        %v450 = vld [vmem:[%s1 + $0x80] sm:$0xff]
        %v451 = vld [vmem:[%s1 + $0x88] sm:$0xff]
        %v452 = vld [vmem:[%s1 + $0x90] sm:$0xff]
        %v453 = vld [vmem:[%s1 + $0x98] sm:$0xff]
        %v454 = vld [vmem:[%s1 + $0xa0] sm:$0xff]
        %v455 = vld [vmem:[%s1 + $0xa8] sm:$0xff]
        %v456 = vld [vmem:[%s1 + $0xb0] sm:$0xff]
        %v457 = vld [vmem:[%s1 + $0xb8] sm:$0xff]
        %v458 = vld [vmem:[%s1 + $0xc0] sm:$0xff]
        %v459 = vld [vmem:[%s1 + $0xc8] sm:$0xff]
        %v460 = vld [vmem:[%s1 + $0xd0] sm:$0xff]
        %v461 = vld [vmem:[%s1 + $0xd8] sm:$0xff]
        %v462 = vld [vmem:[%s1 + $0xe0] sm:$0xff]
        %v463 = vld [vmem:[%s1 + $0xe8] sm:$0xff]
        %v464 = vld [vmem:[%s1 + $0xf0] sm:$0xff]
        %v465 = vld [vmem:[%s1 + $0xf8] sm:$0xff]
        %v498 = vunpack.c.l.b16 %v434
        %v499 = vunpack.c.h.b16 %v434
        %v500 = vunpack.c.l.b16 %v435
        %v501 = vunpack.c.h.b16 %v435
        %v502 = vunpack.c.l.b16 %v436
        %v503 = vunpack.c.h.b16 %v436
        %v504 = vunpack.c.l.b16 %v437
        %v505 = vunpack.c.h.b16 %v437
        %v506 = vunpack.c.l.b16 %v438
        %v507 = vunpack.c.h.b16 %v438
        %v508 = vunpack.c.l.b16 %v439
        %v509 = vunpack.c.h.b16 %v439
        %v510 = vunpack.c.l.b16 %v440
        %v511 = vunpack.c.h.b16 %v440
        %v512 = vunpack.c.l.b16 %v441
        %v513 = vunpack.c.h.b16 %v441
        %v514 = vunpack.c.l.b16 %v442
        %v515 = vunpack.c.h.b16 %v442
        %v516 = vunpack.c.l.b16 %v443
        %v517 = vunpack.c.h.b16 %v443
        %v518 = vunpack.c.l.b16 %v444
        %v519 = vunpack.c.h.b16 %v444
        %v520 = vunpack.c.l.b16 %v445
        %v521 = vunpack.c.h.b16 %v445
        %v522 = vunpack.c.l.b16 %v446
        %v523 = vunpack.c.h.b16 %v446
        %v524 = vunpack.c.l.b16 %v447
        %v525 = vunpack.c.h.b16 %v447
        %v526 = vunpack.c.l.b16 %v448
        %v527 = vunpack.c.h.b16 %v448
        %v528 = vunpack.c.l.b16 %v449
        %v529 = vunpack.c.h.b16 %v449
        %v530 = vunpack.c.l.b16 %v450
        %v531 = vunpack.c.h.b16 %v450
        %v532 = vunpack.c.l.b16 %v451
        %v533 = vunpack.c.h.b16 %v451
        %v534 = vunpack.c.l.b16 %v452
        %v535 = vunpack.c.h.b16 %v452
        %v536 = vunpack.c.l.b16 %v453
        %v537 = vunpack.c.h.b16 %v453
        %v538 = vunpack.c.l.b16 %v454
        %v539 = vunpack.c.h.b16 %v454
        %v540 = vunpack.c.l.b16 %v455
        %v541 = vunpack.c.h.b16 %v455
        %v542 = vunpack.c.l.b16 %v456
        %v543 = vunpack.c.h.b16 %v456
        %v544 = vunpack.c.l.b16 %v457
        %v545 = vunpack.c.h.b16 %v457
        %v546 = vunpack.c.l.b16 %v458
        %v547 = vunpack.c.h.b16 %v458
        %v548 = vunpack.c.l.b16 %v459
        %v549 = vunpack.c.h.b16 %v459
        %v550 = vunpack.c.l.b16 %v460
        %v551 = vunpack.c.h.b16 %v460
        %v552 = vunpack.c.l.b16 %v461
        %v553 = vunpack.c.h.b16 %v461
        %v554 = vunpack.c.l.b16 %v462
        %v555 = vunpack.c.h.b16 %v462
        %v556 = vunpack.c.l.b16 %v463
        %v557 = vunpack.c.h.b16 %v463
        %v558 = vunpack.c.l.b16 %v464
        %v559 = vunpack.c.h.b16 %v464
        %v560 = vunpack.c.l.b16 %v465
        %v561 = vunpack.c.h.b16 %v465
        %v562 = vpack.c.b16 %v500, %v498
        %v563 = vpack.c.b16 %v501, %v499
        %v564 = vpack.c.b16 %v504, %v502
        %v565 = vpack.c.b16 %v505, %v503
        %v566 = vpack.c.b16 %v508, %v506
        %v567 = vpack.c.b16 %v509, %v507
        %v568 = vpack.c.b16 %v512, %v510
        %v569 = vpack.c.b16 %v513, %v511
        %v570 = vpack.c.b16 %v516, %v514
        %v571 = vpack.c.b16 %v517, %v515
        %v572 = vpack.c.b16 %v520, %v518
        %v573 = vpack.c.b16 %v521, %v519
        %v574 = vpack.c.b16 %v524, %v522
        %v575 = vpack.c.b16 %v525, %v523
        %v576 = vpack.c.b16 %v528, %v526
        %v577 = vpack.c.b16 %v529, %v527
        %v578 = vpack.c.b16 %v532, %v530
        %v579 = vpack.c.b16 %v533, %v531
        %v580 = vpack.c.b16 %v536, %v534
        %v581 = vpack.c.b16 %v537, %v535
        %v582 = vpack.c.b16 %v540, %v538
        %v583 = vpack.c.b16 %v541, %v539
        %v584 = vpack.c.b16 %v544, %v542
        %v585 = vpack.c.b16 %v545, %v543
        %v586 = vpack.c.b16 %v548, %v546
        %v587 = vpack.c.b16 %v549, %v547
        %v588 = vpack.c.b16 %v552, %v550
        %v589 = vpack.c.b16 %v553, %v551
        %v590 = vpack.c.b16 %v556, %v554
        %v591 = vpack.c.b16 %v557, %v555
        %v592 = vpack.c.b16 %v560, %v558
        %v593 = vpack.c.b16 %v561, %v559
        %626 = vmatpush.bf16.msra.mxu0 %v576
        %627 = vmatpush.bf16.msra.mxu0 %v574
        %628 = vmatpush.bf16.msra.mxu0 %v572
        %629 = vmatpush.bf16.msra.mxu0 %v570
        %630 = vmatpush.bf16.msra.mxu0 %v568
        %631 = vmatpush.bf16.msra.mxu0 %v566
        %632 = vmatpush.bf16.msra.mxu0 %v564
        %633 = vmatpush.bf16.msra.mxu0 %v562
        %634 = vmatmul.bf16.gmra.mxu0 %v418
        %v635 = vpop.f32.mrf.mxu0
        %v636 = vadd.f32 0.0, %v635
        %v637 = vpop.f32.mrf.mxu0
        %v638 = vadd.f32 0.0, %v637
        %639 = vmatmul.bf16.gmra.mxu0 %v420
        %v640 = vpop.f32.mrf.mxu0
        %v641 = vadd.f32 0.0, %v640
        %v642 = vpop.f32.mrf.mxu0
        %v643 = vadd.f32 0.0, %v642
        %644 = vmatmul.bf16.gmra.mxu0 %v422
        %v645 = vpop.f32.mrf.mxu0
        %v646 = vadd.f32 0.0, %v645
        %v647 = vpop.f32.mrf.mxu0
        %v648 = vadd.f32 0.0, %v647
        %649 = vmatmul.bf16.gmra.mxu0 %v424
        %v650 = vpop.f32.mrf.mxu0
        %v651 = vadd.f32 0.0, %v650
        %v652 = vpop.f32.mrf.mxu0
        %v653 = vadd.f32 0.0, %v652
        %654 = vmatmul.bf16.gmra.mxu0 %v426
        %v655 = vpop.f32.mrf.mxu0
        %v656 = vadd.f32 0.0, %v655
        %v657 = vpop.f32.mrf.mxu0
        %v658 = vadd.f32 0.0, %v657
        %659 = vmatmul.bf16.gmra.mxu0 %v428
        %v660 = vpop.f32.mrf.mxu0
        %v661 = vadd.f32 0.0, %v660
        %v662 = vpop.f32.mrf.mxu0
        %v663 = vadd.f32 0.0, %v662
        %664 = vmatmul.bf16.gmra.mxu0 %v430
        %v665 = vpop.f32.mrf.mxu0
        %v666 = vadd.f32 0.0, %v665
        %v667 = vpop.f32.mrf.mxu0
        %v668 = vadd.f32 0.0, %v667
        %669 = vmatmul.bf16.gmra.mxu0 %v432
        %v670 = vpop.f32.mrf.mxu0
        %v671 = vadd.f32 0.0, %v670
        %v672 = vpop.f32.mrf.mxu0
        %673 = vdwg.mxu0
        %674 = vmatpush.bf16.msra.mxu0 %v592
        %675 = vmatpush.bf16.msra.mxu0 %v590
        %676 = vmatpush.bf16.msra.mxu0 %v588
        %677 = vmatpush.bf16.msra.mxu0 %v586
        %678 = vmatpush.bf16.msra.mxu0 %v584
        %679 = vmatpush.bf16.msra.mxu0 %v582
        %680 = vmatpush.bf16.msra.mxu0 %v580
        %681 = vmatpush.bf16.msra.mxu0 %v578
        %682 = vmatmul.bf16.gmra.mxu0 %v419
        %v683 = vpop.f32.mrf.mxu0
        %v684 = vadd.f32 %v636, %v683
        %v685 = vpop.f32.mrf.mxu0
        %v686 = vadd.f32 %v638, %v685
        %687 = vmatmul.bf16.gmra.mxu0 %v421
        %v688 = vpop.f32.mrf.mxu0
        %v689 = vadd.f32 %v641, %v688
        %v690 = vpop.f32.mrf.mxu0
        %v691 = vadd.f32 %v643, %v690
        %692 = vmatmul.bf16.gmra.mxu0 %v423
        %v693 = vpop.f32.mrf.mxu0
        %v694 = vadd.f32 %v646, %v693
        %v695 = vpop.f32.mrf.mxu0
        %v696 = vadd.f32 %v648, %v695
        %697 = vmatmul.bf16.gmra.mxu0 %v425
        %v698 = vpop.f32.mrf.mxu0
        %v699 = vadd.f32 %v651, %v698
        %v700 = vpop.f32.mrf.mxu0
        %v701 = vadd.f32 %v653, %v700
        %702 = vmatmul.bf16.gmra.mxu0 %v427
        %v703 = vpop.f32.mrf.mxu0
        %v704 = vadd.f32 %v656, %v703
        %v705 = vpop.f32.mrf.mxu0
        %v706 = vadd.f32 %v658, %v705
        %707 = vmatmul.bf16.gmra.mxu0 %v429
        %v708 = vpop.f32.mrf.mxu0
        %v709 = vadd.f32 %v661, %v708
        %v710 = vpop.f32.mrf.mxu0
        %v711 = vadd.f32 %v663, %v710
        %712 = vmatmul.bf16.gmra.mxu0 %v431
        %v713 = vpop.f32.mrf.mxu0
        %v714 = vadd.f32 %v666, %v713
        %v715 = vpop.f32.mrf.mxu0
        %v716 = vadd.f32 %v668, %v715
        %717 = vmatmul.bf16.gmra.mxu0 %v433
        %v718 = vpop.f32.mrf.mxu0
        %v719 = vadd.f32 %v671, %v718
        %v720 = vpop.f32.mrf.mxu0
        %721 = vdwg.mxu0
        %722 = vmatpush.bf16.msra.mxu0 %v577
        %723 = vmatpush.bf16.msra.mxu0 %v575
        %724 = vmatpush.bf16.msra.mxu0 %v573
        %725 = vmatpush.bf16.msra.mxu0 %v571
        %726 = vmatpush.bf16.msra.mxu0 %v569
        %727 = vmatpush.bf16.msra.mxu0 %v567
        %728 = vmatpush.bf16.msra.mxu0 %v565
        %729 = vmatpush.bf16.msra.mxu0 %v563
        %730 = vmatmul.bf16.gmra.mxu0 %v418
        %v731 = vpop.f32.mrf.mxu0
        %v732 = vadd.f32 0.0, %v731
        %v733 = vpop.f32.mrf.mxu0
        %v734 = vadd.f32 0.0, %v733
        %735 = vmatmul.bf16.gmra.mxu0 %v420
        %v736 = vpop.f32.mrf.mxu0
        %v737 = vadd.f32 0.0, %v736
        %v738 = vpop.f32.mrf.mxu0
        %v739 = vadd.f32 0.0, %v738
        %740 = vmatmul.bf16.gmra.mxu0 %v422
        %v741 = vpop.f32.mrf.mxu0
        %v742 = vadd.f32 0.0, %v741
        %v743 = vpop.f32.mrf.mxu0
        %v744 = vadd.f32 0.0, %v743
        %745 = vmatmul.bf16.gmra.mxu0 %v424
        %v746 = vpop.f32.mrf.mxu0
        %v747 = vadd.f32 0.0, %v746
        %v748 = vpop.f32.mrf.mxu0
        %v749 = vadd.f32 0.0, %v748
        %750 = vmatmul.bf16.gmra.mxu0 %v426
        %v751 = vpop.f32.mrf.mxu0
        %v752 = vadd.f32 0.0, %v751
        %v753 = vpop.f32.mrf.mxu0
        %v754 = vadd.f32 0.0, %v753
        %755 = vmatmul.bf16.gmra.mxu0 %v428
        %v756 = vpop.f32.mrf.mxu0
        %v757 = vadd.f32 0.0, %v756
        %v758 = vpop.f32.mrf.mxu0
        %v759 = vadd.f32 0.0, %v758
        %760 = vmatmul.bf16.gmra.mxu0 %v430
        %v761 = vpop.f32.mrf.mxu0
        %v762 = vadd.f32 0.0, %v761
        %v763 = vpop.f32.mrf.mxu0
        %v764 = vadd.f32 0.0, %v763
        %765 = vmatmul.bf16.gmra.mxu0 %v432
        %v766 = vpop.f32.mrf.mxu0
        %v767 = vadd.f32 0.0, %v766
        %v768 = vpop.f32.mrf.mxu0
        %769 = vdwg.mxu0
        %770 = vmatpush.bf16.msra.mxu0 %v593
        %771 = vmatpush.bf16.msra.mxu0 %v591
        %772 = vmatpush.bf16.msra.mxu0 %v589
        %773 = vmatpush.bf16.msra.mxu0 %v587
        %774 = vmatpush.bf16.msra.mxu0 %v585
        %775 = vmatpush.bf16.msra.mxu0 %v583
        %776 = vmatpush.bf16.msra.mxu0 %v581
        %777 = vmatpush.bf16.msra.mxu0 %v579
        %778 = vmatmul.bf16.gmra.mxu0 %v419
        %v779 = vpop.f32.mrf.mxu0
        %v780 = vadd.f32 %v732, %v779
        %v781 = vpop.f32.mrf.mxu0
        %v782 = vadd.f32 %v734, %v781
        %783 = vmatmul.bf16.gmra.mxu0 %v421
        %v784 = vpop.f32.mrf.mxu0
        %v785 = vadd.f32 %v737, %v784
        %v786 = vpop.f32.mrf.mxu0
        %v787 = vadd.f32 %v739, %v786
        %788 = vmatmul.bf16.gmra.mxu0 %v423
        %v789 = vpop.f32.mrf.mxu0
        %v790 = vadd.f32 %v742, %v789
        %v791 = vpop.f32.mrf.mxu0
        %v792 = vadd.f32 %v744, %v791
        %793 = vmatmul.bf16.gmra.mxu0 %v425
        %v794 = vpop.f32.mrf.mxu0
        %v795 = vadd.f32 %v747, %v794
        %v796 = vpop.f32.mrf.mxu0
        %v797 = vadd.f32 %v749, %v796
        %798 = vmatmul.bf16.gmra.mxu0 %v427
        %v799 = vpop.f32.mrf.mxu0
        %v800 = vadd.f32 %v752, %v799
        %v801 = vpop.f32.mrf.mxu0
        %v802 = vadd.f32 %v754, %v801
        %803 = vmatmul.bf16.gmra.mxu0 %v429
        %v804 = vpop.f32.mrf.mxu0
        %v805 = vadd.f32 %v757, %v804
        %v806 = vpop.f32.mrf.mxu0
        %v807 = vadd.f32 %v759, %v806
        %808 = vmatmul.bf16.gmra.mxu0 %v431
        %v809 = vpop.f32.mrf.mxu0
        %v810 = vadd.f32 %v762, %v809
        %v811 = vpop.f32.mrf.mxu0
        %v812 = vadd.f32 %v764, %v811
        %813 = vmatmul.bf16.gmra.mxu0 %v433
        %v814 = vpop.f32.mrf.mxu0
        %v815 = vadd.f32 %v767, %v814
        %v816 = vpop.f32.mrf.mxu0
        %817 = vdwg.mxu0
        %v818 = vmul.f32 %v684, %v684
        %v819 = vmul.f32 %v686, %v686
        %v820 = vmul.f32 %v689, %v689
        %v821 = vmul.f32 %v691, %v691
        %v822 = vmul.f32 %v694, %v694
        %v823 = vmul.f32 %v696, %v696
        %v824 = vmul.f32 %v699, %v699
        %v825 = vmul.f32 %v701, %v701
        %v826 = vmul.f32 %v704, %v704
        %v827 = vmul.f32 %v706, %v706
        %v828 = vmul.f32 %v709, %v709
        %v829 = vmul.f32 %v711, %v711
        %v830 = vmul.f32 %v714, %v714
        %v831 = vmul.f32 %v716, %v716
        %v832 = vmul.f32 %v719, %v719
        %v833 = vmul.f32 %v780, %v780
        %v834 = vmul.f32 %v782, %v782
        %v835 = vmul.f32 %v785, %v785
        %v836 = vmul.f32 %v787, %v787
        %v837 = vmul.f32 %v790, %v790
        %v838 = vmul.f32 %v792, %v792
        %v839 = vmul.f32 %v795, %v795
        %v840 = vmul.f32 %v797, %v797
        %v841 = vmul.f32 %v800, %v800
        %v842 = vmul.f32 %v802, %v802
        %v843 = vmul.f32 %v805, %v805
        %v844 = vmul.f32 %v807, %v807
        %v845 = vmul.f32 %v810, %v810
        %v846 = vmul.f32 %v812, %v812
        %v847 = vmul.f32 %v815, %v815
        %v848 = vadd.f32 %v818, %v833
        %v849 = vadd.f32 %v819, %v834
        %v850 = vadd.f32 %v820, %v835
        %v851 = vadd.f32 %v821, %v836
        %v852 = vadd.f32 %v822, %v837
        %v853 = vadd.f32 %v823, %v838
        %v854 = vadd.f32 %v824, %v839
        %v855 = vadd.f32 %v825, %v840
        %v856 = vadd.f32 %v826, %v841
        %v857 = vadd.f32 %v827, %v842
        %v858 = vadd.f32 %v828, %v843
        %v859 = vadd.f32 %v829, %v844
        %v860 = vadd.f32 %v830, %v845
        %v861 = vadd.f32 %v831, %v846
        %v862 = vadd.f32 %v832, %v847
        %v863 = vpack.c.bf16 %v849, %v848
        %v864 = vpack.c.bf16 %v851, %v850
        %v865 = vpack.c.bf16 %v853, %v852
        %v866 = vpack.c.bf16 %v855, %v854
        %v867 = vpack.c.bf16 %v857, %v856
        %v868 = vpack.c.bf16 %v859, %v858
        %v869 = vpack.c.bf16 %v861, %v860
        %v870 = vpack.c.bf16 %v862, %v862
        %v871 = vld [vmem:[%s2] sm:$0xf]
        %v872 = vld [vmem:[%s2 + $0x4] sm:$0xf]
        %v873 = vld [vmem:[%s2 + $0x8] sm:$0xf]
        %v874 = vld [vmem:[%s2 + $0xc] sm:$0xf]
        %v875 = vld [vmem:[%s2 + $0x10] sm:$0xf]
        %v876 = vld [vmem:[%s2 + $0x14] sm:$0xf]
        %v877 = vld [vmem:[%s2 + $0x18] sm:$0xf]
        %v878 = vld [vmem:[%s2 + $0x1c] sm:$0xf]
        %v879 = vld [vmem:[%s2 + $0x20] sm:$0xf]
        %v880 = vld [vmem:[%s2 + $0x24] sm:$0xf]
        %v881 = vld [vmem:[%s2 + $0x28] sm:$0xf]
        %v882 = vld [vmem:[%s2 + $0x2c] sm:$0xf]
        %v883 = vld [vmem:[%s2 + $0x30] sm:$0xf]
        %v884 = vld [vmem:[%s2 + $0x34] sm:$0xf]
        %v885 = vld [vmem:[%s2 + $0x38] sm:$0xf]
        %v886 = vld [vmem:[%s2 + $0x3c] sm:$0xf]
        %v903 = vunpack.c.l.b16 %v871
        %v904 = vunpack.c.l.b16 %v872
        %v905 = vunpack.c.l.b16 %v873
        %v906 = vunpack.c.l.b16 %v874
        %v907 = vunpack.c.l.b16 %v875
        %v908 = vunpack.c.l.b16 %v876
        %v909 = vunpack.c.l.b16 %v877
        %v910 = vunpack.c.l.b16 %v878
        %v911 = vunpack.c.l.b16 %v879
        %v912 = vunpack.c.l.b16 %v880
        %v913 = vunpack.c.l.b16 %v881
        %v914 = vunpack.c.l.b16 %v882
        %v915 = vunpack.c.l.b16 %v883
        %v916 = vunpack.c.l.b16 %v884
        %v917 = vunpack.c.l.b16 %v885
        %v918 = vunpack.c.l.b16 %v886
        %v919 = vpack.c.b16 %v904, %v903
        %v920 = vpack.c.b16 %v906, %v905
        %v921 = vpack.c.b16 %v908, %v907
        %v922 = vpack.c.b16 %v910, %v909
        %v923 = vpack.c.b16 %v912, %v911
        %v924 = vpack.c.b16 %v914, %v913
        %v925 = vpack.c.b16 %v916, %v915
        %v926 = vpack.c.b16 %v918, %v917
        %935 = vmatpush.bf16.msra.mxu0 %v926
        %936 = vmatpush.bf16.msra.mxu0 %v925
        %937 = vmatpush.bf16.msra.mxu0 %v924
        %938 = vmatpush.bf16.msra.mxu0 %v923
        %939 = vmatpush.bf16.msra.mxu0 %v922
        %940 = vmatpush.bf16.msra.mxu0 %v921
        %941 = vmatpush.bf16.msra.mxu0 %v920
        %942 = vmatpush.bf16.msra.mxu0 %v919
        %943 = vmatmul.bf16.gmra.mxu0 %v863
        %v944 = vpop.f32.mrf.mxu0
        %v945 = vadd.f32 1e-06, %v944
        %v946 = vpop.f32.mrf.mxu0
        %v947 = vadd.f32 1e-06, %v946
        %948 = vmatmul.bf16.gmra.mxu0 %v864
        %v949 = vpop.f32.mrf.mxu0
        %v950 = vadd.f32 1e-06, %v949
        %v951 = vpop.f32.mrf.mxu0
        %v952 = vadd.f32 1e-06, %v951
        %953 = vmatmul.bf16.gmra.mxu0 %v865
        %v954 = vpop.f32.mrf.mxu0
        %v955 = vadd.f32 1e-06, %v954
        %v956 = vpop.f32.mrf.mxu0
        %v957 = vadd.f32 1e-06, %v956
        %958 = vmatmul.bf16.gmra.mxu0 %v866
        %v959 = vpop.f32.mrf.mxu0
        %v960 = vadd.f32 1e-06, %v959
        %v961 = vpop.f32.mrf.mxu0
        %v962 = vadd.f32 1e-06, %v961
        %963 = vmatmul.bf16.gmra.mxu0 %v867
        %v964 = vpop.f32.mrf.mxu0
        %v965 = vadd.f32 1e-06, %v964
        %v966 = vpop.f32.mrf.mxu0
        %v967 = vadd.f32 1e-06, %v966
        %968 = vmatmul.bf16.gmra.mxu0 %v868
        %v969 = vpop.f32.mrf.mxu0
        %v970 = vadd.f32 1e-06, %v969
        %v971 = vpop.f32.mrf.mxu0
        %v972 = vadd.f32 1e-06, %v971
        %973 = vmatmul.bf16.gmra.mxu0 %v869
        %v974 = vpop.f32.mrf.mxu0
        %v975 = vadd.f32 1e-06, %v974
        %v976 = vpop.f32.mrf.mxu0
        %v977 = vadd.f32 1e-06, %v976
        %978 = vmatmul.bf16.gmra.mxu0 %v870
        %v979 = vpop.f32.mrf.mxu0
        %v980 = vadd.f32 1e-06, %v979
        %v981 = vpop.f32.mrf.mxu0
        %982 = vdwg.mxu0
        %v983 = vlog2.pop %v945
        %v984 = vmul.f32 %v983, 0.6931472
        %v985 = vlog2.pop %v947
        %v986 = vmul.f32 %v985, 0.6931472
        %v987 = vlog2.pop %v950
        %v988 = vmul.f32 %v987, 0.6931472
        %v989 = vlog2.pop %v952
        %v990 = vmul.f32 %v989, 0.6931472
        %v991 = vlog2.pop %v955
        %v992 = vmul.f32 %v991, 0.6931472
        %v993 = vlog2.pop %v957
        %v994 = vmul.f32 %v993, 0.6931472
        %v995 = vlog2.pop %v960
        %v996 = vmul.f32 %v995, 0.6931472
        %v997 = vlog2.pop %v962
        %v998 = vmul.f32 %v997, 0.6931472
        %v999 = vlog2.pop %v965
        %v1000 = vmul.f32 %v999, 0.6931472
        %v1001 = vlog2.pop %v967
        %v1002 = vmul.f32 %v1001, 0.6931472
        %v1003 = vlog2.pop %v970
        %v1004 = vmul.f32 %v1003, 0.6931472
        %v1005 = vlog2.pop %v972
        %v1006 = vmul.f32 %v1005, 0.6931472
        %v1007 = vlog2.pop %v975
        %v1008 = vmul.f32 %v1007, 0.6931472
        %v1009 = vlog2.pop %v977
        %v1010 = vmul.f32 %v1009, 0.6931472
        %v1011 = vlog2.pop %v980
        %v1012 = vmul.f32 %v1011, 0.6931472
        %v1013 = vpack.c.bf16 %v984, %v984
        %v1014 = vpack.c.bf16 %v986, %v986
        %v1015 = vpack.c.bf16 %v988, %v988
        %v1016 = vpack.c.bf16 %v990, %v990
        %v1017 = vpack.c.bf16 %v992, %v992
        %v1018 = vpack.c.bf16 %v994, %v994
        %v1019 = vpack.c.bf16 %v996, %v996
        %v1020 = vpack.c.bf16 %v998, %v998
        %v1021 = vpack.c.bf16 %v1000, %v1000
        %v1022 = vpack.c.bf16 %v1002, %v1002
        %v1023 = vpack.c.bf16 %v1004, %v1004
        %v1024 = vpack.c.bf16 %v1006, %v1006
        %v1025 = vpack.c.bf16 %v1008, %v1008
        %v1026 = vpack.c.bf16 %v1010, %v1010
        %v1027 = vpack.c.bf16 %v1012, %v1012
        %v1043 = vunpack.c.l.b16 %v1013
        %v1044 = vunpack.c.l.b16 %v1014
        %v1045 = vunpack.c.l.b16 %v1015
        %v1046 = vunpack.c.l.b16 %v1016
        %v1047 = vunpack.c.l.b16 %v1017
        %v1048 = vunpack.c.l.b16 %v1018
        %v1049 = vunpack.c.l.b16 %v1019
        %v1050 = vunpack.c.l.b16 %v1020
        %v1051 = vunpack.c.l.b16 %v1021
        %v1052 = vunpack.c.l.b16 %v1022
        %v1053 = vunpack.c.l.b16 %v1023
        %v1054 = vunpack.c.l.b16 %v1024
        %v1055 = vunpack.c.l.b16 %v1025
        %v1056 = vunpack.c.l.b16 %v1026
        %v1057 = vunpack.c.l.b16 %v1027
        %v1058 = vpack.c.b16 %v1044, %v1043
        %v1059 = vpack.c.b16 %v1046, %v1045
        %v1060 = vpack.c.b16 %v1048, %v1047
        %v1061 = vpack.c.b16 %v1050, %v1049
        %v1062 = vpack.c.b16 %v1052, %v1051
        %v1063 = vpack.c.b16 %v1054, %v1053
        %v1064 = vpack.c.b16 %v1056, %v1055
        %v1065 = vpack.c.b16 %v1057, %v1057
        %vm1066 = vsmask.f32 256
        %v1068 = vshrl.u32 %v1058, 16
        %v1070 = vrot.slane %v1068, 7
        %v1071 = vshll.u32 %v1058, 16
        %v1073 = vor.u32 %v1070, %v1071
        %v1075 = vshrl.u32 %v1059, 16
        %v1077 = vrot.slane %v1075, 7
        %v1078 = vshll.u32 %v1059, 16
        %v1080 = vor.u32 %v1077, %v1078
        %v1081 = vsel %vm1066, %v1070, %v1080
        %v1083 = vshrl.u32 %v1060, 16
        %v1085 = vrot.slane %v1083, 7
        %v1086 = vshll.u32 %v1060, 16
        %v1088 = vor.u32 %v1085, %v1086
        %v1089 = vsel %vm1066, %v1077, %v1088
        %v1091 = vshrl.u32 %v1061, 16
        %v1093 = vrot.slane %v1091, 7
        %v1094 = vshll.u32 %v1061, 16
        %v1096 = vor.u32 %v1093, %v1094
        %v1097 = vsel %vm1066, %v1085, %v1096
        %v1099 = vshrl.u32 %v1062, 16
        %v1101 = vrot.slane %v1099, 7
        %v1102 = vshll.u32 %v1062, 16
        %v1104 = vor.u32 %v1101, %v1102
        %v1105 = vsel %vm1066, %v1093, %v1104
        %v1107 = vshrl.u32 %v1063, 16
        %v1109 = vrot.slane %v1107, 7
        %v1110 = vshll.u32 %v1063, 16
        %v1112 = vor.u32 %v1109, %v1110
        %v1113 = vsel %vm1066, %v1101, %v1112
        %v1115 = vshrl.u32 %v1064, 16
        %v1117 = vrot.slane %v1115, 7
        %v1118 = vshll.u32 %v1064, 16
        %v1120 = vor.u32 %v1117, %v1118
        %v1121 = vsel %vm1066, %v1109, %v1120
        %v1123 = vshrl.u32 %v1065, 16
        %v1125 = vrot.slane %v1123, 7
        %v1126 = vshll.u32 %v1065, 16
        %v1128 = vor.u32 %v1125, %v1126
        %v1129 = vsel %vm1066, %v1117, %v1128
        %vm1138 = vcmask 1040384
        %vm1139 = vmand %vm1138, %vm1066
        %v1140 = vsel %vm1139, 0, %v1073
        %vm1141 = vsmask.f32 7424
        %v1142 = vrot.slane %v1071, 1
        %v1143 = vor.u32 %v1068, %v1142
        %v1144 = vrot.slane %v1078, 1
        %v1145 = vsel %vm1141, %v1143, %v1144
        %v1146 = vor.u32 %v1075, %v1144
        %v1147 = vrot.slane %v1086, 1
        %v1148 = vsel %vm1141, %v1146, %v1147
        %v1149 = vor.u32 %v1083, %v1147
        %v1150 = vrot.slane %v1094, 1
        %v1151 = vsel %vm1141, %v1149, %v1150
        %v1152 = vor.u32 %v1091, %v1150
        %v1153 = vrot.slane %v1102, 1
        %v1154 = vsel %vm1141, %v1152, %v1153
        %v1155 = vor.u32 %v1099, %v1153
        %v1156 = vrot.slane %v1110, 1
        %v1157 = vsel %vm1141, %v1155, %v1156
        %v1158 = vor.u32 %v1107, %v1156
        %v1159 = vrot.slane %v1118, 1
        %v1160 = vsel %vm1141, %v1158, %v1159
        %v1161 = vor.u32 %v1115, %v1159
        %v1162 = vrot.slane %v1126, 1
        %v1163 = vsel %vm1141, %v1161, %v1162
        %v1164 = vor.u32 %v1123, %v1162
        %vm1173 = vcmask 1043456
        %vm1174 = vsmask.f32 3328
        %vm1175 = vmand %vm1173, %vm1174
        %v1176 = vsel %vm1175, %v1164, 0
        %v1177 = vlaneseq
        %v1178 = vshrl.u32 %v1177, 7
        %v1179 = vadd.s32 %v1178, 8
        %v1180 = vadd.s32 %v1178, 16
        %v1181 = vadd.s32 %v1178, 24
        %v1182 = vadd.s32 %v1178, 32
        %v1183 = vadd.s32 %v1178, 40
        %v1184 = vadd.s32 %v1178, 48
        %v1185 = vadd.s32 %v1178, 56
        %v1186 = vadd.s32 %v1178, 64
        %v1187 = vadd.s32 %v1178, 72
        %v1188 = vadd.s32 %v1178, 80
        %v1189 = vadd.s32 %v1178, 88
        %v1190 = vadd.s32 %v1178, 96
        %v1191 = vadd.s32 %v1178, 104
        %v1192 = vadd.s32 %v1178, 112
        %vm1193 = vcmp.lt.s32.totalorder %v1178, 0
        %v1194 = vsub.s32 0, %v1178
        %v1195 = vsel %vm1193, %v1194, %v1178
        %v1196 = vand.u32 %v1195, 65535
        %v1197 = vshrl.u32 %v1195, 16
        %v1199 = vmul.u32 %v1196, 34953
        %v1200 = vmul.u32 %v1196, 34952
        %v1201 = vmul.u32 %v1197, 34953
        %v1202 = vmul.u32 %v1197, 34952
        %v1203 = vshll.u32 %v1200, 16
        %v1204 = vshrl.u32 %v1200, 16
        %v1205 = vshll.u32 %v1201, 16
        %v1206 = vshrl.u32 %v1201, 16
        %vm1207 = vc.u32 %v1199, %v1203
        %v1208 = vsel %vm1207, 1, 0
        %v1209 = vadd.s32 %v1199, %v1203
        %v1210 = vadd.s32 %v1202, %v1208
        %vm1211 = vc.u32 %v1209, %v1205
        %v1212 = vsel %vm1211, 1, 0
        %v1213 = vadd.s32 %v1209, %v1205
        %v1214 = vadd.s32 %v1210, %v1212
        %v1215 = vadd.s32 %v1214, %v1204
        %v1216 = vadd.s32 %v1215, %v1206
        %v1217 = vshrl.u32 %v1216, 4
        %v1218 = vmul.u32 %v1217, 30
        %v1219 = vsub.s32 %v1195, %v1218
        %v1220 = vsub.s32 0, %v1219
        %v1221 = vsel %vm1193, %v1220, %v1219
        %vm1222 = vcmp.lt.s32.totalorder %v1179, 0
        %v1223 = vsub.s32 0, %v1179
        %v1224 = vsel %vm1222, %v1223, %v1179
        %v1225 = vand.u32 %v1224, 65535
        %v1226 = vshrl.u32 %v1224, 16
        %v1228 = vmul.u32 %v1225, 34953
        %v1229 = vmul.u32 %v1225, 34952
        %v1230 = vmul.u32 %v1226, 34953
        %v1231 = vmul.u32 %v1226, 34952
        %v1232 = vshll.u32 %v1229, 16
        %v1233 = vshrl.u32 %v1229, 16
        %v1234 = vshll.u32 %v1230, 16
        %v1235 = vshrl.u32 %v1230, 16
        %vm1236 = vc.u32 %v1228, %v1232
        %v1237 = vsel %vm1236, 1, 0
        %v1238 = vadd.s32 %v1228, %v1232
        %v1239 = vadd.s32 %v1231, %v1237
        %vm1240 = vc.u32 %v1238, %v1234
        %v1241 = vsel %vm1240, 1, 0
        %v1242 = vadd.s32 %v1238, %v1234
        %v1243 = vadd.s32 %v1239, %v1241
        %v1244 = vadd.s32 %v1243, %v1233
        %v1245 = vadd.s32 %v1244, %v1235
        %v1246 = vshrl.u32 %v1245, 4
        %v1247 = vmul.u32 %v1246, 30
        %v1248 = vsub.s32 %v1224, %v1247
        %v1249 = vsub.s32 0, %v1248
        %v1250 = vsel %vm1222, %v1249, %v1248
        %vm1251 = vcmp.lt.s32.totalorder %v1180, 0
        %v1252 = vsub.s32 0, %v1180
        %v1253 = vsel %vm1251, %v1252, %v1180
        %v1254 = vand.u32 %v1253, 65535
        %v1255 = vshrl.u32 %v1253, 16
        %v1257 = vmul.u32 %v1254, 34953
        %v1258 = vmul.u32 %v1254, 34952
        %v1259 = vmul.u32 %v1255, 34953
        %v1260 = vmul.u32 %v1255, 34952
        %v1261 = vshll.u32 %v1258, 16
        %v1262 = vshrl.u32 %v1258, 16
        %v1263 = vshll.u32 %v1259, 16
        %v1264 = vshrl.u32 %v1259, 16
        %vm1265 = vc.u32 %v1257, %v1261
        %v1266 = vsel %vm1265, 1, 0
        %v1267 = vadd.s32 %v1257, %v1261
        %v1268 = vadd.s32 %v1260, %v1266
        %vm1269 = vc.u32 %v1267, %v1263
        %v1270 = vsel %vm1269, 1, 0
        %v1271 = vadd.s32 %v1267, %v1263
        %v1272 = vadd.s32 %v1268, %v1270
        %v1273 = vadd.s32 %v1272, %v1262
        %v1274 = vadd.s32 %v1273, %v1264
        %v1275 = vshrl.u32 %v1274, 4
        %v1276 = vmul.u32 %v1275, 30
        %v1277 = vsub.s32 %v1253, %v1276
        %v1278 = vsub.s32 0, %v1277
        %v1279 = vsel %vm1251, %v1278, %v1277
        %vm1280 = vcmp.lt.s32.totalorder %v1181, 0
        %v1281 = vsub.s32 0, %v1181
        %v1282 = vsel %vm1280, %v1281, %v1181
        %v1283 = vand.u32 %v1282, 65535
        %v1284 = vshrl.u32 %v1282, 16
        %v1286 = vmul.u32 %v1283, 34953
        %v1287 = vmul.u32 %v1283, 34952
        %v1288 = vmul.u32 %v1284, 34953
        %v1289 = vmul.u32 %v1284, 34952
        %v1290 = vshll.u32 %v1287, 16
        %v1291 = vshrl.u32 %v1287, 16
        %v1292 = vshll.u32 %v1288, 16
        %v1293 = vshrl.u32 %v1288, 16
        %vm1294 = vc.u32 %v1286, %v1290
        %v1295 = vsel %vm1294, 1, 0
        %v1296 = vadd.s32 %v1286, %v1290
        %v1297 = vadd.s32 %v1289, %v1295
        %vm1298 = vc.u32 %v1296, %v1292
        %v1299 = vsel %vm1298, 1, 0
        %v1300 = vadd.s32 %v1296, %v1292
        %v1301 = vadd.s32 %v1297, %v1299
        %v1302 = vadd.s32 %v1301, %v1291
        %v1303 = vadd.s32 %v1302, %v1293
        %v1304 = vshrl.u32 %v1303, 4
        %v1305 = vmul.u32 %v1304, 30
        %v1306 = vsub.s32 %v1282, %v1305
        %v1307 = vsub.s32 0, %v1306
        %v1308 = vsel %vm1280, %v1307, %v1306
        %vm1309 = vcmp.lt.s32.totalorder %v1182, 0
        %v1310 = vsub.s32 0, %v1182
        %v1311 = vsel %vm1309, %v1310, %v1182
        %v1312 = vand.u32 %v1311, 65535
        %v1313 = vshrl.u32 %v1311, 16
        %v1315 = vmul.u32 %v1312, 34953
        %v1316 = vmul.u32 %v1312, 34952
        %v1317 = vmul.u32 %v1313, 34953
        %v1318 = vmul.u32 %v1313, 34952
        %v1319 = vshll.u32 %v1316, 16
        %v1320 = vshrl.u32 %v1316, 16
        %v1321 = vshll.u32 %v1317, 16
        %v1322 = vshrl.u32 %v1317, 16
        %vm1323 = vc.u32 %v1315, %v1319
        %v1324 = vsel %vm1323, 1, 0
        %v1325 = vadd.s32 %v1315, %v1319
        %v1326 = vadd.s32 %v1318, %v1324
        %vm1327 = vc.u32 %v1325, %v1321
        %v1328 = vsel %vm1327, 1, 0
        %v1329 = vadd.s32 %v1325, %v1321
        %v1330 = vadd.s32 %v1326, %v1328
        %v1331 = vadd.s32 %v1330, %v1320
        %v1332 = vadd.s32 %v1331, %v1322
        %v1333 = vshrl.u32 %v1332, 4
        %v1334 = vmul.u32 %v1333, 30
        %v1335 = vsub.s32 %v1311, %v1334
        %v1336 = vsub.s32 0, %v1335
        %v1337 = vsel %vm1309, %v1336, %v1335
        %vm1338 = vcmp.lt.s32.totalorder %v1183, 0
        %v1339 = vsub.s32 0, %v1183
        %v1340 = vsel %vm1338, %v1339, %v1183
        %v1341 = vand.u32 %v1340, 65535
        %v1342 = vshrl.u32 %v1340, 16
        %v1344 = vmul.u32 %v1341, 34953
        %v1345 = vmul.u32 %v1341, 34952
        %v1346 = vmul.u32 %v1342, 34953
        %v1347 = vmul.u32 %v1342, 34952
        %v1348 = vshll.u32 %v1345, 16
        %v1349 = vshrl.u32 %v1345, 16
        %v1350 = vshll.u32 %v1346, 16
        %v1351 = vshrl.u32 %v1346, 16
        %vm1352 = vc.u32 %v1344, %v1348
        %v1353 = vsel %vm1352, 1, 0
        %v1354 = vadd.s32 %v1344, %v1348
        %v1355 = vadd.s32 %v1347, %v1353
        %vm1356 = vc.u32 %v1354, %v1350
        %v1357 = vsel %vm1356, 1, 0
        %v1358 = vadd.s32 %v1354, %v1350
        %v1359 = vadd.s32 %v1355, %v1357
        %v1360 = vadd.s32 %v1359, %v1349
        %v1361 = vadd.s32 %v1360, %v1351
        %v1362 = vshrl.u32 %v1361, 4
        %v1363 = vmul.u32 %v1362, 30
        %v1364 = vsub.s32 %v1340, %v1363
        %v1365 = vsub.s32 0, %v1364
        %v1366 = vsel %vm1338, %v1365, %v1364
        %vm1367 = vcmp.lt.s32.totalorder %v1184, 0
        %v1368 = vsub.s32 0, %v1184
        %v1369 = vsel %vm1367, %v1368, %v1184
        %v1370 = vand.u32 %v1369, 65535
        %v1371 = vshrl.u32 %v1369, 16
        %v1373 = vmul.u32 %v1370, 34953
        %v1374 = vmul.u32 %v1370, 34952
        %v1375 = vmul.u32 %v1371, 34953
        %v1376 = vmul.u32 %v1371, 34952
        %v1377 = vshll.u32 %v1374, 16
        %v1378 = vshrl.u32 %v1374, 16
        %v1379 = vshll.u32 %v1375, 16
        %v1380 = vshrl.u32 %v1375, 16
        %vm1381 = vc.u32 %v1373, %v1377
        %v1382 = vsel %vm1381, 1, 0
        %v1383 = vadd.s32 %v1373, %v1377
        %v1384 = vadd.s32 %v1376, %v1382
        %vm1385 = vc.u32 %v1383, %v1379
        %v1386 = vsel %vm1385, 1, 0
        %v1387 = vadd.s32 %v1383, %v1379
        %v1388 = vadd.s32 %v1384, %v1386
        %v1389 = vadd.s32 %v1388, %v1378
        %v1390 = vadd.s32 %v1389, %v1380
        %v1391 = vshrl.u32 %v1390, 4
        %v1392 = vmul.u32 %v1391, 30
        %v1393 = vsub.s32 %v1369, %v1392
        %v1394 = vsub.s32 0, %v1393
        %v1395 = vsel %vm1367, %v1394, %v1393
        %vm1396 = vcmp.lt.s32.totalorder %v1185, 0
        %v1397 = vsub.s32 0, %v1185
        %v1398 = vsel %vm1396, %v1397, %v1185
        %v1399 = vand.u32 %v1398, 65535
        %v1400 = vshrl.u32 %v1398, 16
        %v1402 = vmul.u32 %v1399, 34953
        %v1403 = vmul.u32 %v1399, 34952
        %v1404 = vmul.u32 %v1400, 34953
        %v1405 = vmul.u32 %v1400, 34952
        %v1406 = vshll.u32 %v1403, 16
        %v1407 = vshrl.u32 %v1403, 16
        %v1408 = vshll.u32 %v1404, 16
        %v1409 = vshrl.u32 %v1404, 16
        %vm1410 = vc.u32 %v1402, %v1406
        %v1411 = vsel %vm1410, 1, 0
        %v1412 = vadd.s32 %v1402, %v1406
        %v1413 = vadd.s32 %v1405, %v1411
        %vm1414 = vc.u32 %v1412, %v1408
        %v1415 = vsel %vm1414, 1, 0
        %v1416 = vadd.s32 %v1412, %v1408
        %v1417 = vadd.s32 %v1413, %v1415
        %v1418 = vadd.s32 %v1417, %v1407
        %v1419 = vadd.s32 %v1418, %v1409
        %v1420 = vshrl.u32 %v1419, 4
        %v1421 = vmul.u32 %v1420, 30
        %v1422 = vsub.s32 %v1398, %v1421
        %v1423 = vsub.s32 0, %v1422
        %v1424 = vsel %vm1396, %v1423, %v1422
        %vm1425 = vcmp.lt.s32.totalorder %v1186, 0
        %v1426 = vsub.s32 0, %v1186
        %v1427 = vsel %vm1425, %v1426, %v1186
        %v1428 = vand.u32 %v1427, 65535
        %v1429 = vshrl.u32 %v1427, 16
        %v1431 = vmul.u32 %v1428, 34953
        %v1432 = vmul.u32 %v1428, 34952
        %v1433 = vmul.u32 %v1429, 34953
        %v1434 = vmul.u32 %v1429, 34952
        %v1435 = vshll.u32 %v1432, 16
        %v1436 = vshrl.u32 %v1432, 16
        %v1437 = vshll.u32 %v1433, 16
        %v1438 = vshrl.u32 %v1433, 16
        %vm1439 = vc.u32 %v1431, %v1435
        %v1440 = vsel %vm1439, 1, 0
        %v1441 = vadd.s32 %v1431, %v1435
        %v1442 = vadd.s32 %v1434, %v1440
        %vm1443 = vc.u32 %v1441, %v1437
        %v1444 = vsel %vm1443, 1, 0
        %v1445 = vadd.s32 %v1441, %v1437
        %v1446 = vadd.s32 %v1442, %v1444
        %v1447 = vadd.s32 %v1446, %v1436
        %v1448 = vadd.s32 %v1447, %v1438
        %v1449 = vshrl.u32 %v1448, 4
        %v1450 = vmul.u32 %v1449, 30
        %v1451 = vsub.s32 %v1427, %v1450
        %v1452 = vsub.s32 0, %v1451
        %v1453 = vsel %vm1425, %v1452, %v1451
        %vm1454 = vcmp.lt.s32.totalorder %v1187, 0
        %v1455 = vsub.s32 0, %v1187
        %v1456 = vsel %vm1454, %v1455, %v1187
        %v1457 = vand.u32 %v1456, 65535
        %v1458 = vshrl.u32 %v1456, 16
        %v1460 = vmul.u32 %v1457, 34953
        %v1461 = vmul.u32 %v1457, 34952
        %v1462 = vmul.u32 %v1458, 34953
        %v1463 = vmul.u32 %v1458, 34952
        %v1464 = vshll.u32 %v1461, 16
        %v1465 = vshrl.u32 %v1461, 16
        %v1466 = vshll.u32 %v1462, 16
        %v1467 = vshrl.u32 %v1462, 16
        %vm1468 = vc.u32 %v1460, %v1464
        %v1469 = vsel %vm1468, 1, 0
        %v1470 = vadd.s32 %v1460, %v1464
        %v1471 = vadd.s32 %v1463, %v1469
        %vm1472 = vc.u32 %v1470, %v1466
        %v1473 = vsel %vm1472, 1, 0
        %v1474 = vadd.s32 %v1470, %v1466
        %v1475 = vadd.s32 %v1471, %v1473
        %v1476 = vadd.s32 %v1475, %v1465
        %v1477 = vadd.s32 %v1476, %v1467
        %v1478 = vshrl.u32 %v1477, 4
        %v1479 = vmul.u32 %v1478, 30
        %v1480 = vsub.s32 %v1456, %v1479
        %v1481 = vsub.s32 0, %v1480
        %v1482 = vsel %vm1454, %v1481, %v1480
        %vm1483 = vcmp.lt.s32.totalorder %v1188, 0
        %v1484 = vsub.s32 0, %v1188
        %v1485 = vsel %vm1483, %v1484, %v1188
        %v1486 = vand.u32 %v1485, 65535
        %v1487 = vshrl.u32 %v1485, 16
        %v1489 = vmul.u32 %v1486, 34953
        %v1490 = vmul.u32 %v1486, 34952
        %v1491 = vmul.u32 %v1487, 34953
        %v1492 = vmul.u32 %v1487, 34952
        %v1493 = vshll.u32 %v1490, 16
        %v1494 = vshrl.u32 %v1490, 16
        %v1495 = vshll.u32 %v1491, 16
        %v1496 = vshrl.u32 %v1491, 16
        %vm1497 = vc.u32 %v1489, %v1493
        %v1498 = vsel %vm1497, 1, 0
        %v1499 = vadd.s32 %v1489, %v1493
        %v1500 = vadd.s32 %v1492, %v1498
        %vm1501 = vc.u32 %v1499, %v1495
        %v1502 = vsel %vm1501, 1, 0
        %v1503 = vadd.s32 %v1499, %v1495
        %v1504 = vadd.s32 %v1500, %v1502
        %v1505 = vadd.s32 %v1504, %v1494
        %v1506 = vadd.s32 %v1505, %v1496
        %v1507 = vshrl.u32 %v1506, 4
        %v1508 = vmul.u32 %v1507, 30
        %v1509 = vsub.s32 %v1485, %v1508
        %v1510 = vsub.s32 0, %v1509
        %v1511 = vsel %vm1483, %v1510, %v1509
        %vm1512 = vcmp.lt.s32.totalorder %v1189, 0
        %v1513 = vsub.s32 0, %v1189
        %v1514 = vsel %vm1512, %v1513, %v1189
        %v1515 = vand.u32 %v1514, 65535
        %v1516 = vshrl.u32 %v1514, 16
        %v1518 = vmul.u32 %v1515, 34953
        %v1519 = vmul.u32 %v1515, 34952
        %v1520 = vmul.u32 %v1516, 34953
        %v1521 = vmul.u32 %v1516, 34952
        %v1522 = vshll.u32 %v1519, 16
        %v1523 = vshrl.u32 %v1519, 16
        %v1524 = vshll.u32 %v1520, 16
        %v1525 = vshrl.u32 %v1520, 16
        %vm1526 = vc.u32 %v1518, %v1522
        %v1527 = vsel %vm1526, 1, 0
        %v1528 = vadd.s32 %v1518, %v1522
        %v1529 = vadd.s32 %v1521, %v1527
        %vm1530 = vc.u32 %v1528, %v1524
        %v1531 = vsel %vm1530, 1, 0
        %v1532 = vadd.s32 %v1528, %v1524
        %v1533 = vadd.s32 %v1529, %v1531
        %v1534 = vadd.s32 %v1533, %v1523
        %v1535 = vadd.s32 %v1534, %v1525
        %v1536 = vshrl.u32 %v1535, 4
        %v1537 = vmul.u32 %v1536, 30
        %v1538 = vsub.s32 %v1514, %v1537
        %v1539 = vsub.s32 0, %v1538
        %v1540 = vsel %vm1512, %v1539, %v1538
        %vm1541 = vcmp.lt.s32.totalorder %v1190, 0
        %v1542 = vsub.s32 0, %v1190
        %v1543 = vsel %vm1541, %v1542, %v1190
        %v1544 = vand.u32 %v1543, 65535
        %v1545 = vshrl.u32 %v1543, 16
        %v1547 = vmul.u32 %v1544, 34953
        %v1548 = vmul.u32 %v1544, 34952
        %v1549 = vmul.u32 %v1545, 34953
        %v1550 = vmul.u32 %v1545, 34952
        %v1551 = vshll.u32 %v1548, 16
        %v1552 = vshrl.u32 %v1548, 16
        %v1553 = vshll.u32 %v1549, 16
        %v1554 = vshrl.u32 %v1549, 16
        %vm1555 = vc.u32 %v1547, %v1551
        %v1556 = vsel %vm1555, 1, 0
        %v1557 = vadd.s32 %v1547, %v1551
        %v1558 = vadd.s32 %v1550, %v1556
        %vm1559 = vc.u32 %v1557, %v1553
        %v1560 = vsel %vm1559, 1, 0
        %v1561 = vadd.s32 %v1557, %v1553
        %v1562 = vadd.s32 %v1558, %v1560
        %v1563 = vadd.s32 %v1562, %v1552
        %v1564 = vadd.s32 %v1563, %v1554
        %v1565 = vshrl.u32 %v1564, 4
        %v1566 = vmul.u32 %v1565, 30
        %v1567 = vsub.s32 %v1543, %v1566
        %v1568 = vsub.s32 0, %v1567
        %v1569 = vsel %vm1541, %v1568, %v1567
        %vm1570 = vcmp.lt.s32.totalorder %v1191, 0
        %v1571 = vsub.s32 0, %v1191
        %v1572 = vsel %vm1570, %v1571, %v1191
        %v1573 = vand.u32 %v1572, 65535
        %v1574 = vshrl.u32 %v1572, 16
        %v1576 = vmul.u32 %v1573, 34953
        %v1577 = vmul.u32 %v1573, 34952
        %v1578 = vmul.u32 %v1574, 34953
        %v1579 = vmul.u32 %v1574, 34952
        %v1580 = vshll.u32 %v1577, 16
        %v1581 = vshrl.u32 %v1577, 16
        %v1582 = vshll.u32 %v1578, 16
        %v1583 = vshrl.u32 %v1578, 16
        %vm1584 = vc.u32 %v1576, %v1580
        %v1585 = vsel %vm1584, 1, 0
        %v1586 = vadd.s32 %v1576, %v1580
        %v1587 = vadd.s32 %v1579, %v1585
        %vm1588 = vc.u32 %v1586, %v1582
        %v1589 = vsel %vm1588, 1, 0
        %v1590 = vadd.s32 %v1586, %v1582
        %v1591 = vadd.s32 %v1587, %v1589
        %v1592 = vadd.s32 %v1591, %v1581
        %v1593 = vadd.s32 %v1592, %v1583
        %v1594 = vshrl.u32 %v1593, 4
        %v1595 = vmul.u32 %v1594, 30
        %v1596 = vsub.s32 %v1572, %v1595
        %v1597 = vsub.s32 0, %v1596
        %v1598 = vsel %vm1570, %v1597, %v1596
        %vm1599 = vcmp.lt.s32.totalorder %v1192, 0
        %v1600 = vsub.s32 0, %v1192
        %v1601 = vsel %vm1599, %v1600, %v1192
        %v1602 = vand.u32 %v1601, 65535
        %v1603 = vshrl.u32 %v1601, 16
        %v1605 = vmul.u32 %v1602, 34953
        %v1606 = vmul.u32 %v1602, 34952
        %v1607 = vmul.u32 %v1603, 34953
        %v1608 = vmul.u32 %v1603, 34952
        %v1609 = vshll.u32 %v1606, 16
        %v1610 = vshrl.u32 %v1606, 16
        %v1611 = vshll.u32 %v1607, 16
        %v1612 = vshrl.u32 %v1607, 16
        %vm1613 = vc.u32 %v1605, %v1609
        %v1614 = vsel %vm1613, 1, 0
        %v1615 = vadd.s32 %v1605, %v1609
        %v1616 = vadd.s32 %v1608, %v1614
        %vm1617 = vc.u32 %v1615, %v1611
        %v1618 = vsel %vm1617, 1, 0
        %v1619 = vadd.s32 %v1615, %v1611
        %v1620 = vadd.s32 %v1616, %v1618
        %v1621 = vadd.s32 %v1620, %v1610
        %v1622 = vadd.s32 %v1621, %v1612
        %v1623 = vshrl.u32 %v1622, 4
        %v1624 = vmul.u32 %v1623, 30
        %v1625 = vsub.s32 %v1601, %v1624
        %v1626 = vsub.s32 0, %v1625
        %v1627 = vsel %vm1599, %v1626, %v1625
        %vm1628 = vcmp.ne.s32.totalorder %v1221, 0
        %vm1629 = vcmp.ne.s32.totalorder %v1250, 0
        %vm1630 = vcmp.ne.s32.totalorder %v1279, 0
        %vm1631 = vcmp.ne.s32.totalorder %v1308, 0
        %vm1632 = vcmp.ne.s32.totalorder %v1337, 0
        %vm1633 = vcmp.ne.s32.totalorder %v1366, 0
        %vm1634 = vcmp.ne.s32.totalorder %v1395, 0
        %vm1635 = vcmp.ne.s32.totalorder %v1424, 0
        %vm1636 = vcmp.ne.s32.totalorder %v1453, 0
        %vm1637 = vcmp.ne.s32.totalorder %v1482, 0
        %vm1638 = vcmp.ne.s32.totalorder %v1511, 0
        %vm1639 = vcmp.ne.s32.totalorder %v1540, 0
        %vm1640 = vcmp.ne.s32.totalorder %v1569, 0
        %vm1641 = vcmp.ne.s32.totalorder %v1598, 0
        %vm1642 = vcmp.ne.s32.totalorder %v1627, 0
        %vm1643 = vcmp.lt.s32.totalorder %v1221, 0
        %vm1644 = vcmp.lt.s32.totalorder %v1250, 0
        %vm1645 = vcmp.lt.s32.totalorder %v1279, 0
        %vm1646 = vcmp.lt.s32.totalorder %v1308, 0
        %vm1647 = vcmp.lt.s32.totalorder %v1337, 0
        %vm1648 = vcmp.lt.s32.totalorder %v1366, 0
        %vm1649 = vcmp.lt.s32.totalorder %v1395, 0
        %vm1650 = vcmp.lt.s32.totalorder %v1424, 0
        %vm1651 = vcmp.lt.s32.totalorder %v1453, 0
        %vm1652 = vcmp.lt.s32.totalorder %v1482, 0
        %vm1653 = vcmp.lt.s32.totalorder %v1511, 0
        %vm1654 = vcmp.lt.s32.totalorder %v1540, 0
        %vm1655 = vcmp.lt.s32.totalorder %v1569, 0
        %vm1656 = vcmp.lt.s32.totalorder %v1598, 0
        %vm1657 = vcmp.lt.s32.totalorder %v1627, 0
        %vm1658 = vmand %vm1643, %vm1628
        %vm1659 = vmand %vm1644, %vm1629
        %vm1660 = vmand %vm1645, %vm1630
        %vm1661 = vmand %vm1646, %vm1631
        %vm1662 = vmand %vm1647, %vm1632
        %vm1663 = vmand %vm1648, %vm1633
        %vm1664 = vmand %vm1649, %vm1634
        %vm1665 = vmand %vm1650, %vm1635
        %vm1666 = vmand %vm1651, %vm1636
        %vm1667 = vmand %vm1652, %vm1637
        %vm1668 = vmand %vm1653, %vm1638
        %vm1669 = vmand %vm1654, %vm1639
        %vm1670 = vmand %vm1655, %vm1640
        %vm1671 = vmand %vm1656, %vm1641
        %vm1672 = vmand %vm1657, %vm1642
        %v1673 = vadd.s32 %v1221, 30
        %v1674 = vadd.s32 %v1250, 30
        %v1675 = vadd.s32 %v1279, 30
        %v1676 = vadd.s32 %v1308, 30
        %v1677 = vadd.s32 %v1337, 30
        %v1678 = vadd.s32 %v1366, 30
        %v1679 = vadd.s32 %v1395, 30
        %v1680 = vadd.s32 %v1424, 30
        %v1681 = vadd.s32 %v1453, 30
        %v1682 = vadd.s32 %v1482, 30
        %v1683 = vadd.s32 %v1511, 30
        %v1684 = vadd.s32 %v1540, 30
        %v1685 = vadd.s32 %v1569, 30
        %v1686 = vadd.s32 %v1598, 30
        %v1687 = vadd.s32 %v1627, 30
        %v1688 = vsel %vm1658, %v1673, %v1221
        %v1689 = vsel %vm1659, %v1674, %v1250
        %v1690 = vsel %vm1660, %v1675, %v1279
        %v1691 = vsel %vm1661, %v1676, %v1308
        %v1692 = vsel %vm1662, %v1677, %v1337
        %v1693 = vsel %vm1663, %v1678, %v1366
        %v1694 = vsel %vm1664, %v1679, %v1395
        %v1695 = vsel %vm1665, %v1680, %v1424
        %v1696 = vsel %vm1666, %v1681, %v1453
        %v1697 = vsel %vm1667, %v1682, %v1482
        %v1698 = vsel %vm1668, %v1683, %v1511
        %v1699 = vsel %vm1669, %v1684, %v1540
        %v1700 = vsel %vm1670, %v1685, %v1569
        %v1701 = vsel %vm1671, %v1686, %v1598
        %v1702 = vsel %vm1672, %v1687, %v1627
        %vm1703 = vcmp.eq.s32.totalorder %v1688, 0
        %vm1704 = vcmp.eq.s32.totalorder %v1689, 0
        %vm1705 = vcmp.eq.s32.totalorder %v1690, 0
        %vm1706 = vcmp.eq.s32.totalorder %v1691, 0
        %vm1707 = vcmp.eq.s32.totalorder %v1692, 0
        %vm1708 = vcmp.eq.s32.totalorder %v1693, 0
        %vm1709 = vcmp.eq.s32.totalorder %v1694, 0
        %vm1710 = vcmp.eq.s32.totalorder %v1695, 0
        %vm1711 = vcmp.eq.s32.totalorder %v1696, 0
        %vm1712 = vcmp.eq.s32.totalorder %v1697, 0
        %vm1713 = vcmp.eq.s32.totalorder %v1698, 0
        %vm1714 = vcmp.eq.s32.totalorder %v1699, 0
        %vm1715 = vcmp.eq.s32.totalorder %v1700, 0
        %vm1716 = vcmp.eq.s32.totalorder %v1701, 0
        %vm1717 = vcmp.eq.s32.totalorder %v1702, 0
        %vm1718 = vmpackc.low %vm1703, %vm1703
        %vm1719 = vmpackc.low %vm1704, %vm1704
        %vm1720 = vmpackc.low %vm1705, %vm1705
        %vm1721 = vmpackc.low %vm1706, %vm1706
        %vm1722 = vmpackc.low %vm1707, %vm1707
        %vm1723 = vmpackc.low %vm1708, %vm1708
        %vm1724 = vmpackc.low %vm1709, %vm1709
        %vm1725 = vmpackc.low %vm1710, %vm1710
        %vm1726 = vmpackc.low %vm1711, %vm1711
        %vm1727 = vmpackc.low %vm1712, %vm1712
        %vm1728 = vmpackc.low %vm1713, %vm1713
        %vm1729 = vmpackc.low %vm1714, %vm1714
        %vm1730 = vmpackc.low %vm1715, %vm1715
        %vm1731 = vmpackc.low %vm1716, %vm1716
        %vm1732 = vmpackc.low %vm1717, %vm1717
        %v1733 = vsel %vm1718, 65537, 0
        %v1734 = vsel %vm1719, 65537, 0
        %v1735 = vsel %vm1720, 65537, 0
        %v1736 = vsel %vm1721, 65537, 0
        %v1737 = vsel %vm1722, 65537, 0
        %v1738 = vsel %vm1723, 65537, 0
        %v1739 = vsel %vm1724, 65537, 0
        %v1740 = vsel %vm1725, 65537, 0
        %v1741 = vsel %vm1726, 65537, 0
        %v1742 = vsel %vm1727, 65537, 0
        %v1743 = vsel %vm1728, 65537, 0
        %v1744 = vsel %vm1729, 65537, 0
        %v1745 = vsel %vm1730, 65537, 0
        %v1746 = vsel %vm1731, 65537, 0
        %v1747 = vsel %vm1732, 65537, 0
        %v1748 = vunpack.c.l.b16 %v1733
        %v1749 = vunpack.c.l.b16 %v1734
        %v1750 = vunpack.c.l.b16 %v1735
        %v1751 = vunpack.c.l.b16 %v1736
        %v1752 = vunpack.c.l.b16 %v1737
        %v1753 = vunpack.c.l.b16 %v1738
        %v1754 = vunpack.c.l.b16 %v1739
        %v1755 = vunpack.c.l.b16 %v1740
        %v1756 = vunpack.c.l.b16 %v1741
        %v1757 = vunpack.c.l.b16 %v1742
        %v1758 = vunpack.c.l.b16 %v1743
        %v1759 = vunpack.c.l.b16 %v1744
        %v1760 = vunpack.c.l.b16 %v1745
        %v1761 = vunpack.c.l.b16 %v1746
        %v1762 = vunpack.c.l.b16 %v1747
        %v1763 = vpack.c.b16 %v1749, %v1748
        %v1764 = vpack.c.b16 %v1751, %v1750
        %v1765 = vpack.c.b16 %v1753, %v1752
        %v1766 = vpack.c.b16 %v1755, %v1754
        %v1767 = vpack.c.b16 %v1757, %v1756
        %v1768 = vpack.c.b16 %v1759, %v1758
        %v1769 = vpack.c.b16 %v1761, %v1760
        %v1770 = vpack.c.b16 %v1762, %v1762
        %v1771 = vunpack.c.l.b16 %v1763
        %v1772 = vunpack.c.h.b16 %v1763
        %v1773 = vunpack.c.l.b16 0
        %v1774 = vunpack.c.h.b16 0
        %vm1775 = vcmp.ne.s32.totalorder %v1771, %v1773
        %vm1776 = vcmp.ne.s32.totalorder %v1772, %v1774
        %vm1777 = vmpackc.low %vm1776, %vm1775
        %v1778 = vunpack.c.l.b16 %v1764
        %v1779 = vunpack.c.h.b16 %v1764
        %v1780 = vunpack.c.l.b16 0
        %v1781 = vunpack.c.h.b16 0
        %vm1782 = vcmp.ne.s32.totalorder %v1778, %v1780
        %vm1783 = vcmp.ne.s32.totalorder %v1779, %v1781
        %vm1784 = vmpackc.low %vm1783, %vm1782
        %v1785 = vunpack.c.l.b16 %v1765
        %v1786 = vunpack.c.h.b16 %v1765
        %v1787 = vunpack.c.l.b16 0
        %v1788 = vunpack.c.h.b16 0
        %vm1789 = vcmp.ne.s32.totalorder %v1785, %v1787
        %vm1790 = vcmp.ne.s32.totalorder %v1786, %v1788
        %vm1791 = vmpackc.low %vm1790, %vm1789
        %v1792 = vunpack.c.l.b16 %v1766
        %v1793 = vunpack.c.h.b16 %v1766
        %v1794 = vunpack.c.l.b16 0
        %v1795 = vunpack.c.h.b16 0
        %vm1796 = vcmp.ne.s32.totalorder %v1792, %v1794
        %vm1797 = vcmp.ne.s32.totalorder %v1793, %v1795
        %vm1798 = vmpackc.low %vm1797, %vm1796
        %v1799 = vunpack.c.l.b16 %v1767
        %v1800 = vunpack.c.h.b16 %v1767
        %v1801 = vunpack.c.l.b16 0
        %v1802 = vunpack.c.h.b16 0
        %vm1803 = vcmp.ne.s32.totalorder %v1799, %v1801
        %vm1804 = vcmp.ne.s32.totalorder %v1800, %v1802
        %vm1805 = vmpackc.low %vm1804, %vm1803
        %v1806 = vunpack.c.l.b16 %v1768
        %v1807 = vunpack.c.h.b16 %v1768
        %v1808 = vunpack.c.l.b16 0
        %v1809 = vunpack.c.h.b16 0
        %vm1810 = vcmp.ne.s32.totalorder %v1806, %v1808
        %vm1811 = vcmp.ne.s32.totalorder %v1807, %v1809
        %vm1812 = vmpackc.low %vm1811, %vm1810
        %v1813 = vunpack.c.l.b16 %v1769
        %v1814 = vunpack.c.h.b16 %v1769
        %v1815 = vunpack.c.l.b16 0
        %v1816 = vunpack.c.h.b16 0
        %vm1817 = vcmp.ne.s32.totalorder %v1813, %v1815
        %vm1818 = vcmp.ne.s32.totalorder %v1814, %v1816
        %vm1819 = vmpackc.low %vm1818, %vm1817
        %v1820 = vunpack.c.l.b16 %v1770
        %v1821 = vunpack.c.h.b16 %v1770
        %v1822 = vunpack.c.l.b16 0
        %v1823 = vunpack.c.h.b16 0
        %vm1824 = vcmp.ne.s32.totalorder %v1820, %v1822
        %vm1825 = vcmp.ne.s32.totalorder %v1821, %v1823
        %vm1826 = vmpackc.low %vm1825, %vm1824
        %v1827 = vsel %vm1777, 0, %v1140
        %v1828 = vsel %vm1784, 0, %v1081
        %v1829 = vsel %vm1791, 0, %v1089
        %v1830 = vsel %vm1798, 0, %v1097
        %v1831 = vsel %vm1805, 0, %v1105
        %v1832 = vsel %vm1812, 0, %v1113
        %v1833 = vsel %vm1819, 0, %v1121
        %v1834 = vsel %vm1826, 0, %v1129
        %vm1835 = vcmp.eq.s32.totalorder %v1688, 29
        %vm1836 = vcmp.eq.s32.totalorder %v1689, 29
        %vm1837 = vcmp.eq.s32.totalorder %v1690, 29
        %vm1838 = vcmp.eq.s32.totalorder %v1691, 29
        %vm1839 = vcmp.eq.s32.totalorder %v1692, 29
        %vm1840 = vcmp.eq.s32.totalorder %v1693, 29
        %vm1841 = vcmp.eq.s32.totalorder %v1694, 29
        %vm1842 = vcmp.eq.s32.totalorder %v1695, 29
        %vm1843 = vcmp.eq.s32.totalorder %v1696, 29
        %vm1844 = vcmp.eq.s32.totalorder %v1697, 29
        %vm1845 = vcmp.eq.s32.totalorder %v1698, 29
        %vm1846 = vcmp.eq.s32.totalorder %v1699, 29
        %vm1847 = vcmp.eq.s32.totalorder %v1700, 29
        %vm1848 = vcmp.eq.s32.totalorder %v1701, 29
        %vm1849 = vcmp.eq.s32.totalorder %v1702, 29
        %vm1850 = vmpackc.low %vm1835, %vm1835
        %vm1851 = vmpackc.low %vm1836, %vm1836
        %vm1852 = vmpackc.low %vm1837, %vm1837
        %vm1853 = vmpackc.low %vm1838, %vm1838
        %vm1854 = vmpackc.low %vm1839, %vm1839
        %vm1855 = vmpackc.low %vm1840, %vm1840
        %vm1856 = vmpackc.low %vm1841, %vm1841
        %vm1857 = vmpackc.low %vm1842, %vm1842
        %vm1858 = vmpackc.low %vm1843, %vm1843
        %vm1859 = vmpackc.low %vm1844, %vm1844
        %vm1860 = vmpackc.low %vm1845, %vm1845
        %vm1861 = vmpackc.low %vm1846, %vm1846
        %vm1862 = vmpackc.low %vm1847, %vm1847
        %vm1863 = vmpackc.low %vm1848, %vm1848
        %vm1864 = vmpackc.low %vm1849, %vm1849
        %v1865 = vsel %vm1850, 65537, 0
        %v1866 = vsel %vm1851, 65537, 0
        %v1867 = vsel %vm1852, 65537, 0
        %v1868 = vsel %vm1853, 65537, 0
        %v1869 = vsel %vm1854, 65537, 0
        %v1870 = vsel %vm1855, 65537, 0
        %v1871 = vsel %vm1856, 65537, 0
        %v1872 = vsel %vm1857, 65537, 0
        %v1873 = vsel %vm1858, 65537, 0
        %v1874 = vsel %vm1859, 65537, 0
        %v1875 = vsel %vm1860, 65537, 0
        %v1876 = vsel %vm1861, 65537, 0
        %v1877 = vsel %vm1862, 65537, 0
        %v1878 = vsel %vm1863, 65537, 0
        %v1879 = vsel %vm1864, 65537, 0
        %v1880 = vunpack.c.l.b16 %v1865
        %v1881 = vunpack.c.l.b16 %v1866
        %v1882 = vunpack.c.l.b16 %v1867
        %v1883 = vunpack.c.l.b16 %v1868
        %v1884 = vunpack.c.l.b16 %v1869
        %v1885 = vunpack.c.l.b16 %v1870
        %v1886 = vunpack.c.l.b16 %v1871
        %v1887 = vunpack.c.l.b16 %v1872
        %v1888 = vunpack.c.l.b16 %v1873
        %v1889 = vunpack.c.l.b16 %v1874
        %v1890 = vunpack.c.l.b16 %v1875
        %v1891 = vunpack.c.l.b16 %v1876
        %v1892 = vunpack.c.l.b16 %v1877
        %v1893 = vunpack.c.l.b16 %v1878
        %v1894 = vunpack.c.l.b16 %v1879
        %v1895 = vpack.c.b16 %v1881, %v1880
        %v1896 = vpack.c.b16 %v1883, %v1882
        %v1897 = vpack.c.b16 %v1885, %v1884
        %v1898 = vpack.c.b16 %v1887, %v1886
        %v1899 = vpack.c.b16 %v1889, %v1888
        %v1900 = vpack.c.b16 %v1891, %v1890
        %v1901 = vpack.c.b16 %v1893, %v1892
        %v1902 = vpack.c.b16 %v1894, %v1894
        %v1903 = vunpack.c.l.b16 %v1895
        %v1904 = vunpack.c.h.b16 %v1895
        %v1905 = vunpack.c.l.b16 0
        %v1906 = vunpack.c.h.b16 0
        %vm1907 = vcmp.ne.s32.totalorder %v1903, %v1905
        %vm1908 = vcmp.ne.s32.totalorder %v1904, %v1906
        %vm1909 = vmpackc.low %vm1908, %vm1907
        %v1910 = vunpack.c.l.b16 %v1896
        %v1911 = vunpack.c.h.b16 %v1896
        %v1912 = vunpack.c.l.b16 0
        %v1913 = vunpack.c.h.b16 0
        %vm1914 = vcmp.ne.s32.totalorder %v1910, %v1912
        %vm1915 = vcmp.ne.s32.totalorder %v1911, %v1913
        %vm1916 = vmpackc.low %vm1915, %vm1914
        %v1917 = vunpack.c.l.b16 %v1897
        %v1918 = vunpack.c.h.b16 %v1897
        %v1919 = vunpack.c.l.b16 0
        %v1920 = vunpack.c.h.b16 0
        %vm1921 = vcmp.ne.s32.totalorder %v1917, %v1919
        %vm1922 = vcmp.ne.s32.totalorder %v1918, %v1920
        %vm1923 = vmpackc.low %vm1922, %vm1921
        %v1924 = vunpack.c.l.b16 %v1898
        %v1925 = vunpack.c.h.b16 %v1898
        %v1926 = vunpack.c.l.b16 0
        %v1927 = vunpack.c.h.b16 0
        %vm1928 = vcmp.ne.s32.totalorder %v1924, %v1926
        %vm1929 = vcmp.ne.s32.totalorder %v1925, %v1927
        %vm1930 = vmpackc.low %vm1929, %vm1928
        %v1931 = vunpack.c.l.b16 %v1899
        %v1932 = vunpack.c.h.b16 %v1899
        %v1933 = vunpack.c.l.b16 0
        %v1934 = vunpack.c.h.b16 0
        %vm1935 = vcmp.ne.s32.totalorder %v1931, %v1933
        %vm1936 = vcmp.ne.s32.totalorder %v1932, %v1934
        %vm1937 = vmpackc.low %vm1936, %vm1935
        %v1938 = vunpack.c.l.b16 %v1900
        %v1939 = vunpack.c.h.b16 %v1900
        %v1940 = vunpack.c.l.b16 0
        %v1941 = vunpack.c.h.b16 0
        %vm1942 = vcmp.ne.s32.totalorder %v1938, %v1940
        %vm1943 = vcmp.ne.s32.totalorder %v1939, %v1941
        %vm1944 = vmpackc.low %vm1943, %vm1942
        %v1945 = vunpack.c.l.b16 %v1901
        %v1946 = vunpack.c.h.b16 %v1901
        %v1947 = vunpack.c.l.b16 0
        %v1948 = vunpack.c.h.b16 0
        %vm1949 = vcmp.ne.s32.totalorder %v1945, %v1947
        %vm1950 = vcmp.ne.s32.totalorder %v1946, %v1948
        %vm1951 = vmpackc.low %vm1950, %vm1949
        %v1952 = vunpack.c.l.b16 %v1902
        %v1953 = vunpack.c.h.b16 %v1902
        %v1954 = vunpack.c.l.b16 0
        %v1955 = vunpack.c.h.b16 0
        %vm1956 = vcmp.ne.s32.totalorder %v1952, %v1954
        %vm1957 = vcmp.ne.s32.totalorder %v1953, %v1955
        %vm1958 = vmpackc.low %vm1957, %vm1956
        %v1959 = vsel %vm1909, 0, %v1145
        %v1960 = vsel %vm1916, 0, %v1148
        %v1961 = vsel %vm1923, 0, %v1151
        %v1962 = vsel %vm1930, 0, %v1154
        %v1963 = vsel %vm1937, 0, %v1157
        %v1964 = vsel %vm1944, 0, %v1160
        %v1965 = vsel %vm1951, 0, %v1163
        %v1966 = vsel %vm1958, 0, %v1176
        %1967 = vrot.lane.b32.xlu0 %v1058, 32
        %v1968 = vpop.permute.xlu0 %1967
        %1969 = vrot.lane.b32.xlu0 %v1059, 32
        %v1970 = vpop.permute.xlu0 %1969
        %1971 = vrot.lane.b32.xlu0 %v1060, 32
        %v1972 = vpop.permute.xlu0 %1971
        %1973 = vrot.lane.b32.xlu0 %v1061, 32
        %v1974 = vpop.permute.xlu0 %1973
        %1975 = vrot.lane.b32.xlu0 %v1062, 32
        %v1976 = vpop.permute.xlu0 %1975
        %1977 = vrot.lane.b32.xlu0 %v1063, 32
        %v1978 = vpop.permute.xlu0 %1977
        %1979 = vrot.lane.b32.xlu0 %v1064, 32
        %v1980 = vpop.permute.xlu0 %1979
        %1981 = vrot.lane.b32.xlu0 %v1065, 32
        %v1982 = vpop.permute.xlu0 %1981
        %1991 = vrot.lane.b32.xlu0 %v1959, 64
        %v1992 = vpop.permute.xlu0 %1991
        %1993 = vrot.lane.b32.xlu0 %v1960, 64
        %v1994 = vpop.permute.xlu0 %1993
        %1995 = vrot.lane.b32.xlu0 %v1961, 64
        %v1996 = vpop.permute.xlu0 %1995
        %1997 = vrot.lane.b32.xlu0 %v1962, 64
        %v1998 = vpop.permute.xlu0 %1997
        %1999 = vrot.lane.b32.xlu0 %v1963, 64
        %v2000 = vpop.permute.xlu0 %1999
        %2001 = vrot.lane.b32.xlu0 %v1964, 64
        %v2002 = vpop.permute.xlu0 %2001
        %2003 = vrot.lane.b32.xlu0 %v1965, 64
        %v2004 = vpop.permute.xlu0 %2003
        %2005 = vrot.lane.b32.xlu0 %v1966, 64
        %v2006 = vpop.permute.xlu0 %2005
        %vm2007 = vcmask 261120
        %v2010 = vsel %vm2007, %v1827, %v1968
        %v2013 = vsel %vm2007, %v1828, %v1970
        %v2016 = vsel %vm2007, %v1829, %v1972
        %v2019 = vsel %vm2007, %v1830, %v1974
        %v2022 = vsel %vm2007, %v1831, %v1976
        %v2025 = vsel %vm2007, %v1832, %v1978
        %v2028 = vsel %vm2007, %v1833, %v1980
        %v2031 = vsel %vm2007, %v1834, %v1982
        %vm2032 = vcmask 523264
        %v2034 = vsel %vm2032, %v2010, %v1992
        %v2036 = vsel %vm2032, %v2013, %v1994
        %v2038 = vsel %vm2032, %v2016, %v1996
        %v2040 = vsel %vm2032, %v2019, %v1998
        %v2042 = vsel %vm2032, %v2022, %v2000
        %v2044 = vsel %vm2032, %v2025, %v2002
        %v2046 = vsel %vm2032, %v2028, %v2004
        %v2048 = vsel %vm2032, %v2031, %v2006
        %v2049 = vld [vmem:[%s3] sm:$0xf]
        %v2050 = vld [vmem:[%s3 + $0x4] sm:$0xf]
        %v2051 = vld [vmem:[%s3 + $0x8] sm:$0xf]
        %v2052 = vld [vmem:[%s3 + $0xc] sm:$0xf]
        %v2053 = vld [vmem:[%s3 + $0x10] sm:$0xf]
        %v2054 = vld [vmem:[%s3 + $0x14] sm:$0xf]
        %v2055 = vld [vmem:[%s3 + $0x18] sm:$0xf]
        %v2056 = vld [vmem:[%s3 + $0x1c] sm:$0xf]
        %v2057 = vld [vmem:[%s3 + $0x20] sm:$0xf]
        %v2058 = vld [vmem:[%s3 + $0x24] sm:$0xf]
        %v2059 = vld [vmem:[%s3 + $0x28] sm:$0xf]
        %v2060 = vld [vmem:[%s3 + $0x2c] sm:$0xf]
        %v2061 = vld [vmem:[%s4] sm:$0x1]
        %v2063 = vperm.slane %v2061, 0
        %v2077 = vunpack.c.l.b16 %v2049
        %v2078 = vunpack.c.l.b16 %v2050
        %v2079 = vunpack.c.l.b16 %v2051
        %v2080 = vunpack.c.l.b16 %v2052
        %v2081 = vunpack.c.l.b16 %v2053
        %v2082 = vunpack.c.l.b16 %v2054
        %v2083 = vunpack.c.l.b16 %v2055
        %v2084 = vunpack.c.l.b16 %v2056
        %v2085 = vunpack.c.l.b16 %v2057
        %v2086 = vunpack.c.l.b16 %v2058
        %v2087 = vunpack.c.l.b16 %v2059
        %v2088 = vunpack.c.l.b16 %v2060
        %v2089 = vpack.c.b16 %v2078, %v2077
        %v2090 = vpack.c.b16 %v2080, %v2079
        %v2091 = vpack.c.b16 %v2082, %v2081
        %v2092 = vpack.c.b16 %v2084, %v2083
        %v2093 = vpack.c.b16 %v2086, %v2085
        %v2094 = vpack.c.b16 %v2088, %v2087
        %vm2101 = vcmask 785408
        %v2102 = vsel %vm2101, %v2034, 0
        %v2104 = vsel %vm2101, %v2036, 0
        %v2106 = vsel %vm2101, %v2038, 0
        %v2108 = vsel %vm2101, %v2040, 0
        %v2110 = vsel %vm2101, %v2042, 0
        %v2112 = vsel %vm2101, %v2044, 0
        %v2114 = vsel %vm2101, %v2046, 0
        %v2116 = vsel %vm2101, %v2048, 0
        %2118 = vmatpush.bf16.msra.mxu0 0
        %2119 = vmatpush.bf16.msra.mxu0 0
        %2120 = vmatpush.bf16.msra.mxu0 %v2094
        %2121 = vmatpush.bf16.msra.mxu0 %v2093
        %2122 = vmatpush.bf16.msra.mxu0 %v2092
        %2123 = vmatpush.bf16.msra.mxu0 %v2091
        %2124 = vmatpush.bf16.msra.mxu0 %v2090
        %2125 = vmatpush.bf16.msra.mxu0 %v2089
        %2126 = vmatmul.bf16.gmra.mxu0 %v2102
        %v2127 = vpop.f32.mrf.mxu0
        %v2128 = vadd.f32 %v2063, %v2127
        %v2129 = vpop.f32.mrf.mxu0
        %v2130 = vadd.f32 %v2063, %v2129
        %2131 = vmatmul.bf16.gmra.mxu0 %v2104
        %v2132 = vpop.f32.mrf.mxu0
        %v2133 = vadd.f32 %v2063, %v2132
        %v2134 = vpop.f32.mrf.mxu0
        %v2135 = vadd.f32 %v2063, %v2134
        %2136 = vmatmul.bf16.gmra.mxu0 %v2106
        %v2137 = vpop.f32.mrf.mxu0
        %v2138 = vadd.f32 %v2063, %v2137
        %v2139 = vpop.f32.mrf.mxu0
        %v2140 = vadd.f32 %v2063, %v2139
        %2141 = vmatmul.bf16.gmra.mxu0 %v2108
        %v2142 = vpop.f32.mrf.mxu0
        %v2143 = vadd.f32 %v2063, %v2142
        %v2144 = vpop.f32.mrf.mxu0
        %v2145 = vadd.f32 %v2063, %v2144
        %2146 = vmatmul.bf16.gmra.mxu0 %v2110
        %v2147 = vpop.f32.mrf.mxu0
        %v2148 = vadd.f32 %v2063, %v2147
        %v2149 = vpop.f32.mrf.mxu0
        %v2150 = vadd.f32 %v2063, %v2149
        %2151 = vmatmul.bf16.gmra.mxu0 %v2112
        %v2152 = vpop.f32.mrf.mxu0
        %v2153 = vadd.f32 %v2063, %v2152
        %v2154 = vpop.f32.mrf.mxu0
        %v2155 = vadd.f32 %v2063, %v2154
        %2156 = vmatmul.bf16.gmra.mxu0 %v2114
        %v2157 = vpop.f32.mrf.mxu0
        %v2158 = vadd.f32 %v2063, %v2157
        %v2159 = vpop.f32.mrf.mxu0
        %v2160 = vadd.f32 %v2063, %v2159
        %2161 = vmatmul.bf16.gmra.mxu0 %v2116
        %v2162 = vpop.f32.mrf.mxu0
        %v2163 = vadd.f32 %v2063, %v2162
        %v2164 = vpop.f32.mrf.mxu0
        %2165 = vdwg.mxu0
        %v2166 = vmax.f32 %v2128, 0.0
        %v2167 = vmax.f32 %v2130, 0.0
        %v2168 = vmax.f32 %v2133, 0.0
        %v2169 = vmax.f32 %v2135, 0.0
        %v2170 = vmax.f32 %v2138, 0.0
        %v2171 = vmax.f32 %v2140, 0.0
        %v2172 = vmax.f32 %v2143, 0.0
        %v2173 = vmax.f32 %v2145, 0.0
        %v2174 = vmax.f32 %v2148, 0.0
        %v2175 = vmax.f32 %v2150, 0.0
        %v2176 = vmax.f32 %v2153, 0.0
        %v2177 = vmax.f32 %v2155, 0.0
        %v2178 = vmax.f32 %v2158, 0.0
        %v2179 = vmax.f32 %v2160, 0.0
        %v2180 = vmax.f32 %v2163, 0.0
        %2196 = vrot.lane.b32.xlu0 %v2166, 120
        %v2197 = vpop.permute.xlu0 %2196
        %2198 = vrot.lane.b32.xlu0 %v2167, 120
        %v2199 = vpop.permute.xlu0 %2198
        %2200 = vrot.lane.b32.xlu0 %v2168, 120
        %v2201 = vpop.permute.xlu0 %2200
        %2202 = vrot.lane.b32.xlu0 %v2169, 120
        %v2203 = vpop.permute.xlu0 %2202
        %2204 = vrot.lane.b32.xlu0 %v2170, 120
        %v2205 = vpop.permute.xlu0 %2204
        %2206 = vrot.lane.b32.xlu0 %v2171, 120
        %v2207 = vpop.permute.xlu0 %2206
        %2208 = vrot.lane.b32.xlu0 %v2172, 120
        %v2209 = vpop.permute.xlu0 %2208
        %2210 = vrot.lane.b32.xlu0 %v2173, 120
        %v2211 = vpop.permute.xlu0 %2210
        %2212 = vrot.lane.b32.xlu0 %v2174, 120
        %v2213 = vpop.permute.xlu0 %2212
        %2214 = vrot.lane.b32.xlu0 %v2175, 120
        %v2215 = vpop.permute.xlu0 %2214
        %2216 = vrot.lane.b32.xlu0 %v2176, 120
        %v2217 = vpop.permute.xlu0 %2216
        %2218 = vrot.lane.b32.xlu0 %v2177, 120
        %v2219 = vpop.permute.xlu0 %2218
        %2220 = vrot.lane.b32.xlu0 %v2178, 120
        %v2221 = vpop.permute.xlu0 %2220
        %2222 = vrot.lane.b32.xlu0 %v2179, 120
        %v2223 = vpop.permute.xlu0 %2222
        %2224 = vrot.lane.b32.xlu0 %v2180, 120
        %v2225 = vpop.permute.xlu0 %2224
        %v2241 = vmax.f32 %v2166, %v2197
        %v2242 = vmax.f32 %v2167, %v2199
        %v2243 = vmax.f32 %v2168, %v2201
        %v2244 = vmax.f32 %v2169, %v2203
        %v2245 = vmax.f32 %v2170, %v2205
        %v2246 = vmax.f32 %v2171, %v2207
        %v2247 = vmax.f32 %v2172, %v2209
        %v2248 = vmax.f32 %v2173, %v2211
        %v2249 = vmax.f32 %v2174, %v2213
        %v2250 = vmax.f32 %v2175, %v2215
        %v2251 = vmax.f32 %v2176, %v2217
        %v2252 = vmax.f32 %v2177, %v2219
        %v2253 = vmax.f32 %v2178, %v2221
        %v2254 = vmax.f32 %v2179, %v2223
        %v2255 = vmax.f32 %v2180, %v2225
        %vm2271 = vcmask 1046528
        %v2272 = vrot.slane %v2241, 1
        %v2273 = vrot.slane %v2242, 1
        %v2274 = vsel %vm2271, %v2272, %v2273
        %v2275 = vrot.slane %v2243, 1
        %v2276 = vsel %vm2271, %v2273, %v2275
        %v2277 = vrot.slane %v2244, 1
        %v2278 = vsel %vm2271, %v2275, %v2277
        %v2279 = vrot.slane %v2245, 1
        %v2280 = vsel %vm2271, %v2277, %v2279
        %v2281 = vrot.slane %v2246, 1
        %v2282 = vsel %vm2271, %v2279, %v2281
        %v2283 = vrot.slane %v2247, 1
        %v2284 = vsel %vm2271, %v2281, %v2283
        %v2285 = vrot.slane %v2248, 1
        %v2286 = vsel %vm2271, %v2283, %v2285
        %v2287 = vrot.slane %v2249, 1
        %v2288 = vsel %vm2271, %v2285, %v2287
        %v2289 = vrot.slane %v2250, 1
        %v2290 = vsel %vm2271, %v2287, %v2289
        %v2291 = vrot.slane %v2251, 1
        %v2292 = vsel %vm2271, %v2289, %v2291
        %v2293 = vrot.slane %v2252, 1
        %v2294 = vsel %vm2271, %v2291, %v2293
        %v2295 = vrot.slane %v2253, 1
        %v2296 = vsel %vm2271, %v2293, %v2295
        %v2297 = vrot.slane %v2254, 1
        %v2298 = vsel %vm2271, %v2295, %v2297
        %v2299 = vrot.slane %v2255, 1
        %v2300 = vsel %vm2271, %v2297, %v2299
        %v2316 = vmax.f32 %v2241, %v2274
        %v2317 = vmax.f32 %v2242, %v2276
        %v2318 = vmax.f32 %v2243, %v2278
        %v2319 = vmax.f32 %v2244, %v2280
        %v2320 = vmax.f32 %v2245, %v2282
        %v2321 = vmax.f32 %v2246, %v2284
        %v2322 = vmax.f32 %v2247, %v2286
        %v2323 = vmax.f32 %v2248, %v2288
        %v2324 = vmax.f32 %v2249, %v2290
        %v2325 = vmax.f32 %v2250, %v2292
        %v2326 = vmax.f32 %v2251, %v2294
        %v2327 = vmax.f32 %v2252, %v2296
        %v2328 = vmax.f32 %v2253, %v2298
        %v2329 = vmax.f32 %v2254, %v2300
        %v2330 = vmax.f32 %v2255, %v2299
        %v2331 = vld [vmem:[%s5] sm:$0xf]
        %v2332 = vld [vmem:[%s5 + $0x4] sm:$0xf]
        %v2333 = vld [vmem:[%s5 + $0x8] sm:$0xf]
        %v2334 = vld [vmem:[%s5 + $0xc] sm:$0xf]
        %v2335 = vld [vmem:[%s5 + $0x10] sm:$0xf]
        %v2336 = vld [vmem:[%s5 + $0x14] sm:$0xf]
        %v2337 = vld [vmem:[%s5 + $0x18] sm:$0xf]
        %v2338 = vld [vmem:[%s5 + $0x1c] sm:$0x3]
        %v2339 = vpack.c.bf16 %v2317, %v2316
        %v2340 = vpack.c.bf16 %v2319, %v2318
        %v2341 = vpack.c.bf16 %v2321, %v2320
        %v2342 = vpack.c.bf16 %v2323, %v2322
        %v2343 = vpack.c.bf16 %v2325, %v2324
        %v2344 = vpack.c.bf16 %v2327, %v2326
        %v2345 = vpack.c.bf16 %v2329, %v2328
        %v2346 = vpack.c.bf16 %v2330, %v2330
        %v2355 = vunpack.c.l.b16 %v2331
        %v2356 = vunpack.c.l.b16 %v2332
        %v2357 = vunpack.c.l.b16 %v2333
        %v2358 = vunpack.c.l.b16 %v2334
        %v2359 = vunpack.c.l.b16 %v2335
        %v2360 = vunpack.c.l.b16 %v2336
        %v2361 = vunpack.c.l.b16 %v2337
        %v2362 = vunpack.c.l.b16 %v2338
        %v2363 = vpack.c.b16 %v2356, %v2355
        %v2364 = vpack.c.b16 %v2358, %v2357
        %v2365 = vpack.c.b16 %v2360, %v2359
        %v2366 = vpack.c.b16 %v2362, %v2361
        %vm2367 = vcmask 973824
        %v2369 = vsel %vm2367, %v2363, 0
        %v2372 = vsel %vm2367, %v2364, 0
        %v2375 = vsel %vm2367, %v2365, 0
        %v2378 = vsel %vm2367, %v2366, 0
        %vm2380 = vcmask 1042432
        %vm2381 = vcmask 1043456
        %v2382 = vsel %vm2380, 4294967295, 65535
        %v2383 = vsel %vm2381, %v2382, 0
        %v2385 = vand.u32 %v2346, %v2383
        %2387 = vmatpush.bf16.msra.mxu0 %v2385
        %2388 = vmatpush.bf16.msra.mxu0 %v2345
        %2389 = vmatpush.bf16.msra.mxu0 %v2344
        %2390 = vmatpush.bf16.msra.mxu0 %v2343
        %2391 = vmatpush.bf16.msra.mxu0 %v2342
        %2392 = vmatpush.bf16.msra.mxu0 %v2341
        %2393 = vmatpush.bf16.msra.mxu0 %v2340
        %2394 = vmatpush.bf16.msra.mxu0 %v2339
        %2395 = vmatmul.bf16.gmra.mxu0 %v2369
        %v2396 = vpop.f32.mrf.mxu0
        %v2397 = vadd.f32 0.0, %v2396
        %v2398 = vpop.f32.mrf.mxu0
        %v2399 = vadd.f32 0.0, %v2398
        %2400 = vmatmul.bf16.gmra.mxu0 %v2372
        %v2401 = vpop.f32.mrf.mxu0
        %v2402 = vadd.f32 0.0, %v2401
        %v2403 = vpop.f32.mrf.mxu0
        %v2404 = vadd.f32 0.0, %v2403
        %2405 = vmatmul.bf16.gmra.mxu0 %v2375
        %v2406 = vpop.f32.mrf.mxu0
        %v2407 = vadd.f32 0.0, %v2406
        %v2408 = vpop.f32.mrf.mxu0
        %v2409 = vadd.f32 0.0, %v2408
        %2410 = vmatmul.bf16.gmra.mxu0 %v2378
        %v2411 = vpop.f32.mrf.mxu0
        %v2412 = vadd.f32 0.0, %v2411
        %v2413 = vpop.f32.mrf.mxu0
        %v2414 = vadd.f32 0.0, %v2413
        %2415 = vdwg.mxu0
        %v2416 = vpack.c.bf16 %v2397, %v2397
        %v2417 = vpack.c.bf16 %v2399, %v2399
        %v2418 = vpack.c.bf16 %v2402, %v2402
        %v2419 = vpack.c.bf16 %v2404, %v2404
        %v2420 = vpack.c.bf16 %v2407, %v2407
        %v2421 = vpack.c.bf16 %v2409, %v2409
        %v2422 = vpack.c.bf16 %v2412, %v2412
        %v2423 = vpack.c.bf16 %v2414, %v2414
        %v2432 = vunpack.c.l.b16 %v2416
        %v2433 = vunpack.c.l.b16 %v2417
        %v2434 = vunpack.c.l.b16 %v2418
        %v2435 = vunpack.c.l.b16 %v2419
        %v2436 = vunpack.c.l.b16 %v2420
        %v2437 = vunpack.c.l.b16 %v2421
        %v2438 = vunpack.c.l.b16 %v2422
        %v2439 = vunpack.c.l.b16 %v2423
        %v2440 = vpack.c.b16 %v2433, %v2432
        %v2441 = vpack.c.b16 %v2435, %v2434
        %v2442 = vpack.c.b16 %v2437, %v2436
        %v2443 = vpack.c.b16 %v2439, %v2438
        %v2445 = vshrl.u32 %v2440, 16
        %v2447 = vrot.slane %v2445, 7
        %v2448 = vshll.u32 %v2440, 16
        %v2450 = vor.u32 %v2447, %v2448
        %v2452 = vshrl.u32 %v2441, 16
        %v2454 = vrot.slane %v2452, 7
        %v2455 = vshll.u32 %v2441, 16
        %v2457 = vor.u32 %v2454, %v2455
        %v2458 = vsel %vm1066, %v2447, %v2457
        %v2460 = vshrl.u32 %v2442, 16
        %v2462 = vrot.slane %v2460, 7
        %v2463 = vshll.u32 %v2442, 16
        %v2465 = vor.u32 %v2462, %v2463
        %v2466 = vsel %vm1066, %v2454, %v2465
        %v2468 = vshrl.u32 %v2443, 16
        %v2470 = vrot.slane %v2468, 7
        %v2471 = vshll.u32 %v2443, 16
        %v2473 = vor.u32 %v2470, %v2471
        %v2474 = vsel %vm1066, %v2462, %v2473
        %v2479 = vsel %vm1139, 0, %v2450
        %v2480 = vrot.slane %v2448, 1
        %v2481 = vor.u32 %v2445, %v2480
        %v2482 = vrot.slane %v2455, 1
        %v2483 = vsel %vm1141, %v2481, %v2482
        %v2484 = vor.u32 %v2452, %v2482
        %v2485 = vrot.slane %v2463, 1
        %v2486 = vsel %vm1141, %v2484, %v2485
        %v2487 = vor.u32 %v2460, %v2485
        %v2488 = vrot.slane %v2471, 1
        %v2489 = vsel %vm1141, %v2487, %v2488
        %v2490 = vor.u32 %v2468, %v2488
        %vm2495 = vcmask 1045504
        %vm2496 = vsmask.f32 5376
        %vm2497 = vmand %vm2495, %vm2496
        %v2498 = vsel %vm2497, %v2490, 0
        %vm2499 = vcmp.lt.s32.totalorder %v1178, 0
        %v2500 = vsub.s32 0, %v1178
        %v2501 = vsel %vm2499, %v2500, %v1178
        %v2502 = vand.u32 %v2501, 65535
        %v2503 = vshrl.u32 %v2501, 16
        %v2505 = vmul.u32 %v2502, 34953
        %v2506 = vmul.u32 %v2502, 34952
        %v2507 = vmul.u32 %v2503, 34953
        %v2508 = vmul.u32 %v2503, 34952
        %v2509 = vshll.u32 %v2506, 16
        %v2510 = vshrl.u32 %v2506, 16
        %v2511 = vshll.u32 %v2507, 16
        %v2512 = vshrl.u32 %v2507, 16
        %vm2513 = vc.u32 %v2505, %v2509
        %v2514 = vsel %vm2513, 1, 0
        %v2515 = vadd.s32 %v2505, %v2509
        %v2516 = vadd.s32 %v2508, %v2514
        %vm2517 = vc.u32 %v2515, %v2511
        %v2518 = vsel %vm2517, 1, 0
        %v2519 = vadd.s32 %v2515, %v2511
        %v2520 = vadd.s32 %v2516, %v2518
        %v2521 = vadd.s32 %v2520, %v2510
        %v2522 = vadd.s32 %v2521, %v2512
        %v2523 = vshrl.u32 %v2522, 3
        %v2524 = vmul.u32 %v2523, 15
        %v2525 = vsub.s32 %v2501, %v2524
        %v2526 = vsub.s32 0, %v2525
        %v2527 = vsel %vm2499, %v2526, %v2525
        %vm2528 = vcmp.lt.s32.totalorder %v1179, 0
        %v2529 = vsub.s32 0, %v1179
        %v2530 = vsel %vm2528, %v2529, %v1179
        %v2531 = vand.u32 %v2530, 65535
        %v2532 = vshrl.u32 %v2530, 16
        %v2534 = vmul.u32 %v2531, 34953
        %v2535 = vmul.u32 %v2531, 34952
        %v2536 = vmul.u32 %v2532, 34953
        %v2537 = vmul.u32 %v2532, 34952
        %v2538 = vshll.u32 %v2535, 16
        %v2539 = vshrl.u32 %v2535, 16
        %v2540 = vshll.u32 %v2536, 16
        %v2541 = vshrl.u32 %v2536, 16
        %vm2542 = vc.u32 %v2534, %v2538
        %v2543 = vsel %vm2542, 1, 0
        %v2544 = vadd.s32 %v2534, %v2538
        %v2545 = vadd.s32 %v2537, %v2543
        %vm2546 = vc.u32 %v2544, %v2540
        %v2547 = vsel %vm2546, 1, 0
        %v2548 = vadd.s32 %v2544, %v2540
        %v2549 = vadd.s32 %v2545, %v2547
        %v2550 = vadd.s32 %v2549, %v2539
        %v2551 = vadd.s32 %v2550, %v2541
        %v2552 = vshrl.u32 %v2551, 3
        %v2553 = vmul.u32 %v2552, 15
        %v2554 = vsub.s32 %v2530, %v2553
        %v2555 = vsub.s32 0, %v2554
        %v2556 = vsel %vm2528, %v2555, %v2554
        %vm2557 = vcmp.lt.s32.totalorder %v1180, 0
        %v2558 = vsub.s32 0, %v1180
        %v2559 = vsel %vm2557, %v2558, %v1180
        %v2560 = vand.u32 %v2559, 65535
        %v2561 = vshrl.u32 %v2559, 16
        %v2563 = vmul.u32 %v2560, 34953
        %v2564 = vmul.u32 %v2560, 34952
        %v2565 = vmul.u32 %v2561, 34953
        %v2566 = vmul.u32 %v2561, 34952
        %v2567 = vshll.u32 %v2564, 16
        %v2568 = vshrl.u32 %v2564, 16
        %v2569 = vshll.u32 %v2565, 16
        %v2570 = vshrl.u32 %v2565, 16
        %vm2571 = vc.u32 %v2563, %v2567
        %v2572 = vsel %vm2571, 1, 0
        %v2573 = vadd.s32 %v2563, %v2567
        %v2574 = vadd.s32 %v2566, %v2572
        %vm2575 = vc.u32 %v2573, %v2569
        %v2576 = vsel %vm2575, 1, 0
        %v2577 = vadd.s32 %v2573, %v2569
        %v2578 = vadd.s32 %v2574, %v2576
        %v2579 = vadd.s32 %v2578, %v2568
        %v2580 = vadd.s32 %v2579, %v2570
        %v2581 = vshrl.u32 %v2580, 3
        %v2582 = vmul.u32 %v2581, 15
        %v2583 = vsub.s32 %v2559, %v2582
        %v2584 = vsub.s32 0, %v2583
        %v2585 = vsel %vm2557, %v2584, %v2583
        %vm2586 = vcmp.lt.s32.totalorder %v1181, 0
        %v2587 = vsub.s32 0, %v1181
        %v2588 = vsel %vm2586, %v2587, %v1181
        %v2589 = vand.u32 %v2588, 65535
        %v2590 = vshrl.u32 %v2588, 16
        %v2592 = vmul.u32 %v2589, 34953
        %v2593 = vmul.u32 %v2589, 34952
        %v2594 = vmul.u32 %v2590, 34953
        %v2595 = vmul.u32 %v2590, 34952
        %v2596 = vshll.u32 %v2593, 16
        %v2597 = vshrl.u32 %v2593, 16
        %v2598 = vshll.u32 %v2594, 16
        %v2599 = vshrl.u32 %v2594, 16
        %vm2600 = vc.u32 %v2592, %v2596
        %v2601 = vsel %vm2600, 1, 0
        %v2602 = vadd.s32 %v2592, %v2596
        %v2603 = vadd.s32 %v2595, %v2601
        %vm2604 = vc.u32 %v2602, %v2598
        %v2605 = vsel %vm2604, 1, 0
        %v2606 = vadd.s32 %v2602, %v2598
        %v2607 = vadd.s32 %v2603, %v2605
        %v2608 = vadd.s32 %v2607, %v2597
        %v2609 = vadd.s32 %v2608, %v2599
        %v2610 = vshrl.u32 %v2609, 3
        %v2611 = vmul.u32 %v2610, 15
        %v2612 = vsub.s32 %v2588, %v2611
        %v2613 = vsub.s32 0, %v2612
        %v2614 = vsel %vm2586, %v2613, %v2612
        %vm2615 = vcmp.lt.s32.totalorder %v1182, 0
        %v2616 = vsub.s32 0, %v1182
        %v2617 = vsel %vm2615, %v2616, %v1182
        %v2618 = vand.u32 %v2617, 65535
        %v2619 = vshrl.u32 %v2617, 16
        %v2621 = vmul.u32 %v2618, 34953
        %v2622 = vmul.u32 %v2618, 34952
        %v2623 = vmul.u32 %v2619, 34953
        %v2624 = vmul.u32 %v2619, 34952
        %v2625 = vshll.u32 %v2622, 16
        %v2626 = vshrl.u32 %v2622, 16
        %v2627 = vshll.u32 %v2623, 16
        %v2628 = vshrl.u32 %v2623, 16
        %vm2629 = vc.u32 %v2621, %v2625
        %v2630 = vsel %vm2629, 1, 0
        %v2631 = vadd.s32 %v2621, %v2625
        %v2632 = vadd.s32 %v2624, %v2630
        %vm2633 = vc.u32 %v2631, %v2627
        %v2634 = vsel %vm2633, 1, 0
        %v2635 = vadd.s32 %v2631, %v2627
        %v2636 = vadd.s32 %v2632, %v2634
        %v2637 = vadd.s32 %v2636, %v2626
        %v2638 = vadd.s32 %v2637, %v2628
        %v2639 = vshrl.u32 %v2638, 3
        %v2640 = vmul.u32 %v2639, 15
        %v2641 = vsub.s32 %v2617, %v2640
        %v2642 = vsub.s32 0, %v2641
        %v2643 = vsel %vm2615, %v2642, %v2641
        %vm2644 = vcmp.lt.s32.totalorder %v1183, 0
        %v2645 = vsub.s32 0, %v1183
        %v2646 = vsel %vm2644, %v2645, %v1183
        %v2647 = vand.u32 %v2646, 65535
        %v2648 = vshrl.u32 %v2646, 16
        %v2650 = vmul.u32 %v2647, 34953
        %v2651 = vmul.u32 %v2647, 34952
        %v2652 = vmul.u32 %v2648, 34953
        %v2653 = vmul.u32 %v2648, 34952
        %v2654 = vshll.u32 %v2651, 16
        %v2655 = vshrl.u32 %v2651, 16
        %v2656 = vshll.u32 %v2652, 16
        %v2657 = vshrl.u32 %v2652, 16
        %vm2658 = vc.u32 %v2650, %v2654
        %v2659 = vsel %vm2658, 1, 0
        %v2660 = vadd.s32 %v2650, %v2654
        %v2661 = vadd.s32 %v2653, %v2659
        %vm2662 = vc.u32 %v2660, %v2656
        %v2663 = vsel %vm2662, 1, 0
        %v2664 = vadd.s32 %v2660, %v2656
        %v2665 = vadd.s32 %v2661, %v2663
        %v2666 = vadd.s32 %v2665, %v2655
        %v2667 = vadd.s32 %v2666, %v2657
        %v2668 = vshrl.u32 %v2667, 3
        %v2669 = vmul.u32 %v2668, 15
        %v2670 = vsub.s32 %v2646, %v2669
        %v2671 = vsub.s32 0, %v2670
        %v2672 = vsel %vm2644, %v2671, %v2670
        %vm2673 = vcmp.lt.s32.totalorder %v1184, 0
        %v2674 = vsub.s32 0, %v1184
        %v2675 = vsel %vm2673, %v2674, %v1184
        %v2676 = vand.u32 %v2675, 65535
        %v2677 = vshrl.u32 %v2675, 16
        %v2679 = vmul.u32 %v2676, 34953
        %v2680 = vmul.u32 %v2676, 34952
        %v2681 = vmul.u32 %v2677, 34953
        %v2682 = vmul.u32 %v2677, 34952
        %v2683 = vshll.u32 %v2680, 16
        %v2684 = vshrl.u32 %v2680, 16
        %v2685 = vshll.u32 %v2681, 16
        %v2686 = vshrl.u32 %v2681, 16
        %vm2687 = vc.u32 %v2679, %v2683
        %v2688 = vsel %vm2687, 1, 0
        %v2689 = vadd.s32 %v2679, %v2683
        %v2690 = vadd.s32 %v2682, %v2688
        %vm2691 = vc.u32 %v2689, %v2685
        %v2692 = vsel %vm2691, 1, 0
        %v2693 = vadd.s32 %v2689, %v2685
        %v2694 = vadd.s32 %v2690, %v2692
        %v2695 = vadd.s32 %v2694, %v2684
        %v2696 = vadd.s32 %v2695, %v2686
        %v2697 = vshrl.u32 %v2696, 3
        %v2698 = vmul.u32 %v2697, 15
        %v2699 = vsub.s32 %v2675, %v2698
        %v2700 = vsub.s32 0, %v2699
        %v2701 = vsel %vm2673, %v2700, %v2699
        %vm2702 = vcmp.lt.s32.totalorder %v1185, 0
        %v2703 = vsub.s32 0, %v1185
        %v2704 = vsel %vm2702, %v2703, %v1185
        %v2705 = vand.u32 %v2704, 65535
        %v2706 = vshrl.u32 %v2704, 16
        %v2708 = vmul.u32 %v2705, 34953
        %v2709 = vmul.u32 %v2705, 34952
        %v2710 = vmul.u32 %v2706, 34953
        %v2711 = vmul.u32 %v2706, 34952
        %v2712 = vshll.u32 %v2709, 16
        %v2713 = vshrl.u32 %v2709, 16
        %v2714 = vshll.u32 %v2710, 16
        %v2715 = vshrl.u32 %v2710, 16
        %vm2716 = vc.u32 %v2708, %v2712
        %v2717 = vsel %vm2716, 1, 0
        %v2718 = vadd.s32 %v2708, %v2712
        %v2719 = vadd.s32 %v2711, %v2717
        %vm2720 = vc.u32 %v2718, %v2714
        %v2721 = vsel %vm2720, 1, 0
        %v2722 = vadd.s32 %v2718, %v2714
        %v2723 = vadd.s32 %v2719, %v2721
        %v2724 = vadd.s32 %v2723, %v2713
        %v2725 = vadd.s32 %v2724, %v2715
        %v2726 = vshrl.u32 %v2725, 3
        %v2727 = vmul.u32 %v2726, 15
        %v2728 = vsub.s32 %v2704, %v2727
        %v2729 = vsub.s32 0, %v2728
        %v2730 = vsel %vm2702, %v2729, %v2728
        %vm2731 = vcmp.ne.s32.totalorder %v2527, 0
        %vm2732 = vcmp.ne.s32.totalorder %v2556, 0
        %vm2733 = vcmp.ne.s32.totalorder %v2585, 0
        %vm2734 = vcmp.ne.s32.totalorder %v2614, 0
        %vm2735 = vcmp.ne.s32.totalorder %v2643, 0
        %vm2736 = vcmp.ne.s32.totalorder %v2672, 0
        %vm2737 = vcmp.ne.s32.totalorder %v2701, 0
        %vm2738 = vcmp.ne.s32.totalorder %v2730, 0
        %vm2739 = vcmp.lt.s32.totalorder %v2527, 0
        %vm2740 = vcmp.lt.s32.totalorder %v2556, 0
        %vm2741 = vcmp.lt.s32.totalorder %v2585, 0
        %vm2742 = vcmp.lt.s32.totalorder %v2614, 0
        %vm2743 = vcmp.lt.s32.totalorder %v2643, 0
        %vm2744 = vcmp.lt.s32.totalorder %v2672, 0
        %vm2745 = vcmp.lt.s32.totalorder %v2701, 0
        %vm2746 = vcmp.lt.s32.totalorder %v2730, 0
        %vm2747 = vmand %vm2739, %vm2731
        %vm2748 = vmand %vm2740, %vm2732
        %vm2749 = vmand %vm2741, %vm2733
        %vm2750 = vmand %vm2742, %vm2734
        %vm2751 = vmand %vm2743, %vm2735
        %vm2752 = vmand %vm2744, %vm2736
        %vm2753 = vmand %vm2745, %vm2737
        %vm2754 = vmand %vm2746, %vm2738
        %v2755 = vadd.s32 %v2527, 15
        %v2756 = vadd.s32 %v2556, 15
        %v2757 = vadd.s32 %v2585, 15
        %v2758 = vadd.s32 %v2614, 15
        %v2759 = vadd.s32 %v2643, 15
        %v2760 = vadd.s32 %v2672, 15
        %v2761 = vadd.s32 %v2701, 15
        %v2762 = vadd.s32 %v2730, 15
        %v2763 = vsel %vm2747, %v2755, %v2527
        %v2764 = vsel %vm2748, %v2756, %v2556
        %v2765 = vsel %vm2749, %v2757, %v2585
        %v2766 = vsel %vm2750, %v2758, %v2614
        %v2767 = vsel %vm2751, %v2759, %v2643
        %v2768 = vsel %vm2752, %v2760, %v2672
        %v2769 = vsel %vm2753, %v2761, %v2701
        %v2770 = vsel %vm2754, %v2762, %v2730
        %vm2771 = vcmp.eq.s32.totalorder %v2763, 0
        %vm2772 = vcmp.eq.s32.totalorder %v2764, 0
        %vm2773 = vcmp.eq.s32.totalorder %v2765, 0
        %vm2774 = vcmp.eq.s32.totalorder %v2766, 0
        %vm2775 = vcmp.eq.s32.totalorder %v2767, 0
        %vm2776 = vcmp.eq.s32.totalorder %v2768, 0
        %vm2777 = vcmp.eq.s32.totalorder %v2769, 0
        %vm2778 = vcmp.eq.s32.totalorder %v2770, 0
        %vm2779 = vmpackc.low %vm2771, %vm2771
        %vm2780 = vmpackc.low %vm2772, %vm2772
        %vm2781 = vmpackc.low %vm2773, %vm2773
        %vm2782 = vmpackc.low %vm2774, %vm2774
        %vm2783 = vmpackc.low %vm2775, %vm2775
        %vm2784 = vmpackc.low %vm2776, %vm2776
        %vm2785 = vmpackc.low %vm2777, %vm2777
        %vm2786 = vmpackc.low %vm2778, %vm2778
        %v2787 = vsel %vm2779, 65537, 0
        %v2788 = vsel %vm2780, 65537, 0
        %v2789 = vsel %vm2781, 65537, 0
        %v2790 = vsel %vm2782, 65537, 0
        %v2791 = vsel %vm2783, 65537, 0
        %v2792 = vsel %vm2784, 65537, 0
        %v2793 = vsel %vm2785, 65537, 0
        %v2794 = vsel %vm2786, 65537, 0
        %v2795 = vunpack.c.l.b16 %v2787
        %v2796 = vunpack.c.l.b16 %v2788
        %v2797 = vunpack.c.l.b16 %v2789
        %v2798 = vunpack.c.l.b16 %v2790
        %v2799 = vunpack.c.l.b16 %v2791
        %v2800 = vunpack.c.l.b16 %v2792
        %v2801 = vunpack.c.l.b16 %v2793
        %v2802 = vunpack.c.l.b16 %v2794
        %v2803 = vpack.c.b16 %v2796, %v2795
        %v2804 = vpack.c.b16 %v2798, %v2797
        %v2805 = vpack.c.b16 %v2800, %v2799
        %v2806 = vpack.c.b16 %v2802, %v2801
        %v2807 = vunpack.c.l.b16 %v2803
        %v2808 = vunpack.c.h.b16 %v2803
        %v2809 = vunpack.c.l.b16 0
        %v2810 = vunpack.c.h.b16 0
        %vm2811 = vcmp.ne.s32.totalorder %v2807, %v2809
        %vm2812 = vcmp.ne.s32.totalorder %v2808, %v2810
        %vm2813 = vmpackc.low %vm2812, %vm2811
        %v2814 = vunpack.c.l.b16 %v2804
        %v2815 = vunpack.c.h.b16 %v2804
        %v2816 = vunpack.c.l.b16 0
        %v2817 = vunpack.c.h.b16 0
        %vm2818 = vcmp.ne.s32.totalorder %v2814, %v2816
        %vm2819 = vcmp.ne.s32.totalorder %v2815, %v2817
        %vm2820 = vmpackc.low %vm2819, %vm2818
        %v2821 = vunpack.c.l.b16 %v2805
        %v2822 = vunpack.c.h.b16 %v2805
        %v2823 = vunpack.c.l.b16 0
        %v2824 = vunpack.c.h.b16 0
        %vm2825 = vcmp.ne.s32.totalorder %v2821, %v2823
        %vm2826 = vcmp.ne.s32.totalorder %v2822, %v2824
        %vm2827 = vmpackc.low %vm2826, %vm2825
        %v2828 = vunpack.c.l.b16 %v2806
        %v2829 = vunpack.c.h.b16 %v2806
        %v2830 = vunpack.c.l.b16 0
        %v2831 = vunpack.c.h.b16 0
        %vm2832 = vcmp.ne.s32.totalorder %v2828, %v2830
        %vm2833 = vcmp.ne.s32.totalorder %v2829, %v2831
        %vm2834 = vmpackc.low %vm2833, %vm2832
        %v2835 = vsel %vm2813, 0, %v2479
        %v2836 = vsel %vm2820, 0, %v2458
        %v2837 = vsel %vm2827, 0, %v2466
        %v2838 = vsel %vm2834, 0, %v2474
        %vm2839 = vcmp.eq.s32.totalorder %v2763, 14
        %vm2840 = vcmp.eq.s32.totalorder %v2764, 14
        %vm2841 = vcmp.eq.s32.totalorder %v2765, 14
        %vm2842 = vcmp.eq.s32.totalorder %v2766, 14
        %vm2843 = vcmp.eq.s32.totalorder %v2767, 14
        %vm2844 = vcmp.eq.s32.totalorder %v2768, 14
        %vm2845 = vcmp.eq.s32.totalorder %v2769, 14
        %vm2846 = vcmp.eq.s32.totalorder %v2770, 14
        %vm2847 = vmpackc.low %vm2839, %vm2839
        %vm2848 = vmpackc.low %vm2840, %vm2840
        %vm2849 = vmpackc.low %vm2841, %vm2841
        %vm2850 = vmpackc.low %vm2842, %vm2842
        %vm2851 = vmpackc.low %vm2843, %vm2843
        %vm2852 = vmpackc.low %vm2844, %vm2844
        %vm2853 = vmpackc.low %vm2845, %vm2845
        %vm2854 = vmpackc.low %vm2846, %vm2846
        %v2855 = vsel %vm2847, 65537, 0
        %v2856 = vsel %vm2848, 65537, 0
        %v2857 = vsel %vm2849, 65537, 0
        %v2858 = vsel %vm2850, 65537, 0
        %v2859 = vsel %vm2851, 65537, 0
        %v2860 = vsel %vm2852, 65537, 0
        %v2861 = vsel %vm2853, 65537, 0
        %v2862 = vsel %vm2854, 65537, 0
        %v2863 = vunpack.c.l.b16 %v2855
        %v2864 = vunpack.c.l.b16 %v2856
        %v2865 = vunpack.c.l.b16 %v2857
        %v2866 = vunpack.c.l.b16 %v2858
        %v2867 = vunpack.c.l.b16 %v2859
        %v2868 = vunpack.c.l.b16 %v2860
        %v2869 = vunpack.c.l.b16 %v2861
        %v2870 = vunpack.c.l.b16 %v2862
        %v2871 = vpack.c.b16 %v2864, %v2863
        %v2872 = vpack.c.b16 %v2866, %v2865
        %v2873 = vpack.c.b16 %v2868, %v2867
        %v2874 = vpack.c.b16 %v2870, %v2869
        %v2875 = vunpack.c.l.b16 %v2871
        %v2876 = vunpack.c.h.b16 %v2871
        %v2877 = vunpack.c.l.b16 0
        %v2878 = vunpack.c.h.b16 0
        %vm2879 = vcmp.ne.s32.totalorder %v2875, %v2877
        %vm2880 = vcmp.ne.s32.totalorder %v2876, %v2878
        %vm2881 = vmpackc.low %vm2880, %vm2879
        %v2882 = vunpack.c.l.b16 %v2872
        %v2883 = vunpack.c.h.b16 %v2872
        %v2884 = vunpack.c.l.b16 0
        %v2885 = vunpack.c.h.b16 0
        %vm2886 = vcmp.ne.s32.totalorder %v2882, %v2884
        %vm2887 = vcmp.ne.s32.totalorder %v2883, %v2885
        %vm2888 = vmpackc.low %vm2887, %vm2886
        %v2889 = vunpack.c.l.b16 %v2873
        %v2890 = vunpack.c.h.b16 %v2873
        %v2891 = vunpack.c.l.b16 0
        %v2892 = vunpack.c.h.b16 0
        %vm2893 = vcmp.ne.s32.totalorder %v2889, %v2891
        %vm2894 = vcmp.ne.s32.totalorder %v2890, %v2892
        %vm2895 = vmpackc.low %vm2894, %vm2893
        %v2896 = vunpack.c.l.b16 %v2874
        %v2897 = vunpack.c.h.b16 %v2874
        %v2898 = vunpack.c.l.b16 0
        %v2899 = vunpack.c.h.b16 0
        %vm2900 = vcmp.ne.s32.totalorder %v2896, %v2898
        %vm2901 = vcmp.ne.s32.totalorder %v2897, %v2899
        %vm2902 = vmpackc.low %vm2901, %vm2900
        %v2903 = vsel %vm2881, 0, %v2483
        %v2904 = vsel %vm2888, 0, %v2486
        %v2905 = vsel %vm2895, 0, %v2489
        %v2906 = vsel %vm2902, 0, %v2498
        %2907 = vrot.lane.b32.xlu0 %v2440, 120
        %v2908 = vpop.permute.xlu0 %2907
        %2909 = vrot.lane.b32.xlu0 %v2441, 120
        %v2910 = vpop.permute.xlu0 %2909
        %2911 = vrot.lane.b32.xlu0 %v2442, 120
        %v2912 = vpop.permute.xlu0 %2911
        %2913 = vrot.lane.b32.xlu0 %v2443, 120
        %v2914 = vpop.permute.xlu0 %2913
        %2919 = vrot.lane.b32.xlu0 %v2903, 112
        %v2920 = vpop.permute.xlu0 %2919
        %2921 = vrot.lane.b32.xlu0 %v2904, 112
        %v2922 = vpop.permute.xlu0 %2921
        %2923 = vrot.lane.b32.xlu0 %v2905, 112
        %v2924 = vpop.permute.xlu0 %2923
        %2925 = vrot.lane.b32.xlu0 %v2906, 112
        %v2926 = vpop.permute.xlu0 %2925
        %vm2927 = vcmask 982016
        %v2930 = vsel %vm2927, %v2835, %v2908
        %v2934 = vsel %vm2927, %v2836, %v2910
        %v2938 = vsel %vm2927, %v2837, %v2912
        %v2942 = vsel %vm2927, %v2838, %v2914
        %vm2944 = vcmask 916480
        %v2946 = vsel %vm2944, %v2908, %v2920
        %v2949 = vsel %vm2944, %v2910, %v2922
        %v2952 = vsel %vm2944, %v2912, %v2924
        %v2955 = vsel %vm2944, %v2914, %v2926
        %v2957 = vld [vmem:[%s6] sm:$0xf]
        %v2958 = vld [vmem:[%s6 + $0x4] sm:$0xf]
        %v2959 = vld [vmem:[%s6 + $0x8] sm:$0xf]
        %v2960 = vld [vmem:[%s6 + $0xc] sm:$0xf]
        %v2961 = vld [vmem:[%s6 + $0x10] sm:$0xf]
        %v2962 = vld [vmem:[%s6 + $0x14] sm:$0xf]
        %v2963 = vld [vmem:[%s6 + $0x18] sm:$0xf]
        %v2964 = vld [vmem:[%s6 + $0x1c] sm:$0xf]
        %v2965 = vld [vmem:[%s6 + $0x20] sm:$0xf]
        %v2966 = vld [vmem:[%s6 + $0x24] sm:$0xf]
        %v2967 = vld [vmem:[%s6 + $0x28] sm:$0xf]
        %v2968 = vld [vmem:[%s6 + $0x2c] sm:$0xf]
        %v2969 = vld [vmem:[%s6 + $0x30] sm:$0xf]
        %v2970 = vld [vmem:[%s6 + $0x34] sm:$0xf]
        %v2971 = vld [vmem:[%s6 + $0x38] sm:$0xf]
        %v2972 = vld [vmem:[%s6 + $0x3c] sm:$0xf]
        %v2973 = vld [vmem:[%s6 + $0x40] sm:$0xf]
        %v2974 = vld [vmem:[%s6 + $0x44] sm:$0xf]
        %v2975 = vld [vmem:[%s6 + $0x48] sm:$0xf]
        %v2976 = vld [vmem:[%s6 + $0x4c] sm:$0xf]
        %v2977 = vld [vmem:[%s6 + $0x50] sm:$0xf]
        %v2978 = vld [vmem:[%s6 + $0x54] sm:$0xf]
        %v2979 = vld [vmem:[%s6 + $0x58] sm:$0xf]
        %v2980 = vld [vmem:[%s6 + $0x5c] sm:$0xf]
        %v2981 = vld [vmem:[%s6 + $0x60] sm:$0xf]
        %v2982 = vld [vmem:[%s6 + $0x64] sm:$0xf]
        %v2983 = vld [vmem:[%s6 + $0x68] sm:$0xf]
        %v2984 = vld [vmem:[%s6 + $0x6c] sm:$0xf]
        %v2985 = vld [vmem:[%s6 + $0x70] sm:$0xf]
        %v2986 = vld [vmem:[%s6 + $0x74] sm:$0xf]
        %v2987 = vld [vmem:[%s6 + $0x78] sm:$0xf]
        %v2988 = vld [vmem:[%s6 + $0x7c] sm:$0xf]
        %v2989 = vld [vmem:[%s6 + $0x80] sm:$0xf]
        %v2990 = vld [vmem:[%s6 + $0x84] sm:$0xf]
        %v2991 = vld [vmem:[%s6 + $0x88] sm:$0xf]
        %v2992 = vld [vmem:[%s6 + $0x8c] sm:$0xf]
        %v2993 = vld [vmem:[%s6 + $0x90] sm:$0xf]
        %v2994 = vld [vmem:[%s6 + $0x94] sm:$0xf]
        %v2995 = vld [vmem:[%s6 + $0x98] sm:$0xf]
        %v2996 = vld [vmem:[%s6 + $0x9c] sm:$0xf]
        %v2997 = vld [vmem:[%s6 + $0xa0] sm:$0xf]
        %v2998 = vld [vmem:[%s6 + $0xa4] sm:$0xf]
        %v2999 = vld [vmem:[%s6 + $0xa8] sm:$0xf]
        %v3000 = vld [vmem:[%s6 + $0xac] sm:$0xf]
        %v3001 = vld [vmem:[%s6 + $0xb0] sm:$0xf]
        %v3002 = vld [vmem:[%s7] sm:$0x1]
        %v3004 = vperm.slane %v3002, 0
        %v3051 = vunpack.c.l.b16 %v2957
        %v3052 = vunpack.c.l.b16 %v2958
        %v3053 = vunpack.c.l.b16 %v2959
        %v3054 = vunpack.c.l.b16 %v2960
        %v3055 = vunpack.c.l.b16 %v2961
        %v3056 = vunpack.c.l.b16 %v2962
        %v3057 = vunpack.c.l.b16 %v2963
        %v3058 = vunpack.c.l.b16 %v2964
        %v3059 = vunpack.c.l.b16 %v2965
        %v3060 = vunpack.c.l.b16 %v2966
        %v3061 = vunpack.c.l.b16 %v2967
        %v3062 = vunpack.c.l.b16 %v2968
        %v3063 = vunpack.c.l.b16 %v2969
        %v3064 = vunpack.c.l.b16 %v2970
        %v3065 = vunpack.c.l.b16 %v2971
        %v3066 = vunpack.c.l.b16 %v2972
        %v3067 = vunpack.c.l.b16 %v2973
        %v3068 = vunpack.c.l.b16 %v2974
        %v3069 = vunpack.c.l.b16 %v2975
        %v3070 = vunpack.c.l.b16 %v2976
        %v3071 = vunpack.c.l.b16 %v2977
        %v3072 = vunpack.c.l.b16 %v2978
        %v3073 = vunpack.c.l.b16 %v2979
        %v3074 = vunpack.c.l.b16 %v2980
        %v3075 = vunpack.c.l.b16 %v2981
        %v3076 = vunpack.c.l.b16 %v2982
        %v3077 = vunpack.c.l.b16 %v2983
        %v3078 = vunpack.c.l.b16 %v2984
        %v3079 = vunpack.c.l.b16 %v2985
        %v3080 = vunpack.c.l.b16 %v2986
        %v3081 = vunpack.c.l.b16 %v2987
        %v3082 = vunpack.c.l.b16 %v2988
        %v3083 = vunpack.c.l.b16 %v2989
        %v3084 = vunpack.c.l.b16 %v2990
        %v3085 = vunpack.c.l.b16 %v2991
        %v3086 = vunpack.c.l.b16 %v2992
        %v3087 = vunpack.c.l.b16 %v2993
        %v3088 = vunpack.c.l.b16 %v2994
        %v3089 = vunpack.c.l.b16 %v2995
        %v3090 = vunpack.c.l.b16 %v2996
        %v3091 = vunpack.c.l.b16 %v2997
        %v3092 = vunpack.c.l.b16 %v2998
        %v3093 = vunpack.c.l.b16 %v2999
        %v3094 = vunpack.c.l.b16 %v3000
        %v3095 = vunpack.c.l.b16 %v3001
        %v3096 = vpack.c.b16 %v3052, %v3051
        %v3097 = vpack.c.b16 %v3054, %v3053
        %v3098 = vpack.c.b16 %v3056, %v3055
        %v3099 = vpack.c.b16 %v3058, %v3057
        %v3100 = vpack.c.b16 %v3060, %v3059
        %v3101 = vpack.c.b16 %v3062, %v3061
        %v3102 = vpack.c.b16 %v3064, %v3063
        %v3103 = vpack.c.b16 %v3066, %v3065
        %v3104 = vpack.c.b16 %v3068, %v3067
        %v3105 = vpack.c.b16 %v3070, %v3069
        %v3106 = vpack.c.b16 %v3072, %v3071
        %v3107 = vpack.c.b16 %v3074, %v3073
        %v3108 = vpack.c.b16 %v3076, %v3075
        %v3109 = vpack.c.b16 %v3078, %v3077
        %v3110 = vpack.c.b16 %v3080, %v3079
        %v3111 = vpack.c.b16 %v3082, %v3081
        %v3112 = vpack.c.b16 %v3084, %v3083
        %v3113 = vpack.c.b16 %v3086, %v3085
        %v3114 = vpack.c.b16 %v3088, %v3087
        %v3115 = vpack.c.b16 %v3090, %v3089
        %v3116 = vpack.c.b16 %v3092, %v3091
        %v3117 = vpack.c.b16 %v3094, %v3093
        %v3118 = vpack.c.b16 %v3095, %v3095
        %vm3141 = vcmask 850944
        %v3142 = vsel %vm3141, %v2920, 0
        %v3144 = vsel %vm3141, %v2922, 0
        %v3146 = vsel %vm3141, %v2924, 0
        %v3148 = vsel %vm3141, %v2926, 0
        %v3151 = vsel %vm2381, %v3118, 0
        %3153 = vmatpush.bf16.msra.mxu0 %v3103
        %3154 = vmatpush.bf16.msra.mxu0 %v3102
        %3155 = vmatpush.bf16.msra.mxu0 %v3101
        %3156 = vmatpush.bf16.msra.mxu0 %v3100
        %3157 = vmatpush.bf16.msra.mxu0 %v3099
        %3158 = vmatpush.bf16.msra.mxu0 %v3098
        %3159 = vmatpush.bf16.msra.mxu0 %v3097
        %3160 = vmatpush.bf16.msra.mxu0 %v3096
        %3161 = vmatmul.bf16.gmra.mxu0 %v2930
        %v3162 = vpop.f32.mrf.mxu0
        %v3163 = vadd.f32 %v3004, %v3162
        %v3164 = vpop.f32.mrf.mxu0
        %v3165 = vadd.f32 %v3004, %v3164
        %3166 = vmatmul.bf16.gmra.mxu0 %v2934
        %v3167 = vpop.f32.mrf.mxu0
        %v3168 = vadd.f32 %v3004, %v3167
        %v3169 = vpop.f32.mrf.mxu0
        %v3170 = vadd.f32 %v3004, %v3169
        %3171 = vmatmul.bf16.gmra.mxu0 %v2938
        %v3172 = vpop.f32.mrf.mxu0
        %v3173 = vadd.f32 %v3004, %v3172
        %v3174 = vpop.f32.mrf.mxu0
        %v3175 = vadd.f32 %v3004, %v3174
        %3176 = vmatmul.bf16.gmra.mxu0 %v2942
        %v3177 = vpop.f32.mrf.mxu0
        %v3178 = vadd.f32 %v3004, %v3177
        %v3179 = vpop.f32.mrf.mxu0
        %v3180 = vadd.f32 %v3004, %v3179
        %3181 = vdwg.mxu0
        %3182 = vmatpush.bf16.msra.mxu0 %v3111
        %3183 = vmatpush.bf16.msra.mxu0 %v3110
        %3184 = vmatpush.bf16.msra.mxu0 %v3109
        %3185 = vmatpush.bf16.msra.mxu0 %v3108
        %3186 = vmatpush.bf16.msra.mxu0 %v3107
        %3187 = vmatpush.bf16.msra.mxu0 %v3106
        %3188 = vmatpush.bf16.msra.mxu0 %v3105
        %3189 = vmatpush.bf16.msra.mxu0 %v3104
        %3190 = vmatmul.bf16.gmra.mxu0 %v2946
        %v3191 = vpop.f32.mrf.mxu0
        %v3192 = vadd.f32 %v3163, %v3191
        %v3193 = vpop.f32.mrf.mxu0
        %v3194 = vadd.f32 %v3165, %v3193
        %3195 = vmatmul.bf16.gmra.mxu0 %v2949
        %v3196 = vpop.f32.mrf.mxu0
        %v3197 = vadd.f32 %v3168, %v3196
        %v3198 = vpop.f32.mrf.mxu0
        %v3199 = vadd.f32 %v3170, %v3198
        %3200 = vmatmul.bf16.gmra.mxu0 %v2952
        %v3201 = vpop.f32.mrf.mxu0
        %v3202 = vadd.f32 %v3173, %v3201
        %v3203 = vpop.f32.mrf.mxu0
        %v3204 = vadd.f32 %v3175, %v3203
        %3205 = vmatmul.bf16.gmra.mxu0 %v2955
        %v3206 = vpop.f32.mrf.mxu0
        %v3207 = vadd.f32 %v3178, %v3206
        %v3208 = vpop.f32.mrf.mxu0
        %v3209 = vadd.f32 %v3180, %v3208
        %3210 = vdwg.mxu0
        %3211 = vmatpush.bf16.msra.mxu0 0
        %3212 = vmatpush.bf16.msra.mxu0 %v3151
        %3213 = vmatpush.bf16.msra.mxu0 %v3117
        %3214 = vmatpush.bf16.msra.mxu0 %v3116
        %3215 = vmatpush.bf16.msra.mxu0 %v3115
        %3216 = vmatpush.bf16.msra.mxu0 %v3114
        %3217 = vmatpush.bf16.msra.mxu0 %v3113
        %3218 = vmatpush.bf16.msra.mxu0 %v3112
        %3219 = vmatmul.bf16.gmra.mxu0 %v3142
        %v3220 = vpop.f32.mrf.mxu0
        %v3221 = vadd.f32 %v3192, %v3220
        %v3222 = vpop.f32.mrf.mxu0
        %v3223 = vadd.f32 %v3194, %v3222
        %3224 = vmatmul.bf16.gmra.mxu0 %v3144
        %v3225 = vpop.f32.mrf.mxu0
        %v3226 = vadd.f32 %v3197, %v3225
        %v3227 = vpop.f32.mrf.mxu0
        %v3228 = vadd.f32 %v3199, %v3227
        %3229 = vmatmul.bf16.gmra.mxu0 %v3146
        %v3230 = vpop.f32.mrf.mxu0
        %v3231 = vadd.f32 %v3202, %v3230
        %v3232 = vpop.f32.mrf.mxu0
        %v3233 = vadd.f32 %v3204, %v3232
        %3234 = vmatmul.bf16.gmra.mxu0 %v3148
        %v3235 = vpop.f32.mrf.mxu0
        %v3236 = vadd.f32 %v3207, %v3235
        %v3237 = vpop.f32.mrf.mxu0
        %v3238 = vadd.f32 %v3209, %v3237
        %3239 = vdwg.mxu0
        %v3240 = vmax.f32 %v3221, 0.0
        %v3241 = vmax.f32 %v3223, 0.0
        %v3242 = vmax.f32 %v3226, 0.0
        %v3243 = vmax.f32 %v3228, 0.0
        %v3244 = vmax.f32 %v3231, 0.0
        %v3245 = vmax.f32 %v3233, 0.0
        %v3246 = vmax.f32 %v3236, 0.0
        %v3247 = vmax.f32 %v3238, 0.0
        %3256 = vrot.lane.b32.xlu0 %v3240, 112
        %v3257 = vpop.permute.xlu0 %3256
        %3258 = vrot.lane.b32.xlu0 %v3241, 112
        %v3259 = vpop.permute.xlu0 %3258
        %3260 = vrot.lane.b32.xlu0 %v3242, 112
        %v3261 = vpop.permute.xlu0 %3260
        %3262 = vrot.lane.b32.xlu0 %v3243, 112
        %v3263 = vpop.permute.xlu0 %3262
        %3264 = vrot.lane.b32.xlu0 %v3244, 112
        %v3265 = vpop.permute.xlu0 %3264
        %3266 = vrot.lane.b32.xlu0 %v3245, 112
        %v3267 = vpop.permute.xlu0 %3266
        %3268 = vrot.lane.b32.xlu0 %v3246, 112
        %v3269 = vpop.permute.xlu0 %3268
        %3270 = vrot.lane.b32.xlu0 %v3247, 112
        %v3271 = vpop.permute.xlu0 %3270
        %v3280 = vmax.f32 %v3240, %v3257
        %v3281 = vmax.f32 %v3241, %v3259
        %v3282 = vmax.f32 %v3242, %v3261
        %v3283 = vmax.f32 %v3243, %v3263
        %v3284 = vmax.f32 %v3244, %v3265
        %v3285 = vmax.f32 %v3245, %v3267
        %v3286 = vmax.f32 %v3246, %v3269
        %v3287 = vmax.f32 %v3247, %v3271
        %v3296 = vrot.slane %v3280, 1
        %v3297 = vrot.slane %v3281, 1
        %v3298 = vsel %vm2271, %v3296, %v3297
        %v3299 = vrot.slane %v3282, 1
        %v3300 = vsel %vm2271, %v3297, %v3299
        %v3301 = vrot.slane %v3283, 1
        %v3302 = vsel %vm2271, %v3299, %v3301
        %v3303 = vrot.slane %v3284, 1
        %v3304 = vsel %vm2271, %v3301, %v3303
        %v3305 = vrot.slane %v3285, 1
        %v3306 = vsel %vm2271, %v3303, %v3305
        %v3307 = vrot.slane %v3286, 1
        %v3308 = vsel %vm2271, %v3305, %v3307
        %v3309 = vrot.slane %v3287, 1
        %v3310 = vsel %vm2271, %v3307, %v3309
        %v3319 = vmax.f32 %v3280, %v3298
        %v3320 = vmax.f32 %v3281, %v3300
        %v3321 = vmax.f32 %v3282, %v3302
        %v3322 = vmax.f32 %v3283, %v3304
        %v3323 = vmax.f32 %v3284, %v3306
        %v3324 = vmax.f32 %v3285, %v3308
        %v3325 = vmax.f32 %v3286, %v3310
        %v3326 = vmax.f32 %v3287, %v3309
        %v3327 = vld [vmem:[%s8] sm:$0x3]
        %v3328 = vpack.c.bf16 %v3320, %v3319
        %v3329 = vpack.c.bf16 %v3322, %v3321
        %v3330 = vpack.c.bf16 %v3324, %v3323
        %v3331 = vpack.c.bf16 %v3326, %v3325
        %vm3332 = vcmask 482304
        %v3334 = vsel %vm3332, %v3327, 0
        %vm3336 = vcmask 1044480
        %vm3337 = vcmask 1045504
        %v3338 = vsel %vm3336, 4294967295, 65535
        %v3339 = vsel %vm3337, %v3338, 0
        %v3341 = vand.u32 %v3331, %v3339
        %3343 = vmatpush.bf16.msra.mxu0 0
        %3344 = vmatpush.bf16.msra.mxu0 0
        %3345 = vmatpush.bf16.msra.mxu0 0
        %3346 = vmatpush.bf16.msra.mxu0 0
        %3347 = vmatpush.bf16.msra.mxu0 %v3341
        %3348 = vmatpush.bf16.msra.mxu0 %v3330
        %3349 = vmatpush.bf16.msra.mxu0 %v3329
        %3350 = vmatpush.bf16.msra.mxu0 %v3328
        %3351 = vmatmul.bf16.gmra.mxu0 %v3334
        %v3352 = vpop.f32.mrf.mxu0
        %v3353 = vadd.f32 0.0, %v3352
        %v3354 = vpop.f32.mrf.mxu0
        %3355 = vdwg.mxu0
        %v3356 = vpack.c.bf16 %v3353, %v3353
        %v3357 = vld [vmem:[%s9] sm:$0xf]
        %v3358 = vld [vmem:[%s9 + $0x4] sm:$0xf]
        %v3359 = vld [vmem:[%s9 + $0x8] sm:$0xf]
        %v3360 = vld [vmem:[%s9 + $0xc] sm:$0xf]
        %v3361 = vld [vmem:[%s9 + $0x10] sm:$0xf]
        %v3362 = vld [vmem:[%s9 + $0x14] sm:$0xf]
        %v3363 = vld [vmem:[%s9 + $0x18] sm:$0xf]
        %v3364 = vld [vmem:[%s9 + $0x1c] sm:$0xf]
        %v3365 = vld [vmem:[%s9 + $0x20] sm:$0xf]
        %v3366 = vld [vmem:[%s9 + $0x24] sm:$0xf]
        %v3367 = vld [vmem:[%s9 + $0x28] sm:$0xf]
        %v3368 = vld [vmem:[%s9 + $0x2c] sm:$0xf]
        %v3369 = vld [vmem:[%s9 + $0x30] sm:$0xf]
        %v3370 = vld [vmem:[%s9 + $0x34] sm:$0xf]
        %v3371 = vld [vmem:[%s10] sm:$0x1]
        %v3373 = vperm.slane %v3371, 0
        %v3389 = vunpack.c.l.b16 %v3357
        %v3390 = vunpack.c.l.b16 %v3358
        %v3391 = vunpack.c.l.b16 %v3359
        %v3392 = vunpack.c.l.b16 %v3360
        %v3393 = vunpack.c.l.b16 %v3361
        %v3394 = vunpack.c.l.b16 %v3362
        %v3395 = vunpack.c.l.b16 %v3363
        %v3396 = vunpack.c.l.b16 %v3364
        %v3397 = vunpack.c.l.b16 %v3365
        %v3398 = vunpack.c.l.b16 %v3366
        %v3399 = vunpack.c.l.b16 %v3367
        %v3400 = vunpack.c.l.b16 %v3368
        %v3401 = vunpack.c.l.b16 %v3369
        %v3402 = vunpack.c.l.b16 %v3370
        %v3403 = vpack.c.b16 %v3390, %v3389
        %v3404 = vpack.c.b16 %v3392, %v3391
        %v3405 = vpack.c.b16 %v3394, %v3393
        %v3406 = vpack.c.b16 %v3396, %v3395
        %v3407 = vpack.c.b16 %v3398, %v3397
        %v3408 = vpack.c.b16 %v3400, %v3399
        %v3409 = vpack.c.b16 %v3402, %v3401
        %v3418 = vsel %vm2944, %v3356, 0
        %3420 = vmatpush.bf16.msra.mxu0 0
        %3421 = vmatpush.bf16.msra.mxu0 %v3409
        %3422 = vmatpush.bf16.msra.mxu0 %v3408
        %3423 = vmatpush.bf16.msra.mxu0 %v3407
        %3424 = vmatpush.bf16.msra.mxu0 %v3406
        %3425 = vmatpush.bf16.msra.mxu0 %v3405
        %3426 = vmatpush.bf16.msra.mxu0 %v3404
        %3427 = vmatpush.bf16.msra.mxu0 %v3403
        %3428 = vmatmul.bf16.gmra.mxu0 %v3418
        %v3429 = vpop.f32.mrf.mxu0
        %v3430 = vadd.f32 %v3373, %v3429
        %v3431 = vpop.f32.mrf.mxu0
        %3432 = vdwg.mxu0
        %3433 = vst [vmem:[%s379] sm:$0xf] %v3430
        %s3434 = sand.u32 %s269, 1
        %s3435 = scalar_lea.sflag [#allocation3], %s3434
        %s3436 = sand.u32 %s269, 1
        %s3437 = smul.addr %s3436, 4
        %s3438 = scalar_lea.vmem [#allocation2], %s3437
        // Predicated region
        $region65: #{my_wrapper_forward.1} parent=63 // pred_check
          %p3439 = pneg %p279
        $region66: #{my_wrapper_forward.1} parent=63 // pred_check_branch
          %3441 = sbr.rel (%p3439) target = $region68
        $region67: #{my_wrapper_forward.1} parent=63 // pred_region
          %3443 = vsyncadd %s3435, 0
          %s3444 = smul.addr %s25, 4
          %s3445 = scalar_lea.hbm %s11, %s3444
          %s3447 = sshll.u32 %s3438, 4
          %s3448 = int_to_ptr.vmem [resolvable:$true] %s3447
          %s3449 = sshll.u32 %s3445, 4
          %s3450 = int_to_ptr.hbm [resolvable:$true] %s3449
          %3452 = dma.vmem_to_hbm [thread:$0]  %s3448, 64, %s3450, %s3435
        $region68: #{my_wrapper_forward.1} parent=63 // pred_fallthru
          _
      $region64: #{my_wrapper_forward.1} parent=5 // pred_fallthru
        _
      %p3453 = scmp.le.s32.totalorder 2, %s20
      // Predicated region
      $region69: #{my_wrapper_forward.1} parent=5 // pred_check
        %p3454 = pneg %p3453
      $region70: #{my_wrapper_forward.1} parent=5 // pred_check_branch
        %3456 = sbr.rel (%p3454) target = $region72
      $region71: #{my_wrapper_forward.1} parent=5 // pred_region
        %s3457 = ssub.s32 %s20, 2
        // Predicated region
        $region73: #{my_wrapper_forward.1} parent=71 // pred_check
          %p3458 = pneg %p285
        $region74: #{my_wrapper_forward.1} parent=71 // pred_check_branch
          %3460 = sbr.rel (%p3458) target = $region76
        $region75: #{my_wrapper_forward.1} parent=71 // pred_region
          %s3461 = sand.u32 %s270, 1
          %s3462 = scalar_lea.sflag [#allocation3], %s3461
          %s3463 = sand.u32 %s270, 1
          %s3464 = smul.addr %s3463, 4
          %s3465 = scalar_lea.vmem [#allocation2], %s3464
          %3467 = dma.done %s3462, 64
        $region76: #{my_wrapper_forward.1} parent=71 // pred_fallthru
          _
      $region72: #{my_wrapper_forward.1} parent=5 // pred_fallthru
        _
    $region6: #{my_wrapper_forward.1} parent=1 // loop_footer
      %s24 = sadd.s32 1, %s20
    $region7: #{my_wrapper_forward.1} parent=1 // loop_footer_branch
      %19 = sbr.rel target = $region3
    $region8: #{my_wrapper_forward.1} parent=1 // loop_exit
      _
    %3468 = vsyncpa [#allocation3], 1
    %s3469 = scalar_lea.sflag [#allocation3], 1
    %3470 = vsyncpa %s3469, 1

</llo_original>
